<compile_context>
chip_gen: v7x
topology: tpu7x:2x2x1
jax: 0.10.0
libtpu: 0.0.40
codegen_flags: <defaults>
</compile_context>

<pallas_src>
import jax
import jax.numpy as jnp
from jax.experimental import pallas as pl
from jax.experimental.pallas import tpu as pltpu

# Small versions of the PyTorch defaults
# (in_channels=74, num_features=256, time_window=10, num_blocks=2).
IN_CHANNELS = 16
NUM_FEATURES = 128       # keeps the lane dim fully packed
TIME_WINDOW = 8          # T must equal time_window (kernel_size of reduce)
NUM_BLOCKS = 2
BATCH = 16


# ----------------------------- Pallas kernel -------------------------------

def target_pose_kernel(x_ref, w1s_ref, bn1s_ref, bn1b_ref,
                       wbs_ref, bnbs_ref, bnbb_ref,
                       wrs_ref, br_ref, whead_ref, bhead_ref,
                       out_ref):
    Bblk, T, Cin = x_ref.shape
    F = w1s_ref.shape[1]
    NB = wbs_ref.shape[0]
    cd = w1s_ref.dtype                                       # bf16 compute dtype

    def shift_rep(v, s):
        """v: (Bblk, T, C); out[:, t, :] = v[:, clip(t + s, 0, T-1), :].

        Two-piece build: shifted body + ONE broadcast edge slab (replicate pad).
        """
        if s == 0:
            return v
        B_, T_, C_ = v.shape
        if s > 0:
            edge = jnp.broadcast_to(v[:, T_ - 1:T_, :], (B_, s, C_))
            return jnp.concatenate([v[:, s:, :], edge], axis=1)
        k = -s
        edge = jnp.broadcast_to(v[:, 0:1, :], (B_, k, C_))
        return jnp.concatenate([edge, v[:, :T_ - k, :]], axis=1)

    def gathered_slab(v, taps):
        """Replicate-pad gather: concat shifted copies on lanes -> (Bblk*T, K*C)."""
        parts = [shift_rep(v, s) for s in taps]
        g = jnp.concatenate(parts, axis=-1)
        return g.reshape(Bblk * T, -1)

    x = x_ref[...].astype(cd)                                # (Bblk, T, Cin) bf16

    # conv1: ReplicationPad1d(1) + Conv1d(Cin, F, k=3, bias=False) as ONE matmul
    # (Bblk*T, 3*Cin) @ (3*Cin, F); BN(eval, folded) + ReLU in f32; dropout = id.
    g1 = gathered_slab(x, (-1, 0, 1))
    h = jnp.dot(g1, w1s_ref[...], preferred_element_type=jnp.float32)
    h = jnp.maximum(h * bn1s_ref[...] + bn1b_ref[...], 0.0)  # (Bblk*T, F) f32

    # Residual dilated blocks: pad(4) + Conv1d(F, F, k=5, dil=2) + BN + ReLU + res.
    for i in range(NB):
        pre = h
        hb = h.astype(cd).reshape(Bblk, T, F)
        gb = gathered_slab(hb, (-4, -2, 0, 2, 4))            # (Bblk*T, 5*F)
        y = jnp.dot(gb, wbs_ref[i], preferred_element_type=jnp.float32)
        y = jnp.maximum(y * bnbs_ref[i] + bnbb_ref[i], 0.0)
        h = pre + y

    # reduce: Conv1d(F, F, kernel_size=T) as ONE deep-K matmul:
    # (Bblk, T*F) @ (T*F, F). The (Bblk, T*F) slab is built by lane-concat of
    # sublane slices (cheap relayout, no per-tap M=Bblk matmuls).
    h3 = h.astype(cd).reshape(Bblk, T, F)
    hflat = jnp.concatenate([h3[:, t, :] for t in range(T)], axis=-1)
    r = jnp.dot(hflat, wrs_ref[...], preferred_element_type=jnp.float32)
    r = jnp.maximum(r + br_ref[...], 0.0)                    # (Bblk, F) f32

    # Fused heads: whead = [outCon | outOri] -> (Bblk, 8); sigmoid on lanes 0..3.
    o = jnp.dot(r.astype(cd), whead_ref[...],
                preferred_element_type=jnp.float32) + bhead_ref[...]
    lane = jax.lax.broadcasted_iota(jnp.int32, o.shape, 1)
    out_ref[...] = jnp.where(lane < 4, jax.nn.sigmoid(o), o)


# ------------------------- one-time weight packing ---------------------------

def prepack_params(params, compute_dtype=jnp.bfloat16):
    """Hoisted weight prep: tap-stacking, head fusion, bf16 casts. Call ONCE."""
    w1, bn1s, bn1b, wb, bnbs, bnbb, wr, br, wcon, bcon, wori, bori = params
    Cin, F = w1.shape[1], w1.shape[2]
    NB = wb.shape[0]
    T = wr.shape[0]
    cd = compute_dtype

    w1s = w1.reshape(3 * Cin, F).astype(cd)                   # (3*Cin, F)
    wbs = wb.reshape(NB, 5 * F, F).astype(cd)                 # (NB, 5*F, F)
    wrs = wr.reshape(T * F, F).astype(cd)                     # (T*F, F) deep-K
    whead = jnp.concatenate([wcon, wori], axis=1).astype(cd)  # (F, 8)
    bhead = jnp.concatenate([bcon, bori], axis=1).astype(jnp.float32)  # (1, 8)

    return (w1s, bn1s.astype(jnp.float32), bn1b.astype(jnp.float32),
            wbs, bnbs.astype(jnp.float32), bnbb.astype(jnp.float32),
            wrs, br.astype(jnp.float32), whead, bhead)


# ------------------------------- wrapper ------------------------------------

def target_pose_forward(x, packed, *, block_b=None):
    """x: (B, T, Cin) f32; packed: output of prepack_params.

    block_b=None -> whole batch in one grid step (best on single-TC v5e/v6e:
    M = B*T conv rows). On v7x set block_b=B//2 so each TensorCore takes one
    block (grid marked "parallel").
    """
    w1s, bn1s, bn1b, wbs, bnbs, bnbb, wrs, br, whead, bhead = packed
    B, T, Cin = x.shape
    bb = B if block_b is None else min(block_b, B)
    assert B % bb == 0, "wrapper requires B % block_b == 0"

    args = (x, w1s, bn1s, bn1b, wbs, bnbs, bnbb, wrs, br, whead, bhead)

    def resident(a):
        # grid-invariant index map -> weight stays VMEM-resident across steps
        return pl.BlockSpec(a.shape, lambda b, _n=a.ndim: (0,) * _n)

    in_specs = [pl.BlockSpec((bb, T, Cin), lambda b: (b, 0, 0))]
    in_specs += [resident(a) for a in args[1:]]

    out = pl.pallas_call(
        target_pose_kernel,
        out_shape=jax.ShapeDtypeStruct((B, 8), jnp.float32),
        grid_spec=pltpu.PrefetchScalarGridSpec(
            num_scalar_prefetch=0,
            grid=(B // bb,),
            in_specs=in_specs,
            out_specs=pl.BlockSpec((bb, 8), lambda b: (b, 0)),
        ),
        compiler_params=pltpu.CompilerParams(
            dimension_semantics=("parallel",)),
    )(*args)
    return out[:, :4], out[:, 4:]


# ------------------------- deterministic parameters -------------------------

def _fold_bn(gamma, beta, mean, var, eps=1e-5):
    scale = gamma / jnp.sqrt(var + eps)
    shift = beta - mean * scale
    return scale, shift


def init_params(key):
    Cin, F, T, NB = IN_CHANNELS, NUM_FEATURES, TIME_WINDOW, NUM_BLOCKS
    ks = jax.random.split(key, 16)

    w1 = jax.random.normal(ks[0], (3, Cin, F), jnp.float32) / jnp.sqrt(3.0 * Cin)

    g1 = 1.0 + 0.1 * jax.random.normal(ks[1], (1, F), jnp.float32)
    b1 = 0.1 * jax.random.normal(ks[2], (1, F), jnp.float32)
    m1 = 0.1 * jax.random.normal(ks[3], (1, F), jnp.float32)
    v1 = 1.0 + 0.1 * jnp.abs(jax.random.normal(ks[4], (1, F), jnp.float32))
    bn1s, bn1b = _fold_bn(g1, b1, m1, v1)

    wb = jax.random.normal(ks[5], (NB, 5, F, F), jnp.float32) / jnp.sqrt(5.0 * F)
    gb = 1.0 + 0.1 * jax.random.normal(ks[6], (NB, 1, F), jnp.float32)
    bb = 0.1 * jax.random.normal(ks[7], (NB, 1, F), jnp.float32)
    mb = 0.1 * jax.random.normal(ks[8], (NB, 1, F), jnp.float32)
    vb = 1.0 + 0.1 * jnp.abs(jax.random.normal(ks[9], (NB, 1, F), jnp.float32))
    bnbs, bnbb = _fold_bn(gb, bb, mb, vb)

    wr = jax.random.normal(ks[10], (T, F, F), jnp.float32) / jnp.sqrt(T * F * 1.0)
    br = 0.1 * jax.random.normal(ks[11], (1, F), jnp.float32)

    wcon = jax.random.normal(ks[12], (F, 4), jnp.float32) / jnp.sqrt(F * 1.0)
    bcon = 0.1 * jax.random.normal(ks[13], (1, 4), jnp.float32)
    wori = jax.random.normal(ks[14], (F, 4), jnp.float32) / jnp.sqrt(F * 1.0)
    bori = 0.1 * jax.random.normal(ks[15], (1, 4), jnp.float32)

    return (w1, bn1s, bn1b, wb, bnbs, bnbb, wr, br, wcon, bcon, wori, bori)


# ------------------------- pure-JAX reference (check) ------------------------
# Mirrors the kernel's bf16 quantization points (bf16 operands, f32 accumulate,
# f32 epilogues) so the check validates the Pallas gather/matmul structure.

def reference_forward(x, params):
    w1, bn1s, bn1b, wb, bnbs, bnbb, wr, br, wcon, bcon, wori, bori = params
    B, T, Cin = x.shape
    NB = wb.shape[0]
    cd = jnp.bfloat16

    def rep_pad(v, p):                       # (B, T, C) -> (B, T+2p, C)
        left = jnp.repeat(v[:, :1, :], p, axis=1)
        right = jnp.repeat(v[:, -1:, :], p, axis=1)
        return jnp.concatenate([left, v, right], axis=1)

    def conv(v, w, dil, pad):                # v: (B,T,C) bf16, w: (K,C,F) f32
        K = w.shape[0]
        vp = rep_pad(v, pad)
        return sum(jnp.einsum('btc,cf->btf', vp[:, k * dil:k * dil + T, :],
                              w[k].astype(cd),
                              preferred_element_type=jnp.float32)
                   for k in range(K))

    h = conv(x.astype(cd), w1, 1, 1)
    h = jnp.maximum(h * bn1s + bn1b, 0.0)

    for i in range(NB):
        pre = h
        y = conv(h.astype(cd), wb[i], 2, 4)
        y = jnp.maximum(y * bnbs[i] + bnbb[i], 0.0)
        h = pre + y

    hb = h.astype(cd)
    r = sum(jnp.einsum('bf,fg->bg', hb[:, t, :], wr[t].astype(cd),
                       preferred_element_type=jnp.float32)
            for t in range(T)) + br
    r = jnp.maximum(r, 0.0)

    rb = r.astype(cd)
    con = jax.nn.sigmoid(jnp.einsum('bf,fk->bk', rb, wcon.astype(cd),
                                    preferred_element_type=jnp.float32) + bcon)
    ori = jnp.einsum('bf,fk->bk', rb, wori.astype(cd),
                     preferred_element_type=jnp.float32) + bori
    return con, ori


# ----------------------------------- main ------------------------------------

if __name__ == "__main__":
    key = jax.random.PRNGKey(0)
    pkey, xkey = jax.random.split(key)
    params = init_params(pkey)
    packed = prepack_params(params)      # one-time weight packing (hoisted)
    x = jax.random.normal(xkey, (BATCH, TIME_WINDOW, IN_CHANNELS), jnp.float32)

    fwd = jax.jit(target_pose_forward)   # per-call work = one pallas_call
    con, ori = fwd(x, packed)
    jax.block_until_ready((con, ori))

    ref_con, ref_ori = reference_forward(x, params)
    assert con.shape == (BATCH, 4) and ori.shape == (BATCH, 4)
    assert jnp.allclose(con, ref_con, atol=2e-3, rtol=2e-3)
    assert jnp.allclose(ori, ref_ori, atol=2e-3, rtol=2e-3)

    print("KERNEL_OK")
</pallas_src>

<mosaic_0001>
module attributes {stable_mosaic.version = 11 : i64} {
  func.func @target_pose_kernel(%arg0: i32, %arg1: memref<16x8x16xf32, #tpu.memory_space<vmem>>, %arg2: memref<48x128xbf16, #tpu.memory_space<vmem>>, %arg3: memref<1x128xf32, #tpu.memory_space<vmem>>, %arg4: memref<1x128xf32, #tpu.memory_space<vmem>>, %arg5: memref<2x640x128xbf16, #tpu.memory_space<vmem>>, %arg6: memref<2x1x128xf32, #tpu.memory_space<vmem>>, %arg7: memref<2x1x128xf32, #tpu.memory_space<vmem>>, %arg8: memref<1024x128xbf16, #tpu.memory_space<vmem>>, %arg9: memref<1x128xf32, #tpu.memory_space<vmem>>, %arg10: memref<128x8xbf16, #tpu.memory_space<vmem>>, %arg11: memref<1x8xf32, #tpu.memory_space<vmem>>, %arg12: memref<16x8xf32, #tpu.memory_space<vmem>>) attributes {dimension_semantics = [#tpu.dimension_semantics<parallel>], iteration_bounds = array<i64: 1>, scalar_prefetch = 0 : i64, scratch_operands = 0 : i64, tpu.core_type = #tpu.core_type<tc>, window_params = [{transform_indices = @transform_0, window_bounds = array<i64: 16, 8, 16>}, {pipeline_mode = #tpu.pipeline_mode<synchronous>, transform_indices = @transform_1, window_bounds = array<i64: 48, 128>}, {pipeline_mode = #tpu.pipeline_mode<synchronous>, transform_indices = @transform_2, window_bounds = array<i64: 1, 128>}, {pipeline_mode = #tpu.pipeline_mode<synchronous>, transform_indices = @transform_3, window_bounds = array<i64: 1, 128>}, {pipeline_mode = #tpu.pipeline_mode<synchronous>, transform_indices = @transform_4, window_bounds = array<i64: 2, 640, 128>}, {pipeline_mode = #tpu.pipeline_mode<synchronous>, transform_indices = @transform_5, window_bounds = array<i64: 2, 1, 128>}, {pipeline_mode = #tpu.pipeline_mode<synchronous>, transform_indices = @transform_6, window_bounds = array<i64: 2, 1, 128>}, {pipeline_mode = #tpu.pipeline_mode<synchronous>, transform_indices = @transform_7, window_bounds = array<i64: 1024, 128>}, {pipeline_mode = #tpu.pipeline_mode<synchronous>, transform_indices = @transform_8, window_bounds = array<i64: 1, 128>}, {pipeline_mode = #tpu.pipeline_mode<synchronous>, transform_indices = @transform_9, window_bounds = array<i64: 128, 8>}, {pipeline_mode = #tpu.pipeline_mode<synchronous>, transform_indices = @transform_10, window_bounds = array<i64: 1, 8>}, {transform_indices = @transform_11, window_bounds = array<i64: 16, 8>}]} {
    %c0 = arith.constant 0 : index
    %c0_0 = arith.constant 0 : index
    %c0_1 = arith.constant 0 : index
    %0 = vector.load %arg1[%c0, %c0_0, %c0_1] : memref<16x8x16xf32, #tpu.memory_space<vmem>>, vector<16x8x16xf32>
    %1 = arith.truncf %0 : vector<16x8x16xf32> to vector<16x8x16xbf16>
    %2 = vector.extract_strided_slice %1 {offsets = [0, 0, 0], sizes = [16, 1, 16], strides = [1, 1, 1]} : vector<16x8x16xbf16> to vector<16x1x16xbf16>
    %3 = vector.extract_strided_slice %1 {offsets = [0, 0, 0], sizes = [16, 7, 16], strides = [1, 1, 1]} : vector<16x8x16xbf16> to vector<16x7x16xbf16>
    %4 = tpu.concatenate %2, %3 in 1 : vector<16x1x16xbf16>, vector<16x7x16xbf16> -> vector<16x8x16xbf16>
    %5 = vector.extract_strided_slice %1 {offsets = [0, 7, 0], sizes = [16, 1, 16], strides = [1, 1, 1]} : vector<16x8x16xbf16> to vector<16x1x16xbf16>
    %6 = vector.extract_strided_slice %1 {offsets = [0, 1, 0], sizes = [16, 7, 16], strides = [1, 1, 1]} : vector<16x8x16xbf16> to vector<16x7x16xbf16>
    %7 = tpu.concatenate %6, %5 in 1 : vector<16x7x16xbf16>, vector<16x1x16xbf16> -> vector<16x8x16xbf16>
    %8 = tpu.concatenate %4, %1, %7 in 2 : vector<16x8x16xbf16>, vector<16x8x16xbf16>, vector<16x8x16xbf16> -> vector<16x8x48xbf16>
    %9 = vector.shape_cast %8 : vector<16x8x48xbf16> to vector<128x48xbf16>
    %c0_2 = arith.constant 0 : index
    %c0_3 = arith.constant 0 : index
    %10 = vector.load %arg2[%c0_2, %c0_3] : memref<48x128xbf16, #tpu.memory_space<vmem>>, vector<48x128xbf16>
    %cst = arith.constant dense<0.000000e+00> : vector<128x128xf32>
    %11 = tpu.matmul %9, %10, %cst {dimension_numbers = #tpu.dot_dimension_numbers<[1], [0], [0], [1], [0, 0, 1, 1], [], []>} : vector<128x48xbf16>, vector<48x128xbf16>, vector<128x128xf32> -> vector<128x128xf32>
    %c0_4 = arith.constant 0 : index
    %c0_5 = arith.constant 0 : index
    %12 = vector.load %arg3[%c0_4, %c0_5] : memref<1x128xf32, #tpu.memory_space<vmem>>, vector<1x128xf32>
    %13 = vector.broadcast %12 : vector<1x128xf32> to vector<128x128xf32>
    %14 = arith.mulf %11, %13 : vector<128x128xf32>
    %c0_6 = arith.constant 0 : index
    %c0_7 = arith.constant 0 : index
    %15 = vector.load %arg4[%c0_6, %c0_7] : memref<1x128xf32, #tpu.memory_space<vmem>>, vector<1x128xf32>
    %16 = vector.broadcast %15 : vector<1x128xf32> to vector<128x128xf32>
    %17 = arith.addf %14, %16 : vector<128x128xf32>
    %cst_8 = arith.constant 0.000000e+00 : f32
    %18 = vector.broadcast %cst_8 : f32 to vector<128x128xf32>
    %19 = arith.maximumf %17, %18 : vector<128x128xf32>
    %20 = arith.truncf %19 : vector<128x128xf32> to vector<128x128xbf16>
    %21 = vector.shape_cast %20 : vector<128x128xbf16> to vector<16x8x128xbf16>
    %22 = vector.extract_strided_slice %21 {offsets = [0, 0, 0], sizes = [16, 1, 128], strides = [1, 1, 1]} : vector<16x8x128xbf16> to vector<16x1x128xbf16>
    %23 = vector.shape_cast %22 : vector<16x1x128xbf16> to vector<16x1x128xbf16>
    %24 = vector.broadcast %23 : vector<16x1x128xbf16> to vector<16x4x128xbf16>
    %25 = vector.extract_strided_slice %21 {offsets = [0, 0, 0], sizes = [16, 4, 128], strides = [1, 1, 1]} : vector<16x8x128xbf16> to vector<16x4x128xbf16>
    %26 = tpu.concatenate %24, %25 in 1 : vector<16x4x128xbf16>, vector<16x4x128xbf16> -> vector<16x8x128xbf16>
    %27 = vector.extract_strided_slice %21 {offsets = [0, 0, 0], sizes = [16, 1, 128], strides = [1, 1, 1]} : vector<16x8x128xbf16> to vector<16x1x128xbf16>
    %28 = vector.shape_cast %27 : vector<16x1x128xbf16> to vector<16x1x128xbf16>
    %29 = vector.broadcast %28 : vector<16x1x128xbf16> to vector<16x2x128xbf16>
    %30 = vector.extract_strided_slice %21 {offsets = [0, 0, 0], sizes = [16, 6, 128], strides = [1, 1, 1]} : vector<16x8x128xbf16> to vector<16x6x128xbf16>
    %31 = tpu.concatenate %29, %30 in 1 : vector<16x2x128xbf16>, vector<16x6x128xbf16> -> vector<16x8x128xbf16>
    %32 = vector.extract_strided_slice %21 {offsets = [0, 7, 0], sizes = [16, 1, 128], strides = [1, 1, 1]} : vector<16x8x128xbf16> to vector<16x1x128xbf16>
    %33 = vector.shape_cast %32 : vector<16x1x128xbf16> to vector<16x1x128xbf16>
    %34 = vector.broadcast %33 : vector<16x1x128xbf16> to vector<16x2x128xbf16>
    %35 = vector.extract_strided_slice %21 {offsets = [0, 2, 0], sizes = [16, 6, 128], strides = [1, 1, 1]} : vector<16x8x128xbf16> to vector<16x6x128xbf16>
    %36 = tpu.concatenate %35, %34 in 1 : vector<16x6x128xbf16>, vector<16x2x128xbf16> -> vector<16x8x128xbf16>
    %37 = vector.extract_strided_slice %21 {offsets = [0, 7, 0], sizes = [16, 1, 128], strides = [1, 1, 1]} : vector<16x8x128xbf16> to vector<16x1x128xbf16>
    %38 = vector.shape_cast %37 : vector<16x1x128xbf16> to vector<16x1x128xbf16>
    %39 = vector.broadcast %38 : vector<16x1x128xbf16> to vector<16x4x128xbf16>
    %40 = vector.extract_strided_slice %21 {offsets = [0, 4, 0], sizes = [16, 4, 128], strides = [1, 1, 1]} : vector<16x8x128xbf16> to vector<16x4x128xbf16>
    %41 = tpu.concatenate %40, %39 in 1 : vector<16x4x128xbf16>, vector<16x4x128xbf16> -> vector<16x8x128xbf16>
    %42 = tpu.concatenate %26, %31, %21, %36, %41 in 2 : vector<16x8x128xbf16>, vector<16x8x128xbf16>, vector<16x8x128xbf16>, vector<16x8x128xbf16>, vector<16x8x128xbf16> -> vector<16x8x640xbf16>
    %43 = vector.shape_cast %42 : vector<16x8x640xbf16> to vector<128x640xbf16>
    %c0_9 = arith.constant 0 : index
    %c0_10 = arith.constant 0 : index
    %c0_11 = arith.constant 0 : index
    %44 = vector.load %arg5[%c0_9, %c0_10, %c0_11] : memref<2x640x128xbf16, #tpu.memory_space<vmem>>, vector<1x640x128xbf16>
    %45 = vector.shape_cast %44 : vector<1x640x128xbf16> to vector<640x128xbf16>
    %cst_12 = arith.constant dense<0.000000e+00> : vector<128x128xf32>
    %46 = tpu.matmul %43, %45, %cst_12 {dimension_numbers = #tpu.dot_dimension_numbers<[1], [0], [0], [1], [0, 0, 1, 1], [], []>} : vector<128x640xbf16>, vector<640x128xbf16>, vector<128x128xf32> -> vector<128x128xf32>
    %c0_13 = arith.constant 0 : index
    %c0_14 = arith.constant 0 : index
    %c0_15 = arith.constant 0 : index
    %47 = vector.load %arg6[%c0_13, %c0_14, %c0_15] : memref<2x1x128xf32, #tpu.memory_space<vmem>>, vector<1x1x128xf32>
    %48 = vector.shape_cast %47 : vector<1x1x128xf32> to vector<1x128xf32>
    %49 = vector.broadcast %48 : vector<1x128xf32> to vector<128x128xf32>
    %50 = arith.mulf %46, %49 : vector<128x128xf32>
    %c0_16 = arith.constant 0 : index
    %c0_17 = arith.constant 0 : index
    %c0_18 = arith.constant 0 : index
    %51 = vector.load %arg7[%c0_16, %c0_17, %c0_18] : memref<2x1x128xf32, #tpu.memory_space<vmem>>, vector<1x1x128xf32>
    %52 = vector.shape_cast %51 : vector<1x1x128xf32> to vector<1x128xf32>
    %53 = vector.broadcast %52 : vector<1x128xf32> to vector<128x128xf32>
    %54 = arith.addf %50, %53 : vector<128x128xf32>
    %cst_19 = arith.constant 0.000000e+00 : f32
    %55 = vector.broadcast %cst_19 : f32 to vector<128x128xf32>
    %56 = arith.maximumf %54, %55 : vector<128x128xf32>
    %57 = arith.addf %19, %56 : vector<128x128xf32>
    %58 = arith.truncf %57 : vector<128x128xf32> to vector<128x128xbf16>
    %59 = vector.shape_cast %58 : vector<128x128xbf16> to vector<16x8x128xbf16>
    %60 = vector.extract_strided_slice %59 {offsets = [0, 0, 0], sizes = [16, 1, 128], strides = [1, 1, 1]} : vector<16x8x128xbf16> to vector<16x1x128xbf16>
    %61 = vector.shape_cast %60 : vector<16x1x128xbf16> to vector<16x1x128xbf16>
    %62 = vector.broadcast %61 : vector<16x1x128xbf16> to vector<16x4x128xbf16>
    %63 = vector.extract_strided_slice %59 {offsets = [0, 0, 0], sizes = [16, 4, 128], strides = [1, 1, 1]} : vector<16x8x128xbf16> to vector<16x4x128xbf16>
    %64 = tpu.concatenate %62, %63 in 1 : vector<16x4x128xbf16>, vector<16x4x128xbf16> -> vector<16x8x128xbf16>
    %65 = vector.extract_strided_slice %59 {offsets = [0, 0, 0], sizes = [16, 1, 128], strides = [1, 1, 1]} : vector<16x8x128xbf16> to vector<16x1x128xbf16>
    %66 = vector.shape_cast %65 : vector<16x1x128xbf16> to vector<16x1x128xbf16>
    %67 = vector.broadcast %66 : vector<16x1x128xbf16> to vector<16x2x128xbf16>
    %68 = vector.extract_strided_slice %59 {offsets = [0, 0, 0], sizes = [16, 6, 128], strides = [1, 1, 1]} : vector<16x8x128xbf16> to vector<16x6x128xbf16>
    %69 = tpu.concatenate %67, %68 in 1 : vector<16x2x128xbf16>, vector<16x6x128xbf16> -> vector<16x8x128xbf16>
    %70 = vector.extract_strided_slice %59 {offsets = [0, 7, 0], sizes = [16, 1, 128], strides = [1, 1, 1]} : vector<16x8x128xbf16> to vector<16x1x128xbf16>
    %71 = vector.shape_cast %70 : vector<16x1x128xbf16> to vector<16x1x128xbf16>
    %72 = vector.broadcast %71 : vector<16x1x128xbf16> to vector<16x2x128xbf16>
    %73 = vector.extract_strided_slice %59 {offsets = [0, 2, 0], sizes = [16, 6, 128], strides = [1, 1, 1]} : vector<16x8x128xbf16> to vector<16x6x128xbf16>
    %74 = tpu.concatenate %73, %72 in 1 : vector<16x6x128xbf16>, vector<16x2x128xbf16> -> vector<16x8x128xbf16>
    %75 = vector.extract_strided_slice %59 {offsets = [0, 7, 0], sizes = [16, 1, 128], strides = [1, 1, 1]} : vector<16x8x128xbf16> to vector<16x1x128xbf16>
    %76 = vector.shape_cast %75 : vector<16x1x128xbf16> to vector<16x1x128xbf16>
    %77 = vector.broadcast %76 : vector<16x1x128xbf16> to vector<16x4x128xbf16>
    %78 = vector.extract_strided_slice %59 {offsets = [0, 4, 0], sizes = [16, 4, 128], strides = [1, 1, 1]} : vector<16x8x128xbf16> to vector<16x4x128xbf16>
    %79 = tpu.concatenate %78, %77 in 1 : vector<16x4x128xbf16>, vector<16x4x128xbf16> -> vector<16x8x128xbf16>
    %80 = tpu.concatenate %64, %69, %59, %74, %79 in 2 : vector<16x8x128xbf16>, vector<16x8x128xbf16>, vector<16x8x128xbf16>, vector<16x8x128xbf16>, vector<16x8x128xbf16> -> vector<16x8x640xbf16>
    %81 = vector.shape_cast %80 : vector<16x8x640xbf16> to vector<128x640xbf16>
    %c1 = arith.constant 1 : index
    %c0_20 = arith.constant 0 : index
    %c0_21 = arith.constant 0 : index
    %82 = vector.load %arg5[%c1, %c0_20, %c0_21] : memref<2x640x128xbf16, #tpu.memory_space<vmem>>, vector<1x640x128xbf16>
    %83 = vector.shape_cast %82 : vector<1x640x128xbf16> to vector<640x128xbf16>
    %cst_22 = arith.constant dense<0.000000e+00> : vector<128x128xf32>
    %84 = tpu.matmul %81, %83, %cst_22 {dimension_numbers = #tpu.dot_dimension_numbers<[1], [0], [0], [1], [0, 0, 1, 1], [], []>} : vector<128x640xbf16>, vector<640x128xbf16>, vector<128x128xf32> -> vector<128x128xf32>
    %c1_23 = arith.constant 1 : index
    %c0_24 = arith.constant 0 : index
    %c0_25 = arith.constant 0 : index
    %85 = vector.load %arg6[%c1_23, %c0_24, %c0_25] : memref<2x1x128xf32, #tpu.memory_space<vmem>>, vector<1x1x128xf32>
    %86 = vector.shape_cast %85 : vector<1x1x128xf32> to vector<1x128xf32>
    %87 = vector.broadcast %86 : vector<1x128xf32> to vector<128x128xf32>
    %88 = arith.mulf %84, %87 : vector<128x128xf32>
    %c1_26 = arith.constant 1 : index
    %c0_27 = arith.constant 0 : index
    %c0_28 = arith.constant 0 : index
    %89 = vector.load %arg7[%c1_26, %c0_27, %c0_28] : memref<2x1x128xf32, #tpu.memory_space<vmem>>, vector<1x1x128xf32>
    %90 = vector.shape_cast %89 : vector<1x1x128xf32> to vector<1x128xf32>
    %91 = vector.broadcast %90 : vector<1x128xf32> to vector<128x128xf32>
    %92 = arith.addf %88, %91 : vector<128x128xf32>
    %cst_29 = arith.constant 0.000000e+00 : f32
    %93 = vector.broadcast %cst_29 : f32 to vector<128x128xf32>
    %94 = arith.maximumf %92, %93 : vector<128x128xf32>
    %95 = arith.addf %57, %94 : vector<128x128xf32>
    %96 = arith.truncf %95 : vector<128x128xf32> to vector<128x128xbf16>
    %97 = vector.shape_cast %96 : vector<128x128xbf16> to vector<16x8x128xbf16>
    %98 = vector.extract_strided_slice %97 {offsets = [0, 0, 0], sizes = [16, 1, 128], strides = [1, 1, 1]} : vector<16x8x128xbf16> to vector<16x1x128xbf16>
    %99 = vector.shape_cast %98 : vector<16x1x128xbf16> to vector<16x128xbf16>
    %100 = vector.extract_strided_slice %97 {offsets = [0, 1, 0], sizes = [16, 1, 128], strides = [1, 1, 1]} : vector<16x8x128xbf16> to vector<16x1x128xbf16>
    %101 = vector.shape_cast %100 : vector<16x1x128xbf16> to vector<16x128xbf16>
    %102 = vector.extract_strided_slice %97 {offsets = [0, 2, 0], sizes = [16, 1, 128], strides = [1, 1, 1]} : vector<16x8x128xbf16> to vector<16x1x128xbf16>
    %103 = vector.shape_cast %102 : vector<16x1x128xbf16> to vector<16x128xbf16>
    %104 = vector.extract_strided_slice %97 {offsets = [0, 3, 0], sizes = [16, 1, 128], strides = [1, 1, 1]} : vector<16x8x128xbf16> to vector<16x1x128xbf16>
    %105 = vector.shape_cast %104 : vector<16x1x128xbf16> to vector<16x128xbf16>
    %106 = vector.extract_strided_slice %97 {offsets = [0, 4, 0], sizes = [16, 1, 128], strides = [1, 1, 1]} : vector<16x8x128xbf16> to vector<16x1x128xbf16>
    %107 = vector.shape_cast %106 : vector<16x1x128xbf16> to vector<16x128xbf16>
    %108 = vector.extract_strided_slice %97 {offsets = [0, 5, 0], sizes = [16, 1, 128], strides = [1, 1, 1]} : vector<16x8x128xbf16> to vector<16x1x128xbf16>
    %109 = vector.shape_cast %108 : vector<16x1x128xbf16> to vector<16x128xbf16>
    %110 = vector.extract_strided_slice %97 {offsets = [0, 6, 0], sizes = [16, 1, 128], strides = [1, 1, 1]} : vector<16x8x128xbf16> to vector<16x1x128xbf16>
    %111 = vector.shape_cast %110 : vector<16x1x128xbf16> to vector<16x128xbf16>
    %112 = vector.extract_strided_slice %97 {offsets = [0, 7, 0], sizes = [16, 1, 128], strides = [1, 1, 1]} : vector<16x8x128xbf16> to vector<16x1x128xbf16>
    %113 = vector.shape_cast %112 : vector<16x1x128xbf16> to vector<16x128xbf16>
    %114 = tpu.concatenate %99, %101, %103, %105, %107, %109, %111, %113 in 1 : vector<16x128xbf16>, vector<16x128xbf16>, vector<16x128xbf16>, vector<16x128xbf16>, vector<16x128xbf16>, vector<16x128xbf16>, vector<16x128xbf16>, vector<16x128xbf16> -> vector<16x1024xbf16>
    %c0_30 = arith.constant 0 : index
    %c0_31 = arith.constant 0 : index
    %115 = vector.load %arg8[%c0_30, %c0_31] : memref<1024x128xbf16, #tpu.memory_space<vmem>>, vector<1024x128xbf16>
    %cst_32 = arith.constant dense<0.000000e+00> : vector<16x128xf32>
    %116 = tpu.matmul %114, %115, %cst_32 {dimension_numbers = #tpu.dot_dimension_numbers<[1], [0], [0], [1], [0, 0, 1, 1], [], []>} : vector<16x1024xbf16>, vector<1024x128xbf16>, vector<16x128xf32> -> vector<16x128xf32>
    %c0_33 = arith.constant 0 : index
    %c0_34 = arith.constant 0 : index
    %117 = vector.load %arg9[%c0_33, %c0_34] : memref<1x128xf32, #tpu.memory_space<vmem>>, vector<1x128xf32>
    %118 = vector.broadcast %117 : vector<1x128xf32> to vector<16x128xf32>
    %119 = arith.addf %116, %118 : vector<16x128xf32>
    %cst_35 = arith.constant 0.000000e+00 : f32
    %120 = vector.broadcast %cst_35 : f32 to vector<16x128xf32>
    %121 = arith.maximumf %119, %120 : vector<16x128xf32>
    %122 = arith.truncf %121 : vector<16x128xf32> to vector<16x128xbf16>
    %c0_36 = arith.constant 0 : index
    %c0_37 = arith.constant 0 : index
    %123 = vector.load %arg10[%c0_36, %c0_37] : memref<128x8xbf16, #tpu.memory_space<vmem>>, vector<128x8xbf16>
    %cst_38 = arith.constant dense<0.000000e+00> : vector<16x8xf32>
    %124 = tpu.matmul %122, %123, %cst_38 {dimension_numbers = #tpu.dot_dimension_numbers<[1], [0], [0], [1], [0, 0, 1, 1], [], []>} : vector<16x128xbf16>, vector<128x8xbf16>, vector<16x8xf32> -> vector<16x8xf32>
    %c0_39 = arith.constant 0 : index
    %c0_40 = arith.constant 0 : index
    %125 = vector.load %arg11[%c0_39, %c0_40] : memref<1x8xf32, #tpu.memory_space<vmem>>, vector<1x8xf32>
    %126 = vector.broadcast %125 : vector<1x8xf32> to vector<16x8xf32>
    %127 = arith.addf %124, %126 : vector<16x8xf32>
    %128 = tpu.iota {dimensions = array<i32: 1>} : vector<16x8xi32>
    %c4_i32 = arith.constant 4 : i32
    %129 = vector.broadcast %c4_i32 : i32 to vector<16x8xi32>
    %130 = arith.cmpi slt, %128, %129 : vector<16x8xi32>
    %131 = arith.negf %127 : vector<16x8xf32>
    %132 = math.exp %131 : vector<16x8xf32>
    %cst_41 = arith.constant 1.000000e+00 : f32
    %133 = vector.broadcast %cst_41 : f32 to vector<16x8xf32>
    %134 = arith.addf %133, %132 : vector<16x8xf32>
    %135 = arith.divf %133, %134 : vector<16x8xf32>
    %136 = arith.select %130, %135, %127 : vector<16x8xi1>, vector<16x8xf32>
    %c0_42 = arith.constant 0 : index
    %c0_43 = arith.constant 0 : index
    %137 = vector.load %arg12[%c0_42, %c0_43] : memref<16x8xf32, #tpu.memory_space<vmem>>, vector<16x8xf32>
    tpu.vector_store %arg12[%c0_42, %c0_43], %136 {strides = array<i32>} : memref<16x8xf32, #tpu.memory_space<vmem>>, vector<16x8xf32>,
    return
  }
  func.func @transform_0(%arg0: i32) -> (i32, i32, i32) {
    %c0_i32 = arith.constant 0 : i32
    %c0_i32_0 = arith.constant 0 : i32
    %c0_i32_1 = arith.constant 0 : i32
    return %arg0, %c0_i32, %c0_i32_0 : i32, i32, i32
  }
  func.func @transform_1(%arg0: i32) -> (i32, i32) {
    %c0_i32 = arith.constant 0 : i32
    %c0_i32_0 = arith.constant 0 : i32
    %c0_i32_1 = arith.constant 0 : i32
    return %c0_i32, %c0_i32_0 : i32, i32
  }
  func.func @transform_2(%arg0: i32) -> (i32, i32) {
    %c0_i32 = arith.constant 0 : i32
    %c0_i32_0 = arith.constant 0 : i32
    %c0_i32_1 = arith.constant 0 : i32
    return %c0_i32, %c0_i32_0 : i32, i32
  }
  func.func @transform_3(%arg0: i32) -> (i32, i32) {
    %c0_i32 = arith.constant 0 : i32
    %c0_i32_0 = arith.constant 0 : i32
    %c0_i32_1 = arith.constant 0 : i32
    return %c0_i32, %c0_i32_0 : i32, i32
  }
  func.func @transform_4(%arg0: i32) -> (i32, i32, i32) {
    %c0_i32 = arith.constant 0 : i32
    %c0_i32_0 = arith.constant 0 : i32
    %c0_i32_1 = arith.constant 0 : i32
    %c0_i32_2 = arith.constant 0 : i32
    return %c0_i32, %c0_i32_0, %c0_i32_1 : i32, i32, i32
  }
  func.func @transform_5(%arg0: i32) -> (i32, i32, i32) {
    %c0_i32 = arith.constant 0 : i32
    %c0_i32_0 = arith.constant 0 : i32
    %c0_i32_1 = arith.constant 0 : i32
    %c0_i32_2 = arith.constant 0 : i32
    return %c0_i32, %c0_i32_0, %c0_i32_1 : i32, i32, i32
  }
  func.func @transform_6(%arg0: i32) -> (i32, i32, i32) {
    %c0_i32 = arith.constant 0 : i32
    %c0_i32_0 = arith.constant 0 : i32
    %c0_i32_1 = arith.constant 0 : i32
    %c0_i32_2 = arith.constant 0 : i32
    return %c0_i32, %c0_i32_0, %c0_i32_1 : i32, i32, i32
  }
  func.func @transform_7(%arg0: i32) -> (i32, i32) {
    %c0_i32 = arith.constant 0 : i32
    %c0_i32_0 = arith.constant 0 : i32
    %c0_i32_1 = arith.constant 0 : i32
    return %c0_i32, %c0_i32_0 : i32, i32
  }
  func.func @transform_8(%arg0: i32) -> (i32, i32) {
    %c0_i32 = arith.constant 0 : i32
    %c0_i32_0 = arith.constant 0 : i32
    %c0_i32_1 = arith.constant 0 : i32
    return %c0_i32, %c0_i32_0 : i32, i32
  }
  func.func @transform_9(%arg0: i32) -> (i32, i32) {
    %c0_i32 = arith.constant 0 : i32
    %c0_i32_0 = arith.constant 0 : i32
    %c0_i32_1 = arith.constant 0 : i32
    return %c0_i32, %c0_i32_0 : i32, i32
  }
  func.func @transform_10(%arg0: i32) -> (i32, i32) {
    %c0_i32 = arith.constant 0 : i32
    %c0_i32_0 = arith.constant 0 : i32
    %c0_i32_1 = arith.constant 0 : i32
    return %c0_i32, %c0_i32_0 : i32, i32
  }
  func.func @transform_11(%arg0: i32) -> (i32, i32) {
    %c0_i32 = arith.constant 0 : i32
    %c0_i32_0 = arith.constant 0 : i32
    return %arg0, %c0_i32 : i32, i32
  }
}

</mosaic_0001>

<llo_original>
// kernel: target_pose_forward.1
$region0: #{target_pose_forward.1}
  #allocation0 [shape = 'u32[]', space=smem, size = 0x4, offset = 0x4, fixed_abs, tag = 'smem constant byte address 0x4 - core index']
  #allocation1 [shape = 'u32[144,128]{1,0:T(1,128)}', space=vmem, size = 0x12000, scoped, tag = 'internal scratch']
  %s0 = inlined_call_operand.hbm [shape: f32[16,8,16], index: 0, kind: input, shape index: {}]
  %s1 = inlined_call_operand.vmem [shape: bf16[48,128], index: 1, kind: input, shape index: {}]
  %s2 = inlined_call_operand.vmem [shape: f32[1,128], index: 2, kind: input, shape index: {}]
  %s3 = inlined_call_operand.vmem [shape: f32[1,128], index: 3, kind: input, shape index: {}]
  %s4 = inlined_call_operand.hbm [shape: bf16[2,640,128], index: 4, kind: input, shape index: {}]
  %s5 = inlined_call_operand.vmem [shape: f32[2,1,128], index: 5, kind: input, shape index: {}]
  %s6 = inlined_call_operand.vmem [shape: f32[2,1,128], index: 6, kind: input, shape index: {}]
  %s7 = inlined_call_operand.hbm [shape: bf16[1024,128], index: 7, kind: input, shape index: {}]
  %s8 = inlined_call_operand.vmem [shape: f32[1,128], index: 8, kind: input, shape index: {}]
  %s9 = inlined_call_operand.vmem [shape: bf16[128,8], index: 9, kind: input, shape index: {}]
  %s10 = inlined_call_operand.vmem [shape: f32[1,8], index: 10, kind: input, shape index: {}]
  %s11 = inlined_call_operand.vmem [shape: f32[16,8], index: 11, kind: output, shape index: {}]
  %s12 = sld [smem:[#allocation0]]
  $region66: #{target_pose_forward.1} parent=0
    _
  %s14 = ssub.s32 1, %s12
  %s15 = scalar_select 0, %s14, %s12
  $region1: #{target_pose_forward.1} parent=0
    #allocation2 [shape = 'u8[65536]{0}', space=vmem, size = 0x10000, scoped, tag = 'input window, operand 0, single buffered']
    #allocation3 [shape = 's32[1]{0}', space=sflag, size = 0x4, scoped, tag = 'scoped memory for target_pose_forward.1']
    #allocation4 [shape = 'u8[327680]{0}', space=vmem, size = 0x50000, scoped, tag = 'input window, operand 4, single buffered']
    #allocation5 [shape = 's32[1]{0}', space=sflag, size = 0x4, scoped, tag = 'scoped memory for target_pose_forward.1']
    #allocation6 [shape = 'u8[262144]{0}', space=vmem, size = 0x40000, scoped, tag = 'input window, operand 7, single buffered']
    %16 = vsyncpa [#allocation3], 0
    %17 = vsyncpa [#allocation5], 0
    // Predicated region
    $region2: #{target_pose_forward.1} parent=1 // pred_check
      _
    $region3: #{target_pose_forward.1} parent=1 // pred_check_branch
      %19 = sbr.rel (0) target = $region5
    $region4: #{target_pose_forward.1} parent=1 // pred_region
      %s21 = ssub.s32 2048, 2048
      %22 = vsyncadd [#allocation3], %s21
      %s23 = sshll.u32 [#allocation2], 4
      %s24 = int_to_ptr.vmem [resolvable:$true] %s23
      %29 = dma.hbm_to_vmem [thread:$0]  %s0, 2048, %s24, [#allocation3], 128, 128, 8
    $region5: #{target_pose_forward.1} parent=1 // pred_fallthru
      _
    // Predicated region
    $region6: #{target_pose_forward.1} parent=1 // pred_check
      _
    $region7: #{target_pose_forward.1} parent=1 // pred_check_branch
      %31 = sbr.rel (0) target = $region9
    $region8: #{target_pose_forward.1} parent=1 // pred_region
      _
    $region9: #{target_pose_forward.1} parent=1 // pred_fallthru
      _
    // Predicated region
    $region10: #{target_pose_forward.1} parent=1 // pred_check
      _
    $region11: #{target_pose_forward.1} parent=1 // pred_check_branch
      %33 = sbr.rel (0) target = $region13
    $region12: #{target_pose_forward.1} parent=1 // pred_region
      _
    $region13: #{target_pose_forward.1} parent=1 // pred_fallthru
      _
    // Predicated region
    $region14: #{target_pose_forward.1} parent=1 // pred_check
      _
    $region15: #{target_pose_forward.1} parent=1 // pred_check_branch
      %35 = sbr.rel (0) target = $region17
    $region16: #{target_pose_forward.1} parent=1 // pred_region
      _
    $region17: #{target_pose_forward.1} parent=1 // pred_fallthru
      _
    // Predicated region
    $region18: #{target_pose_forward.1} parent=1 // pred_check
      _
    $region19: #{target_pose_forward.1} parent=1 // pred_check_branch
      %37 = sbr.rel (0) target = $region21
    $region20: #{target_pose_forward.1} parent=1 // pred_region
      %s39 = ssub.s32 10240, 10240
      %40 = vsyncadd [#allocation5], %s39
      %s41 = sshll.u32 [#allocation4], 4
      %s42 = int_to_ptr.vmem [resolvable:$true] %s41
      %47 = dma.hbm_to_vmem [thread:$0]  %s4, 10240, %s42, [#allocation5], 64, 64, 4
    $region21: #{target_pose_forward.1} parent=1 // pred_fallthru
      _
    // Predicated region
    $region22: #{target_pose_forward.1} parent=1 // pred_check
      _
    $region23: #{target_pose_forward.1} parent=1 // pred_check_branch
      %49 = sbr.rel (0) target = $region25
    $region24: #{target_pose_forward.1} parent=1 // pred_region
      _
    $region25: #{target_pose_forward.1} parent=1 // pred_fallthru
      _
    // Predicated region
    $region26: #{target_pose_forward.1} parent=1 // pred_check
      _
    $region27: #{target_pose_forward.1} parent=1 // pred_check_branch
      %51 = sbr.rel (0) target = $region29
    $region28: #{target_pose_forward.1} parent=1 // pred_region
      _
    $region29: #{target_pose_forward.1} parent=1 // pred_fallthru
      _
    // Predicated region
    $region30: #{target_pose_forward.1} parent=1 // pred_check
      _
    $region31: #{target_pose_forward.1} parent=1 // pred_check_branch
      %53 = sbr.rel (0) target = $region33
    $region32: #{target_pose_forward.1} parent=1 // pred_region
      %s55 = ssub.s32 8192, 8192
      %56 = vsyncadd [#allocation5], %s55
      %s57 = sshll.u32 [#allocation6], 4
      %s58 = int_to_ptr.vmem [resolvable:$true] %s57
      %63 = dma.hbm_to_vmem [thread:$0]  %s7, 8192, %s58, [#allocation5], 64, 64, 4
    $region33: #{target_pose_forward.1} parent=1 // pred_fallthru
      _
    // Predicated region
    $region34: #{target_pose_forward.1} parent=1 // pred_check
      _
    $region35: #{target_pose_forward.1} parent=1 // pred_check_branch
      %65 = sbr.rel (0) target = $region37
    $region36: #{target_pose_forward.1} parent=1 // pred_region
      _
    $region37: #{target_pose_forward.1} parent=1 // pred_fallthru
      _
    // Predicated region
    $region38: #{target_pose_forward.1} parent=1 // pred_check
      _
    $region39: #{target_pose_forward.1} parent=1 // pred_check_branch
      %67 = sbr.rel (0) target = $region41
    $region40: #{target_pose_forward.1} parent=1 // pred_region
      _
    $region41: #{target_pose_forward.1} parent=1 // pred_fallthru
      _
    // Predicated region
    $region42: #{target_pose_forward.1} parent=1 // pred_check
      _
    $region43: #{target_pose_forward.1} parent=1 // pred_check_branch
      %69 = sbr.rel (0) target = $region45
    $region44: #{target_pose_forward.1} parent=1 // pred_region
      _
    $region45: #{target_pose_forward.1} parent=1 // pred_fallthru
      _
    // Predicated region
    $region46: #{target_pose_forward.1} parent=1 // pred_check
      _
    $region47: #{target_pose_forward.1} parent=1 // pred_check_branch
      %71 = sbr.rel (0) target = $region49
    $region48: #{target_pose_forward.1} parent=1 // pred_region
      %72 = dma.done [#allocation3], 2048
    $region49: #{target_pose_forward.1} parent=1 // pred_fallthru
      _
    // Predicated region
    $region50: #{target_pose_forward.1} parent=1 // pred_check
      _
    $region51: #{target_pose_forward.1} parent=1 // pred_check_branch
      %74 = sbr.rel (0) target = $region53
    $region52: #{target_pose_forward.1} parent=1 // pred_region
      %75 = dma.done [#allocation5], 10240
    $region53: #{target_pose_forward.1} parent=1 // pred_fallthru
      _
    // Predicated region
    $region54: #{target_pose_forward.1} parent=1 // pred_check
      _
    $region55: #{target_pose_forward.1} parent=1 // pred_check_branch
      %77 = sbr.rel (0) target = $region57
    $region56: #{target_pose_forward.1} parent=1 // pred_region
      %78 = dma.done [#allocation5], 8192
    $region57: #{target_pose_forward.1} parent=1 // pred_fallthru
      _
    %v80 = vld [vmem:[#allocation2] sm:$0xff]
    %v81 = vld [vmem:[#allocation2 + $0x8] sm:$0xff]
    %v82 = vld [vmem:[#allocation2 + $0x10] sm:$0xff]
    %v83 = vld [vmem:[#allocation2 + $0x18] sm:$0xff]
    %v84 = vld [vmem:[#allocation2 + $0x20] sm:$0xff]
    %v85 = vld [vmem:[#allocation2 + $0x28] sm:$0xff]
    %v86 = vld [vmem:[#allocation2 + $0x30] sm:$0xff]
    %v87 = vld [vmem:[#allocation2 + $0x38] sm:$0xff]
    %v88 = vld [vmem:[#allocation2 + $0x40] sm:$0xff]
    %v89 = vld [vmem:[#allocation2 + $0x48] sm:$0xff]
    %v90 = vld [vmem:[#allocation2 + $0x50] sm:$0xff]
    %v91 = vld [vmem:[#allocation2 + $0x58] sm:$0xff]
    %v92 = vld [vmem:[#allocation2 + $0x60] sm:$0xff]
    %v93 = vld [vmem:[#allocation2 + $0x68] sm:$0xff]
    %v94 = vld [vmem:[#allocation2 + $0x70] sm:$0xff]
    %v95 = vld [vmem:[#allocation2 + $0x78] sm:$0xff]
    %v96 = vpack.c.bf16 %v80, %v80
    %v97 = vpack.c.bf16 %v81, %v81
    %v98 = vpack.c.bf16 %v82, %v82
    %v99 = vpack.c.bf16 %v83, %v83
    %v100 = vpack.c.bf16 %v84, %v84
    %v101 = vpack.c.bf16 %v85, %v85
    %v102 = vpack.c.bf16 %v86, %v86
    %v103 = vpack.c.bf16 %v87, %v87
    %v104 = vpack.c.bf16 %v88, %v88
    %v105 = vpack.c.bf16 %v89, %v89
    %v106 = vpack.c.bf16 %v90, %v90
    %v107 = vpack.c.bf16 %v91, %v91
    %v108 = vpack.c.bf16 %v92, %v92
    %v109 = vpack.c.bf16 %v93, %v93
    %v110 = vpack.c.bf16 %v94, %v94
    %v111 = vpack.c.bf16 %v95, %v95
    %v113 = vshrl.u32 %v96, 16
    %v115 = vrot.slane %v113, 7
    %v116 = vshll.u32 %v96, 16
    %v118 = vor.u32 %v115, %v116
    %v120 = vshrl.u32 %v97, 16
    %v122 = vrot.slane %v120, 7
    %v123 = vshll.u32 %v97, 16
    %v125 = vor.u32 %v122, %v123
    %v127 = vshrl.u32 %v98, 16
    %v129 = vrot.slane %v127, 7
    %v130 = vshll.u32 %v98, 16
    %v132 = vor.u32 %v129, %v130
    %v134 = vshrl.u32 %v99, 16
    %v136 = vrot.slane %v134, 7
    %v137 = vshll.u32 %v99, 16
    %v139 = vor.u32 %v136, %v137
    %v141 = vshrl.u32 %v100, 16
    %v143 = vrot.slane %v141, 7
    %v144 = vshll.u32 %v100, 16
    %v146 = vor.u32 %v143, %v144
    %v148 = vshrl.u32 %v101, 16
    %v150 = vrot.slane %v148, 7
    %v151 = vshll.u32 %v101, 16
    %v153 = vor.u32 %v150, %v151
    %v155 = vshrl.u32 %v102, 16
    %v157 = vrot.slane %v155, 7
    %v158 = vshll.u32 %v102, 16
    %v160 = vor.u32 %v157, %v158
    %v162 = vshrl.u32 %v103, 16
    %v164 = vrot.slane %v162, 7
    %v165 = vshll.u32 %v103, 16
    %v167 = vor.u32 %v164, %v165
    %v169 = vshrl.u32 %v104, 16
    %v171 = vrot.slane %v169, 7
    %v172 = vshll.u32 %v104, 16
    %v174 = vor.u32 %v171, %v172
    %v176 = vshrl.u32 %v105, 16
    %v178 = vrot.slane %v176, 7
    %v179 = vshll.u32 %v105, 16
    %v181 = vor.u32 %v178, %v179
    %v183 = vshrl.u32 %v106, 16
    %v185 = vrot.slane %v183, 7
    %v186 = vshll.u32 %v106, 16
    %v188 = vor.u32 %v185, %v186
    %v190 = vshrl.u32 %v107, 16
    %v192 = vrot.slane %v190, 7
    %v193 = vshll.u32 %v107, 16
    %v195 = vor.u32 %v192, %v193
    %v197 = vshrl.u32 %v108, 16
    %v199 = vrot.slane %v197, 7
    %v200 = vshll.u32 %v108, 16
    %v202 = vor.u32 %v199, %v200
    %v204 = vshrl.u32 %v109, 16
    %v206 = vrot.slane %v204, 7
    %v207 = vshll.u32 %v109, 16
    %v209 = vor.u32 %v206, %v207
    %v211 = vshrl.u32 %v110, 16
    %v213 = vrot.slane %v211, 7
    %v214 = vshll.u32 %v110, 16
    %v216 = vor.u32 %v213, %v214
    %v218 = vshrl.u32 %v111, 16
    %v220 = vrot.slane %v218, 7
    %v221 = vshll.u32 %v111, 16
    %v223 = vor.u32 %v220, %v221
    %vm240 = vcmask 1040384
    %vm241 = vsmask.f32 256
    %vm242 = vmand %vm240, %vm241
    %v243 = vsel %vm242, %v96, %v118
    %v244 = vsel %vm242, %v97, %v125
    %v245 = vsel %vm242, %v98, %v132
    %v246 = vsel %vm242, %v99, %v139
    %v247 = vsel %vm242, %v100, %v146
    %v248 = vsel %vm242, %v101, %v153
    %v249 = vsel %vm242, %v102, %v160
    %v250 = vsel %vm242, %v103, %v167
    %v251 = vsel %vm242, %v104, %v174
    %v252 = vsel %vm242, %v105, %v181
    %v253 = vsel %vm242, %v106, %v188
    %v254 = vsel %vm242, %v107, %v195
    %v255 = vsel %vm242, %v108, %v202
    %v256 = vsel %vm242, %v109, %v209
    %v257 = vsel %vm242, %v110, %v216
    %v258 = vsel %vm242, %v111, %v223
    %v259 = vrot.slane %v116, 1
    %v260 = vor.u32 %v113, %v259
    %v261 = vrot.slane %v123, 1
    %v262 = vor.u32 %v120, %v261
    %v263 = vrot.slane %v130, 1
    %v264 = vor.u32 %v127, %v263
    %v265 = vrot.slane %v137, 1
    %v266 = vor.u32 %v134, %v265
    %v267 = vrot.slane %v144, 1
    %v268 = vor.u32 %v141, %v267
    %v269 = vrot.slane %v151, 1
    %v270 = vor.u32 %v148, %v269
    %v271 = vrot.slane %v158, 1
    %v272 = vor.u32 %v155, %v271
    %v273 = vrot.slane %v165, 1
    %v274 = vor.u32 %v162, %v273
    %v275 = vrot.slane %v172, 1
    %v276 = vor.u32 %v169, %v275
    %v277 = vrot.slane %v179, 1
    %v278 = vor.u32 %v176, %v277
    %v279 = vrot.slane %v186, 1
    %v280 = vor.u32 %v183, %v279
    %v281 = vrot.slane %v193, 1
    %v282 = vor.u32 %v190, %v281
    %v283 = vrot.slane %v200, 1
    %v284 = vor.u32 %v197, %v283
    %v285 = vrot.slane %v207, 1
    %v286 = vor.u32 %v204, %v285
    %v287 = vrot.slane %v214, 1
    %v288 = vor.u32 %v211, %v287
    %v289 = vrot.slane %v221, 1
    %v290 = vor.u32 %v218, %v289
    %vm307 = vcmask 1043456
    %vm308 = vsmask.f32 3328
    %vm309 = vmand %vm307, %vm308
    %v310 = vsel %vm309, %v260, %v96
    %v311 = vsel %vm309, %v262, %v97
    %v312 = vsel %vm309, %v264, %v98
    %v313 = vsel %vm309, %v266, %v99
    %v314 = vsel %vm309, %v268, %v100
    %v315 = vsel %vm309, %v270, %v101
    %v316 = vsel %vm309, %v272, %v102
    %v317 = vsel %vm309, %v274, %v103
    %v318 = vsel %vm309, %v276, %v104
    %v319 = vsel %vm309, %v278, %v105
    %v320 = vsel %vm309, %v280, %v106
    %v321 = vsel %vm309, %v282, %v107
    %v322 = vsel %vm309, %v284, %v108
    %v323 = vsel %vm309, %v286, %v109
    %v324 = vsel %vm309, %v288, %v110
    %v325 = vsel %vm309, %v290, %v111
    %342 = vrot.lane.b32.xlu0 %v96, 16
    %v343 = vpop.permute.xlu0 %342
    %344 = vrot.lane.b32.xlu0 %v97, 16
    %v345 = vpop.permute.xlu0 %344
    %346 = vrot.lane.b32.xlu0 %v98, 16
    %v347 = vpop.permute.xlu0 %346
    %348 = vrot.lane.b32.xlu0 %v99, 16
    %v349 = vpop.permute.xlu0 %348
    %350 = vrot.lane.b32.xlu0 %v100, 16
    %v351 = vpop.permute.xlu0 %350
    %352 = vrot.lane.b32.xlu0 %v101, 16
    %v353 = vpop.permute.xlu0 %352
    %354 = vrot.lane.b32.xlu0 %v102, 16
    %v355 = vpop.permute.xlu0 %354
    %356 = vrot.lane.b32.xlu0 %v103, 16
    %v357 = vpop.permute.xlu0 %356
    %358 = vrot.lane.b32.xlu0 %v104, 16
    %v359 = vpop.permute.xlu0 %358
    %360 = vrot.lane.b32.xlu0 %v105, 16
    %v361 = vpop.permute.xlu0 %360
    %362 = vrot.lane.b32.xlu0 %v106, 16
    %v363 = vpop.permute.xlu0 %362
    %364 = vrot.lane.b32.xlu0 %v107, 16
    %v365 = vpop.permute.xlu0 %364
    %366 = vrot.lane.b32.xlu0 %v108, 16
    %v367 = vpop.permute.xlu0 %366
    %368 = vrot.lane.b32.xlu0 %v109, 16
    %v369 = vpop.permute.xlu0 %368
    %370 = vrot.lane.b32.xlu0 %v110, 16
    %v371 = vpop.permute.xlu0 %370
    %372 = vrot.lane.b32.xlu0 %v111, 16
    %v373 = vpop.permute.xlu0 %372
    %390 = vrot.lane.b32.xlu0 %v310, 32
    %v391 = vpop.permute.xlu0 %390
    %392 = vrot.lane.b32.xlu0 %v311, 32
    %v393 = vpop.permute.xlu0 %392
    %394 = vrot.lane.b32.xlu0 %v312, 32
    %v395 = vpop.permute.xlu0 %394
    %396 = vrot.lane.b32.xlu0 %v313, 32
    %v397 = vpop.permute.xlu0 %396
    %398 = vrot.lane.b32.xlu0 %v314, 32
    %v399 = vpop.permute.xlu0 %398
    %400 = vrot.lane.b32.xlu0 %v315, 32
    %v401 = vpop.permute.xlu0 %400
    %402 = vrot.lane.b32.xlu0 %v316, 32
    %v403 = vpop.permute.xlu0 %402
    %404 = vrot.lane.b32.xlu0 %v317, 32
    %v405 = vpop.permute.xlu0 %404
    %406 = vrot.lane.b32.xlu0 %v318, 32
    %v407 = vpop.permute.xlu0 %406
    %408 = vrot.lane.b32.xlu0 %v319, 32
    %v409 = vpop.permute.xlu0 %408
    %410 = vrot.lane.b32.xlu0 %v320, 32
    %v411 = vpop.permute.xlu0 %410
    %412 = vrot.lane.b32.xlu0 %v321, 32
    %v413 = vpop.permute.xlu0 %412
    %414 = vrot.lane.b32.xlu0 %v322, 32
    %v415 = vpop.permute.xlu0 %414
    %416 = vrot.lane.b32.xlu0 %v323, 32
    %v417 = vpop.permute.xlu0 %416
    %418 = vrot.lane.b32.xlu0 %v324, 32
    %v419 = vpop.permute.xlu0 %418
    %420 = vrot.lane.b32.xlu0 %v325, 32
    %v421 = vpop.permute.xlu0 %420
    %vm422 = vcmask 130048
    %v425 = vsel %vm422, %v243, %v343
    %v428 = vsel %vm422, %v244, %v345
    %v431 = vsel %vm422, %v245, %v347
    %v434 = vsel %vm422, %v246, %v349
    %v437 = vsel %vm422, %v247, %v351
    %v440 = vsel %vm422, %v248, %v353
    %v443 = vsel %vm422, %v249, %v355
    %v446 = vsel %vm422, %v250, %v357
    %v449 = vsel %vm422, %v251, %v359
    %v452 = vsel %vm422, %v252, %v361
    %v455 = vsel %vm422, %v253, %v363
    %v458 = vsel %vm422, %v254, %v365
    %v461 = vsel %vm422, %v255, %v367
    %v464 = vsel %vm422, %v256, %v369
    %v467 = vsel %vm422, %v257, %v371
    %v470 = vsel %vm422, %v258, %v373
    %vm471 = vcmask 261120
    %v473 = vsel %vm471, %v425, %v391
    %v475 = vsel %vm471, %v428, %v393
    %v477 = vsel %vm471, %v431, %v395
    %v479 = vsel %vm471, %v434, %v397
    %v481 = vsel %vm471, %v437, %v399
    %v483 = vsel %vm471, %v440, %v401
    %v485 = vsel %vm471, %v443, %v403
    %v487 = vsel %vm471, %v446, %v405
    %v489 = vsel %vm471, %v449, %v407
    %v491 = vsel %vm471, %v452, %v409
    %v493 = vsel %vm471, %v455, %v411
    %v495 = vsel %vm471, %v458, %v413
    %v497 = vsel %vm471, %v461, %v415
    %v499 = vsel %vm471, %v464, %v417
    %v501 = vsel %vm471, %v467, %v419
    %v503 = vsel %vm471, %v470, %v421
    %v504 = vld [vmem:[%s1] sm:$0xf]
    %v505 = vld [vmem:[%s1 + $0x4] sm:$0xf]
    %v506 = vld [vmem:[%s1 + $0x8] sm:$0xf]
    %v507 = vld [vmem:[%s1 + $0xc] sm:$0xf]
    %v508 = vld [vmem:[%s1 + $0x10] sm:$0xf]
    %v509 = vld [vmem:[%s1 + $0x14] sm:$0xf]
    %v526 = vunpack.c.l.b16 %v473
    %v527 = vunpack.c.l.b16 %v475
    %v528 = vunpack.c.l.b16 %v477
    %v529 = vunpack.c.l.b16 %v479
    %v530 = vunpack.c.l.b16 %v481
    %v531 = vunpack.c.l.b16 %v483
    %v532 = vunpack.c.l.b16 %v485
    %v533 = vunpack.c.l.b16 %v487
    %v534 = vunpack.c.l.b16 %v489
    %v535 = vunpack.c.l.b16 %v491
    %v536 = vunpack.c.l.b16 %v493
    %v537 = vunpack.c.l.b16 %v495
    %v538 = vunpack.c.l.b16 %v497
    %v539 = vunpack.c.l.b16 %v499
    %v540 = vunpack.c.l.b16 %v501
    %v541 = vunpack.c.l.b16 %v503
    %v542 = vpack.c.b16 %v527, %v526
    %v543 = vpack.c.b16 %v529, %v528
    %v544 = vpack.c.b16 %v531, %v530
    %v545 = vpack.c.b16 %v533, %v532
    %v546 = vpack.c.b16 %v535, %v534
    %v547 = vpack.c.b16 %v537, %v536
    %v548 = vpack.c.b16 %v539, %v538
    %v549 = vpack.c.b16 %v541, %v540
    %v556 = vunpack.c.l.b16 %v504
    %v557 = vunpack.c.l.b16 %v505
    %v558 = vunpack.c.l.b16 %v506
    %v559 = vunpack.c.l.b16 %v507
    %v560 = vunpack.c.l.b16 %v508
    %v561 = vunpack.c.l.b16 %v509
    %v562 = vpack.c.b16 %v557, %v556
    %v563 = vpack.c.b16 %v559, %v558
    %v564 = vpack.c.b16 %v561, %v560
    %vm568 = vcmask 392192
    %v570 = vsel %vm568, %v542, 0
    %v573 = vsel %vm568, %v543, 0
    %v576 = vsel %vm568, %v544, 0
    %v579 = vsel %vm568, %v545, 0
    %v582 = vsel %vm568, %v546, 0
    %v585 = vsel %vm568, %v547, 0
    %v588 = vsel %vm568, %v548, 0
    %v591 = vsel %vm568, %v549, 0
    %593 = vmatprep.subr.bf16.mxu0 0
    %594 = vmatpush1.bf16.msra.mxu0 %v562
    %595 = vmatprep.subr.bf16.mxu0 0
    %596 = vmatpush1.bf16.msra.mxu0 %v563
    %597 = vmatprep.subr.bf16.mxu0 0
    %598 = vmatpush1.bf16.msra.mxu0 %v564
    %599 = vmatprep.subr.bf16.mxu0 0
    %600 = vmatpush1.bf16.msra.mxu0 0
    %601 = vmatprep.subr.bf16.mxu0 0
    %602 = vmatpush1.bf16.msra.mxu0 0
    %603 = vmatprep.subr.bf16.mxu0 0
    %604 = vmatpush1.bf16.msra.mxu0 0
    %605 = vmatprep.subr.bf16.mxu0 0
    %606 = vmatpush1.bf16.msra.mxu0 0
    %607 = vmatprep.subr.bf16.mxu0 0
    %608 = vmatpush1.bf16.msra.mxu0 0
    %609 = vmatprep.subr.bf16.mxu0 0
    %610 = vmatpush1.bf16.msra.mxu0 0
    %611 = vmatprep.subr.bf16.mxu0 0
    %612 = vmatpush1.bf16.msra.mxu0 0
    %613 = vmatprep.subr.bf16.mxu0 0
    %614 = vmatpush1.bf16.msra.mxu0 0
    %615 = vmatprep.subr.bf16.mxu0 0
    %616 = vmatpush1.bf16.msra.mxu0 0
    %617 = vmatprep.subr.bf16.mxu0 0
    %618 = vmatpush1.bf16.msra.mxu0 0
    %619 = vmatprep.subr.bf16.mxu0 0
    %620 = vmatpush1.bf16.msra.mxu0 0
    %621 = vmatprep.subr.bf16.mxu0 0
    %622 = vmatpush1.bf16.msra.mxu0 0
    %623 = vmatprep.subr.bf16.mxu0 0
    %624 = vmatpush1.bf16.msra.mxu0 0
    %625 = vmatprep.mubr.bf16.mxu0 0
    %626 = vmatmul.mubr.bf16.gmra.mrb[0].mxu0 %v570
    %v627 = vpop.f32.mrb[0].mxu0
    %v628 = vadd.f32 0.0, %v627
    %v629 = vpop.f32.mrb[0].mxu0
    %v630 = vpop.f32.mrb[0].mxu0
    %v631 = vadd.f32 0.0, %v630
    %v632 = vpop.f32.mrb[0].mxu0
    %633 = vmatprep.mubr.bf16.mxu0 0
    %634 = vmatmul.mubr.bf16.gmra.mrb[0].mxu0 %v573
    %v635 = vpop.f32.mrb[0].mxu0
    %v636 = vadd.f32 0.0, %v635
    %v637 = vpop.f32.mrb[0].mxu0
    %v638 = vpop.f32.mrb[0].mxu0
    %v639 = vadd.f32 0.0, %v638
    %v640 = vpop.f32.mrb[0].mxu0
    %641 = vmatprep.mubr.bf16.mxu0 0
    %642 = vmatmul.mubr.bf16.gmra.mrb[0].mxu0 %v576
    %v643 = vpop.f32.mrb[0].mxu0
    %v644 = vadd.f32 0.0, %v643
    %v645 = vpop.f32.mrb[0].mxu0
    %v646 = vpop.f32.mrb[0].mxu0
    %v647 = vadd.f32 0.0, %v646
    %v648 = vpop.f32.mrb[0].mxu0
    %649 = vmatprep.mubr.bf16.mxu0 0
    %650 = vmatmul.mubr.bf16.gmra.mrb[0].mxu0 %v579
    %v651 = vpop.f32.mrb[0].mxu0
    %v652 = vadd.f32 0.0, %v651
    %v653 = vpop.f32.mrb[0].mxu0
    %v654 = vpop.f32.mrb[0].mxu0
    %v655 = vadd.f32 0.0, %v654
    %v656 = vpop.f32.mrb[0].mxu0
    %657 = vmatprep.mubr.bf16.mxu0 0
    %658 = vmatmul.mubr.bf16.gmra.mrb[0].mxu0 %v582
    %v659 = vpop.f32.mrb[0].mxu0
    %v660 = vadd.f32 0.0, %v659
    %v661 = vpop.f32.mrb[0].mxu0
    %v662 = vpop.f32.mrb[0].mxu0
    %v663 = vadd.f32 0.0, %v662
    %v664 = vpop.f32.mrb[0].mxu0
    %665 = vmatprep.mubr.bf16.mxu0 0
    %666 = vmatmul.mubr.bf16.gmra.mrb[0].mxu0 %v585
    %v667 = vpop.f32.mrb[0].mxu0
    %v668 = vadd.f32 0.0, %v667
    %v669 = vpop.f32.mrb[0].mxu0
    %v670 = vpop.f32.mrb[0].mxu0
    %v671 = vadd.f32 0.0, %v670
    %v672 = vpop.f32.mrb[0].mxu0
    %673 = vmatprep.mubr.bf16.mxu0 0
    %674 = vmatmul.mubr.bf16.gmra.mrb[0].mxu0 %v588
    %v675 = vpop.f32.mrb[0].mxu0
    %v676 = vadd.f32 0.0, %v675
    %v677 = vpop.f32.mrb[0].mxu0
    %v678 = vpop.f32.mrb[0].mxu0
    %v679 = vadd.f32 0.0, %v678
    %v680 = vpop.f32.mrb[0].mxu0
    %681 = vmatprep.mubr.bf16.mxu0 0
    %682 = vmatmul.mubr.bf16.gmra.mrb[0].mxu0 %v591
    %v683 = vpop.f32.mrb[0].mxu0
    %v684 = vadd.f32 0.0, %v683
    %v685 = vpop.f32.mrb[0].mxu0
    %v686 = vpop.f32.mrb[0].mxu0
    %v687 = vadd.f32 0.0, %v686
    %v688 = vpop.f32.mrb[0].mxu0
    %689 = vdwg.mxu0
    %v690 = vld [vmem:[%s2] sm:$0x1]
    %v692 = vlaneseq
    %v693 = vshrl.u32 %v692, 7
    %v694 = vsub.s32 0, %v693
    %v695 = vrot.slane %v690, %v694
    %v697 = vmul.f32 %v628, %v695
    %v698 = vmul.f32 %v631, %v695
    %v699 = vmul.f32 %v636, %v695
    %v700 = vmul.f32 %v639, %v695
    %v701 = vmul.f32 %v644, %v695
    %v702 = vmul.f32 %v647, %v695
    %v703 = vmul.f32 %v652, %v695
    %v704 = vmul.f32 %v655, %v695
    %v705 = vmul.f32 %v660, %v695
    %v706 = vmul.f32 %v663, %v695
    %v707 = vmul.f32 %v668, %v695
    %v708 = vmul.f32 %v671, %v695
    %v709 = vmul.f32 %v676, %v695
    %v710 = vmul.f32 %v679, %v695
    %v711 = vmul.f32 %v684, %v695
    %v712 = vmul.f32 %v687, %v695
    %v713 = vld [vmem:[%s3] sm:$0x1]
    %v715 = vlaneseq
    %v716 = vshrl.u32 %v715, 7
    %v717 = vsub.s32 0, %v716
    %v718 = vrot.slane %v713, %v717
    %v720 = vadd.f32 %v697, %v718
    %v721 = vadd.f32 %v698, %v718
    %v722 = vadd.f32 %v699, %v718
    %v723 = vadd.f32 %v700, %v718
    %v724 = vadd.f32 %v701, %v718
    %v725 = vadd.f32 %v702, %v718
    %v726 = vadd.f32 %v703, %v718
    %v727 = vadd.f32 %v704, %v718
    %v728 = vadd.f32 %v705, %v718
    %v729 = vadd.f32 %v706, %v718
    %v730 = vadd.f32 %v707, %v718
    %v731 = vadd.f32 %v708, %v718
    %v732 = vadd.f32 %v709, %v718
    %v733 = vadd.f32 %v710, %v718
    %v734 = vadd.f32 %v711, %v718
    %v735 = vadd.f32 %v712, %v718
    %v736 = vmax.f32 %v720, 0.0
    %v737 = vmax.f32 %v721, 0.0
    %v738 = vmax.f32 %v722, 0.0
    %v739 = vmax.f32 %v723, 0.0
    %v740 = vmax.f32 %v724, 0.0
    %v741 = vmax.f32 %v725, 0.0
    %v742 = vmax.f32 %v726, 0.0
    %v743 = vmax.f32 %v727, 0.0
    %v744 = vmax.f32 %v728, 0.0
    %v745 = vmax.f32 %v729, 0.0
    %v746 = vmax.f32 %v730, 0.0
    %v747 = vmax.f32 %v731, 0.0
    %v748 = vmax.f32 %v732, 0.0
    %v749 = vmax.f32 %v733, 0.0
    %v750 = vmax.f32 %v734, 0.0
    %v751 = vmax.f32 %v735, 0.0
    %v752 = vpack.c.bf16 %v737, %v736
    %v753 = vpack.c.bf16 %v739, %v738
    %v754 = vpack.c.bf16 %v741, %v740
    %v755 = vpack.c.bf16 %v743, %v742
    %v756 = vpack.c.bf16 %v745, %v744
    %v757 = vpack.c.bf16 %v747, %v746
    %v758 = vpack.c.bf16 %v749, %v748
    %v759 = vpack.c.bf16 %v751, %v750
    %v768 = vunpack.c.l.b16 %v752
    %v769 = vunpack.c.h.b16 %v752
    %v770 = vunpack.c.l.b16 %v753
    %v771 = vunpack.c.h.b16 %v753
    %v772 = vunpack.c.l.b16 %v754
    %v773 = vunpack.c.h.b16 %v754
    %v774 = vunpack.c.l.b16 %v755
    %v775 = vunpack.c.h.b16 %v755
    %v776 = vunpack.c.l.b16 %v756
    %v777 = vunpack.c.h.b16 %v756
    %v778 = vunpack.c.l.b16 %v757
    %v779 = vunpack.c.h.b16 %v757
    %v780 = vunpack.c.l.b16 %v758
    %v781 = vunpack.c.h.b16 %v758
    %v782 = vunpack.c.l.b16 %v759
    %v783 = vunpack.c.h.b16 %v759
    %v784 = vpack.c.b16 %v768, %v768
    %v785 = vpack.c.b16 %v769, %v769
    %v786 = vpack.c.b16 %v770, %v770
    %v787 = vpack.c.b16 %v771, %v771
    %v788 = vpack.c.b16 %v772, %v772
    %v789 = vpack.c.b16 %v773, %v773
    %v790 = vpack.c.b16 %v774, %v774
    %v791 = vpack.c.b16 %v775, %v775
    %v792 = vpack.c.b16 %v776, %v776
    %v793 = vpack.c.b16 %v777, %v777
    %v794 = vpack.c.b16 %v778, %v778
    %v795 = vpack.c.b16 %v779, %v779
    %v796 = vpack.c.b16 %v780, %v780
    %v797 = vpack.c.b16 %v781, %v781
    %v798 = vpack.c.b16 %v782, %v782
    %v799 = vpack.c.b16 %v783, %v783
    %v801 = vpack.i.b16 %v784, %v784
    %v803 = vlaneseq
    %v804 = vshrl.u32 %v803, 7
    %v805 = vsub.s32 0, %v804
    %v806 = vrot.slane %v801, %v805
    %v808 = vpack.i.b16 %v785, %v785
    %v810 = vlaneseq
    %v811 = vshrl.u32 %v810, 7
    %v812 = vsub.s32 0, %v811
    %v813 = vrot.slane %v808, %v812
    %v815 = vpack.i.b16 %v786, %v786
    %v817 = vlaneseq
    %v818 = vshrl.u32 %v817, 7
    %v819 = vsub.s32 0, %v818
    %v820 = vrot.slane %v815, %v819
    %v822 = vpack.i.b16 %v787, %v787
    %v824 = vlaneseq
    %v825 = vshrl.u32 %v824, 7
    %v826 = vsub.s32 0, %v825
    %v827 = vrot.slane %v822, %v826
    %v829 = vpack.i.b16 %v788, %v788
    %v831 = vlaneseq
    %v832 = vshrl.u32 %v831, 7
    %v833 = vsub.s32 0, %v832
    %v834 = vrot.slane %v829, %v833
    %v836 = vpack.i.b16 %v789, %v789
    %v838 = vlaneseq
    %v839 = vshrl.u32 %v838, 7
    %v840 = vsub.s32 0, %v839
    %v841 = vrot.slane %v836, %v840
    %v843 = vpack.i.b16 %v790, %v790
    %v845 = vlaneseq
    %v846 = vshrl.u32 %v845, 7
    %v847 = vsub.s32 0, %v846
    %v848 = vrot.slane %v843, %v847
    %v850 = vpack.i.b16 %v791, %v791
    %v852 = vlaneseq
    %v853 = vshrl.u32 %v852, 7
    %v854 = vsub.s32 0, %v853
    %v855 = vrot.slane %v850, %v854
    %v857 = vpack.i.b16 %v792, %v792
    %v859 = vlaneseq
    %v860 = vshrl.u32 %v859, 7
    %v861 = vsub.s32 0, %v860
    %v862 = vrot.slane %v857, %v861
    %v864 = vpack.i.b16 %v793, %v793
    %v866 = vlaneseq
    %v867 = vshrl.u32 %v866, 7
    %v868 = vsub.s32 0, %v867
    %v869 = vrot.slane %v864, %v868
    %v871 = vpack.i.b16 %v794, %v794
    %v873 = vlaneseq
    %v874 = vshrl.u32 %v873, 7
    %v875 = vsub.s32 0, %v874
    %v876 = vrot.slane %v871, %v875
    %v878 = vpack.i.b16 %v795, %v795
    %v880 = vlaneseq
    %v881 = vshrl.u32 %v880, 7
    %v882 = vsub.s32 0, %v881
    %v883 = vrot.slane %v878, %v882
    %v885 = vpack.i.b16 %v796, %v796
    %v887 = vlaneseq
    %v888 = vshrl.u32 %v887, 7
    %v889 = vsub.s32 0, %v888
    %v890 = vrot.slane %v885, %v889
    %v892 = vpack.i.b16 %v797, %v797
    %v894 = vlaneseq
    %v895 = vshrl.u32 %v894, 7
    %v896 = vsub.s32 0, %v895
    %v897 = vrot.slane %v892, %v896
    %v899 = vpack.i.b16 %v798, %v798
    %v901 = vlaneseq
    %v902 = vshrl.u32 %v901, 7
    %v903 = vsub.s32 0, %v902
    %v904 = vrot.slane %v899, %v903
    %v906 = vpack.i.b16 %v799, %v799
    %v908 = vlaneseq
    %v909 = vshrl.u32 %v908, 7
    %v910 = vsub.s32 0, %v909
    %v911 = vrot.slane %v906, %v910
    %v912 = vrot.slane %v784, 6
    %v913 = vrot.slane %v785, 6
    %v914 = vrot.slane %v786, 6
    %v915 = vrot.slane %v787, 6
    %v916 = vrot.slane %v788, 6
    %v917 = vrot.slane %v789, 6
    %v918 = vrot.slane %v790, 6
    %v919 = vrot.slane %v791, 6
    %v920 = vrot.slane %v792, 6
    %v921 = vrot.slane %v793, 6
    %v922 = vrot.slane %v794, 6
    %v923 = vrot.slane %v795, 6
    %v924 = vrot.slane %v796, 6
    %v925 = vrot.slane %v797, 6
    %v926 = vrot.slane %v798, 6
    %v927 = vrot.slane %v799, 6
    %vm928 = vcmask 1041408
    %v931 = vsel %vm928, %v806, %v912
    %v934 = vsel %vm928, %v813, %v913
    %v937 = vsel %vm928, %v820, %v914
    %v940 = vsel %vm928, %v827, %v915
    %v943 = vsel %vm928, %v834, %v916
    %v946 = vsel %vm928, %v841, %v917
    %v949 = vsel %vm928, %v848, %v918
    %v952 = vsel %vm928, %v855, %v919
    %v955 = vsel %vm928, %v862, %v920
    %v958 = vsel %vm928, %v869, %v921
    %v961 = vsel %vm928, %v876, %v922
    %v964 = vsel %vm928, %v883, %v923
    %v967 = vsel %vm928, %v890, %v924
    %v970 = vsel %vm928, %v897, %v925
    %v973 = vsel %vm928, %v904, %v926
    %v976 = vsel %vm928, %v911, %v927
    %v977 = vrot.slane %v784, 7
    %v978 = vrot.slane %v785, 7
    %v979 = vrot.slane %v786, 7
    %v980 = vrot.slane %v787, 7
    %v981 = vrot.slane %v788, 7
    %v982 = vrot.slane %v789, 7
    %v983 = vrot.slane %v790, 7
    %v984 = vrot.slane %v791, 7
    %v985 = vrot.slane %v792, 7
    %v986 = vrot.slane %v793, 7
    %v987 = vrot.slane %v794, 7
    %v988 = vrot.slane %v795, 7
    %v989 = vrot.slane %v796, 7
    %v990 = vrot.slane %v797, 7
    %v991 = vrot.slane %v798, 7
    %v992 = vrot.slane %v799, 7
    %vm993 = vcmask 1040384
    %v995 = vsel %vm993, %v806, %v977
    %v997 = vsel %vm993, %v813, %v978
    %v999 = vsel %vm993, %v820, %v979
    %v1001 = vsel %vm993, %v827, %v980
    %v1003 = vsel %vm993, %v834, %v981
    %v1005 = vsel %vm993, %v841, %v982
    %v1007 = vsel %vm993, %v848, %v983
    %v1009 = vsel %vm993, %v855, %v984
    %v1011 = vsel %vm993, %v862, %v985
    %v1013 = vsel %vm993, %v869, %v986
    %v1015 = vsel %vm993, %v876, %v987
    %v1017 = vsel %vm993, %v883, %v988
    %v1019 = vsel %vm993, %v890, %v989
    %v1021 = vsel %vm993, %v897, %v990
    %v1023 = vsel %vm993, %v904, %v991
    %v1025 = vsel %vm993, %v911, %v992
    %v1026 = vshrl.u32 %v784, 16
    %v1027 = vpack.i.b16 %v1026, %v1026
    %v1029 = vlaneseq
    %v1030 = vshrl.u32 %v1029, 7
    %v1031 = vsub.s32 3, %v1030
    %v1032 = vrot.slane %v1027, %v1031
    %v1033 = vshrl.u32 %v785, 16
    %v1034 = vpack.i.b16 %v1033, %v1033
    %v1036 = vlaneseq
    %v1037 = vshrl.u32 %v1036, 7
    %v1038 = vsub.s32 3, %v1037
    %v1039 = vrot.slane %v1034, %v1038
    %v1040 = vshrl.u32 %v786, 16
    %v1041 = vpack.i.b16 %v1040, %v1040
    %v1043 = vlaneseq
    %v1044 = vshrl.u32 %v1043, 7
    %v1045 = vsub.s32 3, %v1044
    %v1046 = vrot.slane %v1041, %v1045
    %v1047 = vshrl.u32 %v787, 16
    %v1048 = vpack.i.b16 %v1047, %v1047
    %v1050 = vlaneseq
    %v1051 = vshrl.u32 %v1050, 7
    %v1052 = vsub.s32 3, %v1051
    %v1053 = vrot.slane %v1048, %v1052
    %v1054 = vshrl.u32 %v788, 16
    %v1055 = vpack.i.b16 %v1054, %v1054
    %v1057 = vlaneseq
    %v1058 = vshrl.u32 %v1057, 7
    %v1059 = vsub.s32 3, %v1058
    %v1060 = vrot.slane %v1055, %v1059
    %v1061 = vshrl.u32 %v789, 16
    %v1062 = vpack.i.b16 %v1061, %v1061
    %v1064 = vlaneseq
    %v1065 = vshrl.u32 %v1064, 7
    %v1066 = vsub.s32 3, %v1065
    %v1067 = vrot.slane %v1062, %v1066
    %v1068 = vshrl.u32 %v790, 16
    %v1069 = vpack.i.b16 %v1068, %v1068
    %v1071 = vlaneseq
    %v1072 = vshrl.u32 %v1071, 7
    %v1073 = vsub.s32 3, %v1072
    %v1074 = vrot.slane %v1069, %v1073
    %v1075 = vshrl.u32 %v791, 16
    %v1076 = vpack.i.b16 %v1075, %v1075
    %v1078 = vlaneseq
    %v1079 = vshrl.u32 %v1078, 7
    %v1080 = vsub.s32 3, %v1079
    %v1081 = vrot.slane %v1076, %v1080
    %v1082 = vshrl.u32 %v792, 16
    %v1083 = vpack.i.b16 %v1082, %v1082
    %v1085 = vlaneseq
    %v1086 = vshrl.u32 %v1085, 7
    %v1087 = vsub.s32 3, %v1086
    %v1088 = vrot.slane %v1083, %v1087
    %v1089 = vshrl.u32 %v793, 16
    %v1090 = vpack.i.b16 %v1089, %v1089
    %v1092 = vlaneseq
    %v1093 = vshrl.u32 %v1092, 7
    %v1094 = vsub.s32 3, %v1093
    %v1095 = vrot.slane %v1090, %v1094
    %v1096 = vshrl.u32 %v794, 16
    %v1097 = vpack.i.b16 %v1096, %v1096
    %v1099 = vlaneseq
    %v1100 = vshrl.u32 %v1099, 7
    %v1101 = vsub.s32 3, %v1100
    %v1102 = vrot.slane %v1097, %v1101
    %v1103 = vshrl.u32 %v795, 16
    %v1104 = vpack.i.b16 %v1103, %v1103
    %v1106 = vlaneseq
    %v1107 = vshrl.u32 %v1106, 7
    %v1108 = vsub.s32 3, %v1107
    %v1109 = vrot.slane %v1104, %v1108
    %v1110 = vshrl.u32 %v796, 16
    %v1111 = vpack.i.b16 %v1110, %v1110
    %v1113 = vlaneseq
    %v1114 = vshrl.u32 %v1113, 7
    %v1115 = vsub.s32 3, %v1114
    %v1116 = vrot.slane %v1111, %v1115
    %v1117 = vshrl.u32 %v797, 16
    %v1118 = vpack.i.b16 %v1117, %v1117
    %v1120 = vlaneseq
    %v1121 = vshrl.u32 %v1120, 7
    %v1122 = vsub.s32 3, %v1121
    %v1123 = vrot.slane %v1118, %v1122
    %v1124 = vshrl.u32 %v798, 16
    %v1125 = vpack.i.b16 %v1124, %v1124
    %v1127 = vlaneseq
    %v1128 = vshrl.u32 %v1127, 7
    %v1129 = vsub.s32 3, %v1128
    %v1130 = vrot.slane %v1125, %v1129
    %v1131 = vshrl.u32 %v799, 16
    %v1132 = vpack.i.b16 %v1131, %v1131
    %v1134 = vlaneseq
    %v1135 = vshrl.u32 %v1134, 7
    %v1136 = vsub.s32 3, %v1135
    %v1137 = vrot.slane %v1132, %v1136
    %v1138 = vrot.slane %v784, 1
    %v1139 = vrot.slane %v785, 1
    %v1140 = vrot.slane %v786, 1
    %v1141 = vrot.slane %v787, 1
    %v1142 = vrot.slane %v788, 1
    %v1143 = vrot.slane %v789, 1
    %v1144 = vrot.slane %v790, 1
    %v1145 = vrot.slane %v791, 1
    %v1146 = vrot.slane %v792, 1
    %v1147 = vrot.slane %v793, 1
    %v1148 = vrot.slane %v794, 1
    %v1149 = vrot.slane %v795, 1
    %v1150 = vrot.slane %v796, 1
    %v1151 = vrot.slane %v797, 1
    %v1152 = vrot.slane %v798, 1
    %v1153 = vrot.slane %v799, 1
    %vm1154 = vcmask 1042432
    %v1157 = vsel %vm1154, %v1138, %v1032
    %v1160 = vsel %vm1154, %v1139, %v1039
    %v1163 = vsel %vm1154, %v1140, %v1046
    %v1166 = vsel %vm1154, %v1141, %v1053
    %v1169 = vsel %vm1154, %v1142, %v1060
    %v1172 = vsel %vm1154, %v1143, %v1067
    %v1175 = vsel %vm1154, %v1144, %v1074
    %v1178 = vsel %vm1154, %v1145, %v1081
    %v1181 = vsel %vm1154, %v1146, %v1088
    %v1184 = vsel %vm1154, %v1147, %v1095
    %v1187 = vsel %vm1154, %v1148, %v1102
    %v1190 = vsel %vm1154, %v1149, %v1109
    %v1193 = vsel %vm1154, %v1150, %v1116
    %v1196 = vsel %vm1154, %v1151, %v1123
    %v1199 = vsel %vm1154, %v1152, %v1130
    %v1202 = vsel %vm1154, %v1153, %v1137
    %v1203 = vrot.slane %v784, 2
    %v1204 = vrot.slane %v785, 2
    %v1205 = vrot.slane %v786, 2
    %v1206 = vrot.slane %v787, 2
    %v1207 = vrot.slane %v788, 2
    %v1208 = vrot.slane %v789, 2
    %v1209 = vrot.slane %v790, 2
    %v1210 = vrot.slane %v791, 2
    %v1211 = vrot.slane %v792, 2
    %v1212 = vrot.slane %v793, 2
    %v1213 = vrot.slane %v794, 2
    %v1214 = vrot.slane %v795, 2
    %v1215 = vrot.slane %v796, 2
    %v1216 = vrot.slane %v797, 2
    %v1217 = vrot.slane %v798, 2
    %v1218 = vrot.slane %v799, 2
    %v1220 = vsel %vm928, %v1203, %v1032
    %v1222 = vsel %vm928, %v1204, %v1039
    %v1224 = vsel %vm928, %v1205, %v1046
    %v1226 = vsel %vm928, %v1206, %v1053
    %v1228 = vsel %vm928, %v1207, %v1060
    %v1230 = vsel %vm928, %v1208, %v1067
    %v1232 = vsel %vm928, %v1209, %v1074
    %v1234 = vsel %vm928, %v1210, %v1081
    %v1236 = vsel %vm928, %v1211, %v1088
    %v1238 = vsel %vm928, %v1212, %v1095
    %v1240 = vsel %vm928, %v1213, %v1102
    %v1242 = vsel %vm928, %v1214, %v1109
    %v1244 = vsel %vm928, %v1215, %v1116
    %v1246 = vsel %vm928, %v1216, %v1123
    %v1248 = vsel %vm928, %v1217, %v1130
    %v1250 = vsel %vm928, %v1218, %v1137
    %v1315 = vunpack.c.l.b16 %v931
    %v1316 = vunpack.c.l.b16 %v995
    %v1317 = vunpack.c.l.b16 %v1157
    %v1318 = vunpack.c.l.b16 %v1220
    %v1319 = vunpack.c.l.b16 %v934
    %v1320 = vunpack.c.l.b16 %v997
    %v1321 = vunpack.c.l.b16 %v1160
    %v1322 = vunpack.c.l.b16 %v1222
    %v1323 = vunpack.c.l.b16 %v937
    %v1324 = vunpack.c.l.b16 %v999
    %v1325 = vunpack.c.l.b16 %v1163
    %v1326 = vunpack.c.l.b16 %v1224
    %v1327 = vunpack.c.l.b16 %v940
    %v1328 = vunpack.c.l.b16 %v1001
    %v1329 = vunpack.c.l.b16 %v1166
    %v1330 = vunpack.c.l.b16 %v1226
    %v1331 = vunpack.c.l.b16 %v943
    %v1332 = vunpack.c.l.b16 %v1003
    %v1333 = vunpack.c.l.b16 %v1169
    %v1334 = vunpack.c.l.b16 %v1228
    %v1335 = vunpack.c.l.b16 %v946
    %v1336 = vunpack.c.l.b16 %v1005
    %v1337 = vunpack.c.l.b16 %v1172
    %v1338 = vunpack.c.l.b16 %v1230
    %v1339 = vunpack.c.l.b16 %v949
    %v1340 = vunpack.c.l.b16 %v1007
    %v1341 = vunpack.c.l.b16 %v1175
    %v1342 = vunpack.c.l.b16 %v1232
    %v1343 = vunpack.c.l.b16 %v952
    %v1344 = vunpack.c.l.b16 %v1009
    %v1345 = vunpack.c.l.b16 %v1178
    %v1346 = vunpack.c.l.b16 %v1234
    %v1347 = vunpack.c.l.b16 %v955
    %v1348 = vunpack.c.l.b16 %v1011
    %v1349 = vunpack.c.l.b16 %v1181
    %v1350 = vunpack.c.l.b16 %v1236
    %v1351 = vunpack.c.l.b16 %v958
    %v1352 = vunpack.c.l.b16 %v1013
    %v1353 = vunpack.c.l.b16 %v1184
    %v1354 = vunpack.c.l.b16 %v1238
    %v1355 = vunpack.c.l.b16 %v961
    %v1356 = vunpack.c.l.b16 %v1015
    %v1357 = vunpack.c.l.b16 %v1187
    %v1358 = vunpack.c.l.b16 %v1240
    %v1359 = vunpack.c.l.b16 %v964
    %v1360 = vunpack.c.l.b16 %v1017
    %v1361 = vunpack.c.l.b16 %v1190
    %v1362 = vunpack.c.l.b16 %v1242
    %v1363 = vunpack.c.l.b16 %v967
    %v1364 = vunpack.c.l.b16 %v1019
    %v1365 = vunpack.c.l.b16 %v1193
    %v1366 = vunpack.c.l.b16 %v1244
    %v1367 = vunpack.c.l.b16 %v970
    %v1368 = vunpack.c.l.b16 %v1021
    %v1369 = vunpack.c.l.b16 %v1196
    %v1370 = vunpack.c.l.b16 %v1246
    %v1371 = vunpack.c.l.b16 %v973
    %v1372 = vunpack.c.l.b16 %v1023
    %v1373 = vunpack.c.l.b16 %v1199
    %v1374 = vunpack.c.l.b16 %v1248
    %v1375 = vunpack.c.l.b16 %v976
    %v1376 = vunpack.c.l.b16 %v1025
    %v1377 = vunpack.c.l.b16 %v1202
    %v1378 = vunpack.c.l.b16 %v1250
    %v1379 = vld [vmem:[#allocation4] sm:$0xf]
    %v1380 = vld [vmem:[#allocation4 + $0x4] sm:$0xf]
    %v1381 = vld [vmem:[#allocation4 + $0x8] sm:$0xf]
    %v1382 = vld [vmem:[#allocation4 + $0xc] sm:$0xf]
    %v1383 = vld [vmem:[#allocation4 + $0x10] sm:$0xf]
    %v1384 = vld [vmem:[#allocation4 + $0x14] sm:$0xf]
    %v1385 = vld [vmem:[#allocation4 + $0x18] sm:$0xf]
    %v1386 = vld [vmem:[#allocation4 + $0x1c] sm:$0xf]
    %v1387 = vld [vmem:[#allocation4 + $0x20] sm:$0xf]
    %v1388 = vld [vmem:[#allocation4 + $0x24] sm:$0xf]
    %v1389 = vld [vmem:[#allocation4 + $0x28] sm:$0xf]
    %v1390 = vld [vmem:[#allocation4 + $0x2c] sm:$0xf]
    %v1391 = vld [vmem:[#allocation4 + $0x30] sm:$0xf]
    %v1392 = vld [vmem:[#allocation4 + $0x34] sm:$0xf]
    %v1393 = vld [vmem:[#allocation4 + $0x38] sm:$0xf]
    %v1394 = vld [vmem:[#allocation4 + $0x3c] sm:$0xf]
    %v1395 = vld [vmem:[#allocation4 + $0x40] sm:$0xf]
    %v1396 = vld [vmem:[#allocation4 + $0x44] sm:$0xf]
    %v1397 = vld [vmem:[#allocation4 + $0x48] sm:$0xf]
    %v1398 = vld [vmem:[#allocation4 + $0x4c] sm:$0xf]
    %v1399 = vld [vmem:[#allocation4 + $0x50] sm:$0xf]
    %v1400 = vld [vmem:[#allocation4 + $0x54] sm:$0xf]
    %v1401 = vld [vmem:[#allocation4 + $0x58] sm:$0xf]
    %v1402 = vld [vmem:[#allocation4 + $0x5c] sm:$0xf]
    %v1403 = vld [vmem:[#allocation4 + $0x60] sm:$0xf]
    %v1404 = vld [vmem:[#allocation4 + $0x64] sm:$0xf]
    %v1405 = vld [vmem:[#allocation4 + $0x68] sm:$0xf]
    %v1406 = vld [vmem:[#allocation4 + $0x6c] sm:$0xf]
    %v1407 = vld [vmem:[#allocation4 + $0x70] sm:$0xf]
    %v1408 = vld [vmem:[#allocation4 + $0x74] sm:$0xf]
    %v1409 = vld [vmem:[#allocation4 + $0x78] sm:$0xf]
    %v1410 = vld [vmem:[#allocation4 + $0x7c] sm:$0xf]
    %v1411 = vld [vmem:[#allocation4 + $0x80] sm:$0xf]
    %v1412 = vld [vmem:[#allocation4 + $0x84] sm:$0xf]
    %v1413 = vld [vmem:[#allocation4 + $0x88] sm:$0xf]
    %v1414 = vld [vmem:[#allocation4 + $0x8c] sm:$0xf]
    %v1415 = vld [vmem:[#allocation4 + $0x90] sm:$0xf]
    %v1416 = vld [vmem:[#allocation4 + $0x94] sm:$0xf]
    %v1417 = vld [vmem:[#allocation4 + $0x98] sm:$0xf]
    %v1418 = vld [vmem:[#allocation4 + $0x9c] sm:$0xf]
    %v1419 = vld [vmem:[#allocation4 + $0xa0] sm:$0xf]
    %v1420 = vld [vmem:[#allocation4 + $0xa4] sm:$0xf]
    %v1421 = vld [vmem:[#allocation4 + $0xa8] sm:$0xf]
    %v1422 = vld [vmem:[#allocation4 + $0xac] sm:$0xf]
    %v1423 = vld [vmem:[#allocation4 + $0xb0] sm:$0xf]
    %v1424 = vld [vmem:[#allocation4 + $0xb4] sm:$0xf]
    %v1425 = vld [vmem:[#allocation4 + $0xb8] sm:$0xf]
    %v1426 = vld [vmem:[#allocation4 + $0xbc] sm:$0xf]
    %v1427 = vld [vmem:[#allocation4 + $0xc0] sm:$0xf]
    %v1428 = vld [vmem:[#allocation4 + $0xc4] sm:$0xf]
    %v1429 = vld [vmem:[#allocation4 + $0xc8] sm:$0xf]
    %v1430 = vld [vmem:[#allocation4 + $0xcc] sm:$0xf]
    %v1431 = vld [vmem:[#allocation4 + $0xd0] sm:$0xf]
    %v1432 = vld [vmem:[#allocation4 + $0xd4] sm:$0xf]
    %v1433 = vld [vmem:[#allocation4 + $0xd8] sm:$0xf]
    %v1434 = vld [vmem:[#allocation4 + $0xdc] sm:$0xf]
    %v1435 = vld [vmem:[#allocation4 + $0xe0] sm:$0xf]
    %v1436 = vld [vmem:[#allocation4 + $0xe4] sm:$0xf]
    %v1437 = vld [vmem:[#allocation4 + $0xe8] sm:$0xf]
    %v1438 = vld [vmem:[#allocation4 + $0xec] sm:$0xf]
    %v1439 = vld [vmem:[#allocation4 + $0xf0] sm:$0xf]
    %v1440 = vld [vmem:[#allocation4 + $0xf4] sm:$0xf]
    %v1441 = vld [vmem:[#allocation4 + $0xf8] sm:$0xf]
    %v1442 = vld [vmem:[#allocation4 + $0xfc] sm:$0xf]
    %v1443 = vld [vmem:[#allocation4 + $0x100] sm:$0xf]
    %v1444 = vld [vmem:[#allocation4 + $0x104] sm:$0xf]
    %v1445 = vld [vmem:[#allocation4 + $0x108] sm:$0xf]
    %v1446 = vld [vmem:[#allocation4 + $0x10c] sm:$0xf]
    %v1447 = vld [vmem:[#allocation4 + $0x110] sm:$0xf]
    %v1448 = vld [vmem:[#allocation4 + $0x114] sm:$0xf]
    %v1449 = vld [vmem:[#allocation4 + $0x118] sm:$0xf]
    %v1450 = vld [vmem:[#allocation4 + $0x11c] sm:$0xf]
    %v1451 = vld [vmem:[#allocation4 + $0x120] sm:$0xf]
    %v1452 = vld [vmem:[#allocation4 + $0x124] sm:$0xf]
    %v1453 = vld [vmem:[#allocation4 + $0x128] sm:$0xf]
    %v1454 = vld [vmem:[#allocation4 + $0x12c] sm:$0xf]
    %v1455 = vld [vmem:[#allocation4 + $0x130] sm:$0xf]
    %v1456 = vld [vmem:[#allocation4 + $0x134] sm:$0xf]
    %v1457 = vld [vmem:[#allocation4 + $0x138] sm:$0xf]
    %v1458 = vld [vmem:[#allocation4 + $0x13c] sm:$0xf]
    %v1459 = vpack.c.b16 %v1319, %v1315
    %v1460 = vpack.c.b16 %v1320, %v1316
    %v1461 = vpack.c.b16 %v769, %v768
    %v1462 = vpack.c.b16 %v1321, %v1317
    %v1463 = vpack.c.b16 %v1322, %v1318
    %v1464 = vpack.c.b16 %v1327, %v1323
    %v1465 = vpack.c.b16 %v1328, %v1324
    %v1466 = vpack.c.b16 %v771, %v770
    %v1467 = vpack.c.b16 %v1329, %v1325
    %v1468 = vpack.c.b16 %v1330, %v1326
    %v1469 = vpack.c.b16 %v1335, %v1331
    %v1470 = vpack.c.b16 %v1336, %v1332
    %v1471 = vpack.c.b16 %v773, %v772
    %v1472 = vpack.c.b16 %v1337, %v1333
    %v1473 = vpack.c.b16 %v1338, %v1334
    %v1474 = vpack.c.b16 %v1343, %v1339
    %v1475 = vpack.c.b16 %v1344, %v1340
    %v1476 = vpack.c.b16 %v775, %v774
    %v1477 = vpack.c.b16 %v1345, %v1341
    %v1478 = vpack.c.b16 %v1346, %v1342
    %v1479 = vpack.c.b16 %v1351, %v1347
    %v1480 = vpack.c.b16 %v1352, %v1348
    %v1481 = vpack.c.b16 %v777, %v776
    %v1482 = vpack.c.b16 %v1353, %v1349
    %v1483 = vpack.c.b16 %v1354, %v1350
    %v1484 = vpack.c.b16 %v1359, %v1355
    %v1485 = vpack.c.b16 %v1360, %v1356
    %v1486 = vpack.c.b16 %v779, %v778
    %v1487 = vpack.c.b16 %v1361, %v1357
    %v1488 = vpack.c.b16 %v1362, %v1358
    %v1489 = vpack.c.b16 %v1367, %v1363
    %v1490 = vpack.c.b16 %v1368, %v1364
    %v1491 = vpack.c.b16 %v781, %v780
    %v1492 = vpack.c.b16 %v1369, %v1365
    %v1493 = vpack.c.b16 %v1370, %v1366
    %v1494 = vpack.c.b16 %v1375, %v1371
    %v1495 = vpack.c.b16 %v1376, %v1372
    %v1496 = vpack.c.b16 %v783, %v782
    %v1497 = vpack.c.b16 %v1377, %v1373
    %v1498 = vpack.c.b16 %v1378, %v1374
    %v1619 = vunpack.c.l.b16 %v1379
    %v1620 = vunpack.c.l.b16 %v1380
    %v1621 = vunpack.c.l.b16 %v1381
    %v1622 = vunpack.c.l.b16 %v1382
    %v1623 = vunpack.c.l.b16 %v1383
    %v1624 = vunpack.c.l.b16 %v1384
    %v1625 = vunpack.c.l.b16 %v1385
    %v1626 = vunpack.c.l.b16 %v1386
    %v1627 = vunpack.c.l.b16 %v1387
    %v1628 = vunpack.c.l.b16 %v1388
    %v1629 = vunpack.c.l.b16 %v1389
    %v1630 = vunpack.c.l.b16 %v1390
    %v1631 = vunpack.c.l.b16 %v1391
    %v1632 = vunpack.c.l.b16 %v1392
    %v1633 = vunpack.c.l.b16 %v1393
    %v1634 = vunpack.c.l.b16 %v1394
    %v1635 = vunpack.c.l.b16 %v1395
    %v1636 = vunpack.c.l.b16 %v1396
    %v1637 = vunpack.c.l.b16 %v1397
    %v1638 = vunpack.c.l.b16 %v1398
    %v1639 = vunpack.c.l.b16 %v1399
    %v1640 = vunpack.c.l.b16 %v1400
    %v1641 = vunpack.c.l.b16 %v1401
    %v1642 = vunpack.c.l.b16 %v1402
    %v1643 = vunpack.c.l.b16 %v1403
    %v1644 = vunpack.c.l.b16 %v1404
    %v1645 = vunpack.c.l.b16 %v1405
    %v1646 = vunpack.c.l.b16 %v1406
    %v1647 = vunpack.c.l.b16 %v1407
    %v1648 = vunpack.c.l.b16 %v1408
    %v1649 = vunpack.c.l.b16 %v1409
    %v1650 = vunpack.c.l.b16 %v1410
    %v1651 = vunpack.c.l.b16 %v1411
    %v1652 = vunpack.c.l.b16 %v1412
    %v1653 = vunpack.c.l.b16 %v1413
    %v1654 = vunpack.c.l.b16 %v1414
    %v1655 = vunpack.c.l.b16 %v1415
    %v1656 = vunpack.c.l.b16 %v1416
    %v1657 = vunpack.c.l.b16 %v1417
    %v1658 = vunpack.c.l.b16 %v1418
    %v1659 = vunpack.c.l.b16 %v1419
    %v1660 = vunpack.c.l.b16 %v1420
    %v1661 = vunpack.c.l.b16 %v1421
    %v1662 = vunpack.c.l.b16 %v1422
    %v1663 = vunpack.c.l.b16 %v1423
    %v1664 = vunpack.c.l.b16 %v1424
    %v1665 = vunpack.c.l.b16 %v1425
    %v1666 = vunpack.c.l.b16 %v1426
    %v1667 = vunpack.c.l.b16 %v1427
    %v1668 = vunpack.c.l.b16 %v1428
    %v1669 = vunpack.c.l.b16 %v1429
    %v1670 = vunpack.c.l.b16 %v1430
    %v1671 = vunpack.c.l.b16 %v1431
    %v1672 = vunpack.c.l.b16 %v1432
    %v1673 = vunpack.c.l.b16 %v1433
    %v1674 = vunpack.c.l.b16 %v1434
    %v1675 = vunpack.c.l.b16 %v1435
    %v1676 = vunpack.c.l.b16 %v1436
    %v1677 = vunpack.c.l.b16 %v1437
    %v1678 = vunpack.c.l.b16 %v1438
    %v1679 = vunpack.c.l.b16 %v1439
    %v1680 = vunpack.c.l.b16 %v1440
    %v1681 = vunpack.c.l.b16 %v1441
    %v1682 = vunpack.c.l.b16 %v1442
    %v1683 = vunpack.c.l.b16 %v1443
    %v1684 = vunpack.c.l.b16 %v1444
    %v1685 = vunpack.c.l.b16 %v1445
    %v1686 = vunpack.c.l.b16 %v1446
    %v1687 = vunpack.c.l.b16 %v1447
    %v1688 = vunpack.c.l.b16 %v1448
    %v1689 = vunpack.c.l.b16 %v1449
    %v1690 = vunpack.c.l.b16 %v1450
    %v1691 = vunpack.c.l.b16 %v1451
    %v1692 = vunpack.c.l.b16 %v1452
    %v1693 = vunpack.c.l.b16 %v1453
    %v1694 = vunpack.c.l.b16 %v1454
    %v1695 = vunpack.c.l.b16 %v1455
    %v1696 = vunpack.c.l.b16 %v1456
    %v1697 = vunpack.c.l.b16 %v1457
    %v1698 = vunpack.c.l.b16 %v1458
    %v1699 = vpack.c.b16 %v1620, %v1619
    %v1700 = vpack.c.b16 %v1622, %v1621
    %v1701 = vpack.c.b16 %v1624, %v1623
    %v1702 = vpack.c.b16 %v1626, %v1625
    %v1703 = vpack.c.b16 %v1628, %v1627
    %v1704 = vpack.c.b16 %v1630, %v1629
    %v1705 = vpack.c.b16 %v1632, %v1631
    %v1706 = vpack.c.b16 %v1634, %v1633
    %v1707 = vpack.c.b16 %v1636, %v1635
    %v1708 = vpack.c.b16 %v1638, %v1637
    %v1709 = vpack.c.b16 %v1640, %v1639
    %v1710 = vpack.c.b16 %v1642, %v1641
    %v1711 = vpack.c.b16 %v1644, %v1643
    %v1712 = vpack.c.b16 %v1646, %v1645
    %v1713 = vpack.c.b16 %v1648, %v1647
    %v1714 = vpack.c.b16 %v1650, %v1649
    %v1715 = vpack.c.b16 %v1652, %v1651
    %v1716 = vpack.c.b16 %v1654, %v1653
    %v1717 = vpack.c.b16 %v1656, %v1655
    %v1718 = vpack.c.b16 %v1658, %v1657
    %v1719 = vpack.c.b16 %v1660, %v1659
    %v1720 = vpack.c.b16 %v1662, %v1661
    %v1721 = vpack.c.b16 %v1664, %v1663
    %v1722 = vpack.c.b16 %v1666, %v1665
    %v1723 = vpack.c.b16 %v1668, %v1667
    %v1724 = vpack.c.b16 %v1670, %v1669
    %v1725 = vpack.c.b16 %v1672, %v1671
    %v1726 = vpack.c.b16 %v1674, %v1673
    %v1727 = vpack.c.b16 %v1676, %v1675
    %v1728 = vpack.c.b16 %v1678, %v1677
    %v1729 = vpack.c.b16 %v1680, %v1679
    %v1730 = vpack.c.b16 %v1682, %v1681
    %v1731 = vpack.c.b16 %v1684, %v1683
    %v1732 = vpack.c.b16 %v1686, %v1685
    %v1733 = vpack.c.b16 %v1688, %v1687
    %v1734 = vpack.c.b16 %v1690, %v1689
    %v1735 = vpack.c.b16 %v1692, %v1691
    %v1736 = vpack.c.b16 %v1694, %v1693
    %v1737 = vpack.c.b16 %v1696, %v1695
    %v1738 = vpack.c.b16 %v1698, %v1697
    %1779 = vmatprep.subr.bf16.mxu0 0
    %1780 = vmatpush1.bf16.msra.mxu0 %v1699
    %1781 = vmatprep.subr.bf16.mxu0 0
    %1782 = vmatpush1.bf16.msra.mxu0 %v1700
    %1783 = vmatprep.subr.bf16.mxu0 0
    %1784 = vmatpush1.bf16.msra.mxu0 %v1701
    %1785 = vmatprep.subr.bf16.mxu0 0
    %1786 = vmatpush1.bf16.msra.mxu0 %v1702
    %1787 = vmatprep.subr.bf16.mxu0 0
    %1788 = vmatpush1.bf16.msra.mxu0 %v1703
    %1789 = vmatprep.subr.bf16.mxu0 0
    %1790 = vmatpush1.bf16.msra.mxu0 %v1704
    %1791 = vmatprep.subr.bf16.mxu0 0
    %1792 = vmatpush1.bf16.msra.mxu0 %v1705
    %1793 = vmatprep.subr.bf16.mxu0 0
    %1794 = vmatpush1.bf16.msra.mxu0 %v1706
    %1795 = vmatprep.subr.bf16.mxu0 0
    %1796 = vmatpush1.bf16.msra.mxu0 %v1707
    %1797 = vmatprep.subr.bf16.mxu0 0
    %1798 = vmatpush1.bf16.msra.mxu0 %v1708
    %1799 = vmatprep.subr.bf16.mxu0 0
    %1800 = vmatpush1.bf16.msra.mxu0 %v1709
    %1801 = vmatprep.subr.bf16.mxu0 0
    %1802 = vmatpush1.bf16.msra.mxu0 %v1710
    %1803 = vmatprep.subr.bf16.mxu0 0
    %1804 = vmatpush1.bf16.msra.mxu0 %v1711
    %1805 = vmatprep.subr.bf16.mxu0 0
    %1806 = vmatpush1.bf16.msra.mxu0 %v1712
    %1807 = vmatprep.subr.bf16.mxu0 0
    %1808 = vmatpush1.bf16.msra.mxu0 %v1713
    %1809 = vmatprep.subr.bf16.mxu0 0
    %1810 = vmatpush1.bf16.msra.mxu0 %v1714
    %1811 = vmatprep.mubr.bf16.mxu0 %v1460
    %1812 = vmatmul.mubr.bf16.gmra.mrb[0].mxu0 %v1459
    %v1813 = vpop.f32.mrb[0].mxu0
    %v1814 = vadd.f32 0.0, %v1813
    %v1815 = vpop.f32.mrb[0].mxu0
    %v1816 = vpop.f32.mrb[0].mxu0
    %v1817 = vadd.f32 0.0, %v1816
    %v1818 = vpop.f32.mrb[0].mxu0
    %1819 = vmatprep.mubr.bf16.mxu0 %v1465
    %1820 = vmatmul.mubr.bf16.gmra.mrb[0].mxu0 %v1464
    %v1821 = vpop.f32.mrb[0].mxu0
    %v1822 = vadd.f32 0.0, %v1821
    %v1823 = vpop.f32.mrb[0].mxu0
    %v1824 = vpop.f32.mrb[0].mxu0
    %v1825 = vadd.f32 0.0, %v1824
    %v1826 = vpop.f32.mrb[0].mxu0
    %1827 = vmatprep.mubr.bf16.mxu0 %v1470
    %1828 = vmatmul.mubr.bf16.gmra.mrb[0].mxu0 %v1469
    %v1829 = vpop.f32.mrb[0].mxu0
    %v1830 = vadd.f32 0.0, %v1829
    %v1831 = vpop.f32.mrb[0].mxu0
    %v1832 = vpop.f32.mrb[0].mxu0
    %v1833 = vadd.f32 0.0, %v1832
    %v1834 = vpop.f32.mrb[0].mxu0
    %1835 = vmatprep.mubr.bf16.mxu0 %v1475
    %1836 = vmatmul.mubr.bf16.gmra.mrb[0].mxu0 %v1474
    %v1837 = vpop.f32.mrb[0].mxu0
    %v1838 = vadd.f32 0.0, %v1837
    %v1839 = vpop.f32.mrb[0].mxu0
    %v1840 = vpop.f32.mrb[0].mxu0
    %v1841 = vadd.f32 0.0, %v1840
    %v1842 = vpop.f32.mrb[0].mxu0
    %1843 = vmatprep.mubr.bf16.mxu0 %v1480
    %1844 = vmatmul.mubr.bf16.gmra.mrb[0].mxu0 %v1479
    %v1845 = vpop.f32.mrb[0].mxu0
    %v1846 = vadd.f32 0.0, %v1845
    %v1847 = vpop.f32.mrb[0].mxu0
    %v1848 = vpop.f32.mrb[0].mxu0
    %v1849 = vadd.f32 0.0, %v1848
    %v1850 = vpop.f32.mrb[0].mxu0
    %1851 = vmatprep.mubr.bf16.mxu0 %v1485
    %1852 = vmatmul.mubr.bf16.gmra.mrb[0].mxu0 %v1484
    %v1853 = vpop.f32.mrb[0].mxu0
    %v1854 = vadd.f32 0.0, %v1853
    %v1855 = vpop.f32.mrb[0].mxu0
    %v1856 = vpop.f32.mrb[0].mxu0
    %v1857 = vadd.f32 0.0, %v1856
    %v1858 = vpop.f32.mrb[0].mxu0
    %1859 = vmatprep.mubr.bf16.mxu0 %v1490
    %1860 = vmatmul.mubr.bf16.gmra.mrb[0].mxu0 %v1489
    %v1861 = vpop.f32.mrb[0].mxu0
    %v1862 = vadd.f32 0.0, %v1861
    %v1863 = vpop.f32.mrb[0].mxu0
    %v1864 = vpop.f32.mrb[0].mxu0
    %v1865 = vadd.f32 0.0, %v1864
    %v1866 = vpop.f32.mrb[0].mxu0
    %1867 = vmatprep.mubr.bf16.mxu0 %v1495
    %1868 = vmatmul.mubr.bf16.gmra.mrb[0].mxu0 %v1494
    %v1869 = vpop.f32.mrb[0].mxu0
    %v1870 = vadd.f32 0.0, %v1869
    %v1871 = vpop.f32.mrb[0].mxu0
    %v1872 = vpop.f32.mrb[0].mxu0
    %v1873 = vadd.f32 0.0, %v1872
    %v1874 = vpop.f32.mrb[0].mxu0
    %1875 = vdwg.mxu0
    %1876 = vmatprep.subr.bf16.mxu0 0
    %1877 = vmatpush1.bf16.msra.mxu0 %v1715
    %1878 = vmatprep.subr.bf16.mxu0 0
    %1879 = vmatpush1.bf16.msra.mxu0 %v1716
    %1880 = vmatprep.subr.bf16.mxu0 0
    %1881 = vmatpush1.bf16.msra.mxu0 %v1717
    %1882 = vmatprep.subr.bf16.mxu0 0
    %1883 = vmatpush1.bf16.msra.mxu0 %v1718
    %1884 = vmatprep.subr.bf16.mxu0 0
    %1885 = vmatpush1.bf16.msra.mxu0 %v1719
    %1886 = vmatprep.subr.bf16.mxu0 0
    %1887 = vmatpush1.bf16.msra.mxu0 %v1720
    %1888 = vmatprep.subr.bf16.mxu0 0
    %1889 = vmatpush1.bf16.msra.mxu0 %v1721
    %1890 = vmatprep.subr.bf16.mxu0 0
    %1891 = vmatpush1.bf16.msra.mxu0 %v1722
    %1892 = vmatprep.subr.bf16.mxu0 0
    %1893 = vmatpush1.bf16.msra.mxu0 %v1723
    %1894 = vmatprep.subr.bf16.mxu0 0
    %1895 = vmatpush1.bf16.msra.mxu0 %v1724
    %1896 = vmatprep.subr.bf16.mxu0 0
    %1897 = vmatpush1.bf16.msra.mxu0 %v1725
    %1898 = vmatprep.subr.bf16.mxu0 0
    %1899 = vmatpush1.bf16.msra.mxu0 %v1726
    %1900 = vmatprep.subr.bf16.mxu0 0
    %1901 = vmatpush1.bf16.msra.mxu0 %v1727
    %1902 = vmatprep.subr.bf16.mxu0 0
    %1903 = vmatpush1.bf16.msra.mxu0 %v1728
    %1904 = vmatprep.subr.bf16.mxu0 0
    %1905 = vmatpush1.bf16.msra.mxu0 %v1729
    %1906 = vmatprep.subr.bf16.mxu0 0
    %1907 = vmatpush1.bf16.msra.mxu0 %v1730
    %1908 = vmatprep.mubr.bf16.mxu0 %v1462
    %1909 = vmatmul.mubr.bf16.gmra.mrb[0].mxu0 %v1461
    %v1910 = vpop.f32.mrb[0].mxu0
    %v1911 = vadd.f32 %v1814, %v1910
    %v1912 = vpop.f32.mrb[0].mxu0
    %v1913 = vpop.f32.mrb[0].mxu0
    %v1914 = vadd.f32 %v1817, %v1913
    %v1915 = vpop.f32.mrb[0].mxu0
    %1916 = vmatprep.mubr.bf16.mxu0 %v1467
    %1917 = vmatmul.mubr.bf16.gmra.mrb[0].mxu0 %v1466
    %v1918 = vpop.f32.mrb[0].mxu0
    %v1919 = vadd.f32 %v1822, %v1918
    %v1920 = vpop.f32.mrb[0].mxu0
    %v1921 = vpop.f32.mrb[0].mxu0
    %v1922 = vadd.f32 %v1825, %v1921
    %v1923 = vpop.f32.mrb[0].mxu0
    %1924 = vmatprep.mubr.bf16.mxu0 %v1472
    %1925 = vmatmul.mubr.bf16.gmra.mrb[0].mxu0 %v1471
    %v1926 = vpop.f32.mrb[0].mxu0
    %v1927 = vadd.f32 %v1830, %v1926
    %v1928 = vpop.f32.mrb[0].mxu0
    %v1929 = vpop.f32.mrb[0].mxu0
    %v1930 = vadd.f32 %v1833, %v1929
    %v1931 = vpop.f32.mrb[0].mxu0
    %1932 = vmatprep.mubr.bf16.mxu0 %v1477
    %1933 = vmatmul.mubr.bf16.gmra.mrb[0].mxu0 %v1476
    %v1934 = vpop.f32.mrb[0].mxu0
    %v1935 = vadd.f32 %v1838, %v1934
    %v1936 = vpop.f32.mrb[0].mxu0
    %v1937 = vpop.f32.mrb[0].mxu0
    %v1938 = vadd.f32 %v1841, %v1937
    %v1939 = vpop.f32.mrb[0].mxu0
    %1940 = vmatprep.mubr.bf16.mxu0 %v1482
    %1941 = vmatmul.mubr.bf16.gmra.mrb[0].mxu0 %v1481
    %v1942 = vpop.f32.mrb[0].mxu0
    %v1943 = vadd.f32 %v1846, %v1942
    %v1944 = vpop.f32.mrb[0].mxu0
    %v1945 = vpop.f32.mrb[0].mxu0
    %v1946 = vadd.f32 %v1849, %v1945
    %v1947 = vpop.f32.mrb[0].mxu0
    %1948 = vmatprep.mubr.bf16.mxu0 %v1487
    %1949 = vmatmul.mubr.bf16.gmra.mrb[0].mxu0 %v1486
    %v1950 = vpop.f32.mrb[0].mxu0
    %v1951 = vadd.f32 %v1854, %v1950
    %v1952 = vpop.f32.mrb[0].mxu0
    %v1953 = vpop.f32.mrb[0].mxu0
    %v1954 = vadd.f32 %v1857, %v1953
    %v1955 = vpop.f32.mrb[0].mxu0
    %1956 = vmatprep.mubr.bf16.mxu0 %v1492
    %1957 = vmatmul.mubr.bf16.gmra.mrb[0].mxu0 %v1491
    %v1958 = vpop.f32.mrb[0].mxu0
    %v1959 = vadd.f32 %v1862, %v1958
    %v1960 = vpop.f32.mrb[0].mxu0
    %v1961 = vpop.f32.mrb[0].mxu0
    %v1962 = vadd.f32 %v1865, %v1961
    %v1963 = vpop.f32.mrb[0].mxu0
    %1964 = vmatprep.mubr.bf16.mxu0 %v1497
    %1965 = vmatmul.mubr.bf16.gmra.mrb[0].mxu0 %v1496
    %v1966 = vpop.f32.mrb[0].mxu0
    %v1967 = vadd.f32 %v1870, %v1966
    %v1968 = vpop.f32.mrb[0].mxu0
    %v1969 = vpop.f32.mrb[0].mxu0
    %v1970 = vadd.f32 %v1873, %v1969
    %v1971 = vpop.f32.mrb[0].mxu0
    %1972 = vdwg.mxu0
    %1973 = vmatprep.subr.bf16.mxu0 0
    %1974 = vmatpush1.bf16.msra.mxu0 %v1731
    %1975 = vmatprep.subr.bf16.mxu0 0
    %1976 = vmatpush1.bf16.msra.mxu0 %v1732
    %1977 = vmatprep.subr.bf16.mxu0 0
    %1978 = vmatpush1.bf16.msra.mxu0 %v1733
    %1979 = vmatprep.subr.bf16.mxu0 0
    %1980 = vmatpush1.bf16.msra.mxu0 %v1734
    %1981 = vmatprep.subr.bf16.mxu0 0
    %1982 = vmatpush1.bf16.msra.mxu0 %v1735
    %1983 = vmatprep.subr.bf16.mxu0 0
    %1984 = vmatpush1.bf16.msra.mxu0 %v1736
    %1985 = vmatprep.subr.bf16.mxu0 0
    %1986 = vmatpush1.bf16.msra.mxu0 %v1737
    %1987 = vmatprep.subr.bf16.mxu0 0
    %1988 = vmatpush1.bf16.msra.mxu0 %v1738
    %1989 = vmatprep.subr.bf16.mxu0 0
    %1990 = vmatpush1.bf16.msra.mxu0 0
    %1991 = vmatprep.subr.bf16.mxu0 0
    %1992 = vmatpush1.bf16.msra.mxu0 0
    %1993 = vmatprep.subr.bf16.mxu0 0
    %1994 = vmatpush1.bf16.msra.mxu0 0
    %1995 = vmatprep.subr.bf16.mxu0 0
    %1996 = vmatpush1.bf16.msra.mxu0 0
    %1997 = vmatprep.subr.bf16.mxu0 0
    %1998 = vmatpush1.bf16.msra.mxu0 0
    %1999 = vmatprep.subr.bf16.mxu0 0
    %2000 = vmatpush1.bf16.msra.mxu0 0
    %2001 = vmatprep.subr.bf16.mxu0 0
    %2002 = vmatpush1.bf16.msra.mxu0 0
    %2003 = vmatprep.subr.bf16.mxu0 0
    %2004 = vmatpush1.bf16.msra.mxu0 0
    %2005 = vmatprep.mubr.bf16.mxu0 0
    %2006 = vmatmul.mubr.bf16.gmra.mrb[0].mxu0 %v1463
    %v2007 = vpop.f32.mrb[0].mxu0
    %v2008 = vadd.f32 %v1911, %v2007
    %v2009 = vpop.f32.mrb[0].mxu0
    %v2010 = vpop.f32.mrb[0].mxu0
    %v2011 = vadd.f32 %v1914, %v2010
    %v2012 = vpop.f32.mrb[0].mxu0
    %2013 = vmatprep.mubr.bf16.mxu0 0
    %2014 = vmatmul.mubr.bf16.gmra.mrb[0].mxu0 %v1468
    %v2015 = vpop.f32.mrb[0].mxu0
    %v2016 = vadd.f32 %v1919, %v2015
    %v2017 = vpop.f32.mrb[0].mxu0
    %v2018 = vpop.f32.mrb[0].mxu0
    %v2019 = vadd.f32 %v1922, %v2018
    %v2020 = vpop.f32.mrb[0].mxu0
    %2021 = vmatprep.mubr.bf16.mxu0 0
    %2022 = vmatmul.mubr.bf16.gmra.mrb[0].mxu0 %v1473
    %v2023 = vpop.f32.mrb[0].mxu0
    %v2024 = vadd.f32 %v1927, %v2023
    %v2025 = vpop.f32.mrb[0].mxu0
    %v2026 = vpop.f32.mrb[0].mxu0
    %v2027 = vadd.f32 %v1930, %v2026
    %v2028 = vpop.f32.mrb[0].mxu0
    %2029 = vmatprep.mubr.bf16.mxu0 0
    %2030 = vmatmul.mubr.bf16.gmra.mrb[0].mxu0 %v1478
    %v2031 = vpop.f32.mrb[0].mxu0
    %v2032 = vadd.f32 %v1935, %v2031
    %v2033 = vpop.f32.mrb[0].mxu0
    %v2034 = vpop.f32.mrb[0].mxu0
    %v2035 = vadd.f32 %v1938, %v2034
    %v2036 = vpop.f32.mrb[0].mxu0
    %2037 = vmatprep.mubr.bf16.mxu0 0
    %2038 = vmatmul.mubr.bf16.gmra.mrb[0].mxu0 %v1483
    %v2039 = vpop.f32.mrb[0].mxu0
    %v2040 = vadd.f32 %v1943, %v2039
    %v2041 = vpop.f32.mrb[0].mxu0
    %v2042 = vpop.f32.mrb[0].mxu0
    %v2043 = vadd.f32 %v1946, %v2042
    %v2044 = vpop.f32.mrb[0].mxu0
    %2045 = vmatprep.mubr.bf16.mxu0 0
    %2046 = vmatmul.mubr.bf16.gmra.mrb[0].mxu0 %v1488
    %v2047 = vpop.f32.mrb[0].mxu0
    %v2048 = vadd.f32 %v1951, %v2047
    %v2049 = vpop.f32.mrb[0].mxu0
    %v2050 = vpop.f32.mrb[0].mxu0
    %v2051 = vadd.f32 %v1954, %v2050
    %v2052 = vpop.f32.mrb[0].mxu0
    %2053 = vmatprep.mubr.bf16.mxu0 0
    %2054 = vmatmul.mubr.bf16.gmra.mrb[0].mxu0 %v1493
    %v2055 = vpop.f32.mrb[0].mxu0
    %v2056 = vadd.f32 %v1959, %v2055
    %v2057 = vpop.f32.mrb[0].mxu0
    %v2058 = vpop.f32.mrb[0].mxu0
    %v2059 = vadd.f32 %v1962, %v2058
    %v2060 = vpop.f32.mrb[0].mxu0
    %2061 = vmatprep.mubr.bf16.mxu0 0
    %2062 = vmatmul.mubr.bf16.gmra.mrb[0].mxu0 %v1498
    %v2063 = vpop.f32.mrb[0].mxu0
    %v2064 = vadd.f32 %v1967, %v2063
    %v2065 = vpop.f32.mrb[0].mxu0
    %v2066 = vpop.f32.mrb[0].mxu0
    %v2067 = vadd.f32 %v1970, %v2066
    %v2068 = vpop.f32.mrb[0].mxu0
    %2069 = vdwg.mxu0
    %v2070 = vld [vmem:[%s5] sm:$0x1]
    %v2072 = vlaneseq
    %v2073 = vshrl.u32 %v2072, 7
    %v2074 = vsub.s32 0, %v2073
    %v2075 = vrot.slane %v2070, %v2074
    %v2077 = vmul.f32 %v2008, %v2075
    %v2078 = vmul.f32 %v2011, %v2075
    %v2079 = vmul.f32 %v2016, %v2075
    %v2080 = vmul.f32 %v2019, %v2075
    %v2081 = vmul.f32 %v2024, %v2075
    %v2082 = vmul.f32 %v2027, %v2075
    %v2083 = vmul.f32 %v2032, %v2075
    %v2084 = vmul.f32 %v2035, %v2075
    %v2085 = vmul.f32 %v2040, %v2075
    %v2086 = vmul.f32 %v2043, %v2075
    %v2087 = vmul.f32 %v2048, %v2075
    %v2088 = vmul.f32 %v2051, %v2075
    %v2089 = vmul.f32 %v2056, %v2075
    %v2090 = vmul.f32 %v2059, %v2075
    %v2091 = vmul.f32 %v2064, %v2075
    %v2092 = vmul.f32 %v2067, %v2075
    %v2093 = vld [vmem:[%s6] sm:$0x1]
    %v2095 = vlaneseq
    %v2096 = vshrl.u32 %v2095, 7
    %v2097 = vsub.s32 0, %v2096
    %v2098 = vrot.slane %v2093, %v2097
    %v2100 = vadd.f32 %v2077, %v2098
    %v2101 = vadd.f32 %v2078, %v2098
    %v2102 = vadd.f32 %v2079, %v2098
    %v2103 = vadd.f32 %v2080, %v2098
    %v2104 = vadd.f32 %v2081, %v2098
    %v2105 = vadd.f32 %v2082, %v2098
    %v2106 = vadd.f32 %v2083, %v2098
    %v2107 = vadd.f32 %v2084, %v2098
    %v2108 = vadd.f32 %v2085, %v2098
    %v2109 = vadd.f32 %v2086, %v2098
    %v2110 = vadd.f32 %v2087, %v2098
    %v2111 = vadd.f32 %v2088, %v2098
    %v2112 = vadd.f32 %v2089, %v2098
    %v2113 = vadd.f32 %v2090, %v2098
    %v2114 = vadd.f32 %v2091, %v2098
    %v2115 = vadd.f32 %v2092, %v2098
    %v2116 = vmax.f32 %v2100, 0.0
    %v2117 = vmax.f32 %v2101, 0.0
    %v2118 = vmax.f32 %v2102, 0.0
    %v2119 = vmax.f32 %v2103, 0.0
    %v2120 = vmax.f32 %v2104, 0.0
    %v2121 = vmax.f32 %v2105, 0.0
    %v2122 = vmax.f32 %v2106, 0.0
    %v2123 = vmax.f32 %v2107, 0.0
    %v2124 = vmax.f32 %v2108, 0.0
    %v2125 = vmax.f32 %v2109, 0.0
    %v2126 = vmax.f32 %v2110, 0.0
    %v2127 = vmax.f32 %v2111, 0.0
    %v2128 = vmax.f32 %v2112, 0.0
    %v2129 = vmax.f32 %v2113, 0.0
    %v2130 = vmax.f32 %v2114, 0.0
    %v2131 = vmax.f32 %v2115, 0.0
    %v2132 = vadd.f32 %v736, %v2116
    %v2133 = vadd.f32 %v737, %v2117
    %v2134 = vadd.f32 %v738, %v2118
    %v2135 = vadd.f32 %v739, %v2119
    %v2136 = vadd.f32 %v740, %v2120
    %v2137 = vadd.f32 %v741, %v2121
    %v2138 = vadd.f32 %v742, %v2122
    %v2139 = vadd.f32 %v743, %v2123
    %v2140 = vadd.f32 %v744, %v2124
    %v2141 = vadd.f32 %v745, %v2125
    %v2142 = vadd.f32 %v746, %v2126
    %v2143 = vadd.f32 %v747, %v2127
    %v2144 = vadd.f32 %v748, %v2128
    %v2145 = vadd.f32 %v749, %v2129
    %v2146 = vadd.f32 %v750, %v2130
    %v2147 = vadd.f32 %v751, %v2131
    %v2148 = vpack.c.bf16 %v2133, %v2132
    %v2149 = vpack.c.bf16 %v2135, %v2134
    %v2150 = vpack.c.bf16 %v2137, %v2136
    %v2151 = vpack.c.bf16 %v2139, %v2138
    %v2152 = vpack.c.bf16 %v2141, %v2140
    %v2153 = vpack.c.bf16 %v2143, %v2142
    %v2154 = vpack.c.bf16 %v2145, %v2144
    %v2155 = vpack.c.bf16 %v2147, %v2146
    %v2164 = vunpack.c.l.b16 %v2148
    %v2165 = vunpack.c.h.b16 %v2148
    %v2166 = vunpack.c.l.b16 %v2149
    %v2167 = vunpack.c.h.b16 %v2149
    %v2168 = vunpack.c.l.b16 %v2150
    %v2169 = vunpack.c.h.b16 %v2150
    %v2170 = vunpack.c.l.b16 %v2151
    %v2171 = vunpack.c.h.b16 %v2151
    %v2172 = vunpack.c.l.b16 %v2152
    %v2173 = vunpack.c.h.b16 %v2152
    %v2174 = vunpack.c.l.b16 %v2153
    %v2175 = vunpack.c.h.b16 %v2153
    %v2176 = vunpack.c.l.b16 %v2154
    %v2177 = vunpack.c.h.b16 %v2154
    %v2178 = vunpack.c.l.b16 %v2155
    %v2179 = vunpack.c.h.b16 %v2155
    %v2180 = vpack.c.b16 %v2164, %v2164
    %v2181 = vpack.c.b16 %v2165, %v2165
    %v2182 = vpack.c.b16 %v2166, %v2166
    %v2183 = vpack.c.b16 %v2167, %v2167
    %v2184 = vpack.c.b16 %v2168, %v2168
    %v2185 = vpack.c.b16 %v2169, %v2169
    %v2186 = vpack.c.b16 %v2170, %v2170
    %v2187 = vpack.c.b16 %v2171, %v2171
    %v2188 = vpack.c.b16 %v2172, %v2172
    %v2189 = vpack.c.b16 %v2173, %v2173
    %v2190 = vpack.c.b16 %v2174, %v2174
    %v2191 = vpack.c.b16 %v2175, %v2175
    %v2192 = vpack.c.b16 %v2176, %v2176
    %v2193 = vpack.c.b16 %v2177, %v2177
    %v2194 = vpack.c.b16 %v2178, %v2178
    %v2195 = vpack.c.b16 %v2179, %v2179
    %v2197 = vpack.i.b16 %v2180, %v2180
    %v2199 = vlaneseq
    %v2200 = vshrl.u32 %v2199, 7
    %v2201 = vsub.s32 0, %v2200
    %v2202 = vrot.slane %v2197, %v2201
    %v2204 = vpack.i.b16 %v2181, %v2181
    %v2206 = vlaneseq
    %v2207 = vshrl.u32 %v2206, 7
    %v2208 = vsub.s32 0, %v2207
    %v2209 = vrot.slane %v2204, %v2208
    %v2211 = vpack.i.b16 %v2182, %v2182
    %v2213 = vlaneseq
    %v2214 = vshrl.u32 %v2213, 7
    %v2215 = vsub.s32 0, %v2214
    %v2216 = vrot.slane %v2211, %v2215
    %v2218 = vpack.i.b16 %v2183, %v2183
    %v2220 = vlaneseq
    %v2221 = vshrl.u32 %v2220, 7
    %v2222 = vsub.s32 0, %v2221
    %v2223 = vrot.slane %v2218, %v2222
    %v2225 = vpack.i.b16 %v2184, %v2184
    %v2227 = vlaneseq
    %v2228 = vshrl.u32 %v2227, 7
    %v2229 = vsub.s32 0, %v2228
    %v2230 = vrot.slane %v2225, %v2229
    %v2232 = vpack.i.b16 %v2185, %v2185
    %v2234 = vlaneseq
    %v2235 = vshrl.u32 %v2234, 7
    %v2236 = vsub.s32 0, %v2235
    %v2237 = vrot.slane %v2232, %v2236
    %v2239 = vpack.i.b16 %v2186, %v2186
    %v2241 = vlaneseq
    %v2242 = vshrl.u32 %v2241, 7
    %v2243 = vsub.s32 0, %v2242
    %v2244 = vrot.slane %v2239, %v2243
    %v2246 = vpack.i.b16 %v2187, %v2187
    %v2248 = vlaneseq
    %v2249 = vshrl.u32 %v2248, 7
    %v2250 = vsub.s32 0, %v2249
    %v2251 = vrot.slane %v2246, %v2250
    %v2253 = vpack.i.b16 %v2188, %v2188
    %v2255 = vlaneseq
    %v2256 = vshrl.u32 %v2255, 7
    %v2257 = vsub.s32 0, %v2256
    %v2258 = vrot.slane %v2253, %v2257
    %v2260 = vpack.i.b16 %v2189, %v2189
    %v2262 = vlaneseq
    %v2263 = vshrl.u32 %v2262, 7
    %v2264 = vsub.s32 0, %v2263
    %v2265 = vrot.slane %v2260, %v2264
    %v2267 = vpack.i.b16 %v2190, %v2190
    %v2269 = vlaneseq
    %v2270 = vshrl.u32 %v2269, 7
    %v2271 = vsub.s32 0, %v2270
    %v2272 = vrot.slane %v2267, %v2271
    %v2274 = vpack.i.b16 %v2191, %v2191
    %v2276 = vlaneseq
    %v2277 = vshrl.u32 %v2276, 7
    %v2278 = vsub.s32 0, %v2277
    %v2279 = vrot.slane %v2274, %v2278
    %v2281 = vpack.i.b16 %v2192, %v2192
    %v2283 = vlaneseq
    %v2284 = vshrl.u32 %v2283, 7
    %v2285 = vsub.s32 0, %v2284
    %v2286 = vrot.slane %v2281, %v2285
    %v2288 = vpack.i.b16 %v2193, %v2193
    %v2290 = vlaneseq
    %v2291 = vshrl.u32 %v2290, 7
    %v2292 = vsub.s32 0, %v2291
    %v2293 = vrot.slane %v2288, %v2292
    %v2295 = vpack.i.b16 %v2194, %v2194
    %v2297 = vlaneseq
    %v2298 = vshrl.u32 %v2297, 7
    %v2299 = vsub.s32 0, %v2298
    %v2300 = vrot.slane %v2295, %v2299
    %v2302 = vpack.i.b16 %v2195, %v2195
    %v2304 = vlaneseq
    %v2305 = vshrl.u32 %v2304, 7
    %v2306 = vsub.s32 0, %v2305
    %v2307 = vrot.slane %v2302, %v2306
    %v2308 = vrot.slane %v2180, 6
    %v2309 = vrot.slane %v2181, 6
    %v2310 = vrot.slane %v2182, 6
    %v2311 = vrot.slane %v2183, 6
    %v2312 = vrot.slane %v2184, 6
    %v2313 = vrot.slane %v2185, 6
    %v2314 = vrot.slane %v2186, 6
    %v2315 = vrot.slane %v2187, 6
    %v2316 = vrot.slane %v2188, 6
    %v2317 = vrot.slane %v2189, 6
    %v2318 = vrot.slane %v2190, 6
    %v2319 = vrot.slane %v2191, 6
    %v2320 = vrot.slane %v2192, 6
    %v2321 = vrot.slane %v2193, 6
    %v2322 = vrot.slane %v2194, 6
    %v2323 = vrot.slane %v2195, 6
    %v2326 = vsel %vm928, %v2202, %v2308
    %v2329 = vsel %vm928, %v2209, %v2309
    %v2332 = vsel %vm928, %v2216, %v2310
    %v2335 = vsel %vm928, %v2223, %v2311
    %v2338 = vsel %vm928, %v2230, %v2312
    %v2341 = vsel %vm928, %v2237, %v2313
    %v2344 = vsel %vm928, %v2244, %v2314
    %v2347 = vsel %vm928, %v2251, %v2315
    %v2350 = vsel %vm928, %v2258, %v2316
    %v2353 = vsel %vm928, %v2265, %v2317
    %v2356 = vsel %vm928, %v2272, %v2318
    %v2359 = vsel %vm928, %v2279, %v2319
    %v2362 = vsel %vm928, %v2286, %v2320
    %v2365 = vsel %vm928, %v2293, %v2321
    %v2368 = vsel %vm928, %v2300, %v2322
    %v2371 = vsel %vm928, %v2307, %v2323
    %v2372 = vrot.slane %v2180, 7
    %v2373 = vrot.slane %v2181, 7
    %v2374 = vrot.slane %v2182, 7
    %v2375 = vrot.slane %v2183, 7
    %v2376 = vrot.slane %v2184, 7
    %v2377 = vrot.slane %v2185, 7
    %v2378 = vrot.slane %v2186, 7
    %v2379 = vrot.slane %v2187, 7
    %v2380 = vrot.slane %v2188, 7
    %v2381 = vrot.slane %v2189, 7
    %v2382 = vrot.slane %v2190, 7
    %v2383 = vrot.slane %v2191, 7
    %v2384 = vrot.slane %v2192, 7
    %v2385 = vrot.slane %v2193, 7
    %v2386 = vrot.slane %v2194, 7
    %v2387 = vrot.slane %v2195, 7
    %v2389 = vsel %vm993, %v2202, %v2372
    %v2391 = vsel %vm993, %v2209, %v2373
    %v2393 = vsel %vm993, %v2216, %v2374
    %v2395 = vsel %vm993, %v2223, %v2375
    %v2397 = vsel %vm993, %v2230, %v2376
    %v2399 = vsel %vm993, %v2237, %v2377
    %v2401 = vsel %vm993, %v2244, %v2378
    %v2403 = vsel %vm993, %v2251, %v2379
    %v2405 = vsel %vm993, %v2258, %v2380
    %v2407 = vsel %vm993, %v2265, %v2381
    %v2409 = vsel %vm993, %v2272, %v2382
    %v2411 = vsel %vm993, %v2279, %v2383
    %v2413 = vsel %vm993, %v2286, %v2384
    %v2415 = vsel %vm993, %v2293, %v2385
    %v2417 = vsel %vm993, %v2300, %v2386
    %v2419 = vsel %vm993, %v2307, %v2387
    %v2420 = vshrl.u32 %v2180, 16
    %v2421 = vpack.i.b16 %v2420, %v2420
    %v2423 = vlaneseq
    %v2424 = vshrl.u32 %v2423, 7
    %v2425 = vsub.s32 3, %v2424
    %v2426 = vrot.slane %v2421, %v2425
    %v2427 = vshrl.u32 %v2181, 16
    %v2428 = vpack.i.b16 %v2427, %v2427
    %v2430 = vlaneseq
    %v2431 = vshrl.u32 %v2430, 7
    %v2432 = vsub.s32 3, %v2431
    %v2433 = vrot.slane %v2428, %v2432
    %v2434 = vshrl.u32 %v2182, 16
    %v2435 = vpack.i.b16 %v2434, %v2434
    %v2437 = vlaneseq
    %v2438 = vshrl.u32 %v2437, 7
    %v2439 = vsub.s32 3, %v2438
    %v2440 = vrot.slane %v2435, %v2439
    %v2441 = vshrl.u32 %v2183, 16
    %v2442 = vpack.i.b16 %v2441, %v2441
    %v2444 = vlaneseq
    %v2445 = vshrl.u32 %v2444, 7
    %v2446 = vsub.s32 3, %v2445
    %v2447 = vrot.slane %v2442, %v2446
    %v2448 = vshrl.u32 %v2184, 16
    %v2449 = vpack.i.b16 %v2448, %v2448
    %v2451 = vlaneseq
    %v2452 = vshrl.u32 %v2451, 7
    %v2453 = vsub.s32 3, %v2452
    %v2454 = vrot.slane %v2449, %v2453
    %v2455 = vshrl.u32 %v2185, 16
    %v2456 = vpack.i.b16 %v2455, %v2455
    %v2458 = vlaneseq
    %v2459 = vshrl.u32 %v2458, 7
    %v2460 = vsub.s32 3, %v2459
    %v2461 = vrot.slane %v2456, %v2460
    %v2462 = vshrl.u32 %v2186, 16
    %v2463 = vpack.i.b16 %v2462, %v2462
    %v2465 = vlaneseq
    %v2466 = vshrl.u32 %v2465, 7
    %v2467 = vsub.s32 3, %v2466
    %v2468 = vrot.slane %v2463, %v2467
    %v2469 = vshrl.u32 %v2187, 16
    %v2470 = vpack.i.b16 %v2469, %v2469
    %v2472 = vlaneseq
    %v2473 = vshrl.u32 %v2472, 7
    %v2474 = vsub.s32 3, %v2473
    %v2475 = vrot.slane %v2470, %v2474
    %v2476 = vshrl.u32 %v2188, 16
    %v2477 = vpack.i.b16 %v2476, %v2476
    %v2479 = vlaneseq
    %v2480 = vshrl.u32 %v2479, 7
    %v2481 = vsub.s32 3, %v2480
    %v2482 = vrot.slane %v2477, %v2481
    %v2483 = vshrl.u32 %v2189, 16
    %v2484 = vpack.i.b16 %v2483, %v2483
    %v2486 = vlaneseq
    %v2487 = vshrl.u32 %v2486, 7
    %v2488 = vsub.s32 3, %v2487
    %v2489 = vrot.slane %v2484, %v2488
    %v2490 = vshrl.u32 %v2190, 16
    %v2491 = vpack.i.b16 %v2490, %v2490
    %v2493 = vlaneseq
    %v2494 = vshrl.u32 %v2493, 7
    %v2495 = vsub.s32 3, %v2494
    %v2496 = vrot.slane %v2491, %v2495
    %v2497 = vshrl.u32 %v2191, 16
    %v2498 = vpack.i.b16 %v2497, %v2497
    %v2500 = vlaneseq
    %v2501 = vshrl.u32 %v2500, 7
    %v2502 = vsub.s32 3, %v2501
    %v2503 = vrot.slane %v2498, %v2502
    %v2504 = vshrl.u32 %v2192, 16
    %v2505 = vpack.i.b16 %v2504, %v2504
    %v2507 = vlaneseq
    %v2508 = vshrl.u32 %v2507, 7
    %v2509 = vsub.s32 3, %v2508
    %v2510 = vrot.slane %v2505, %v2509
    %v2511 = vshrl.u32 %v2193, 16
    %v2512 = vpack.i.b16 %v2511, %v2511
    %v2514 = vlaneseq
    %v2515 = vshrl.u32 %v2514, 7
    %v2516 = vsub.s32 3, %v2515
    %v2517 = vrot.slane %v2512, %v2516
    %v2518 = vshrl.u32 %v2194, 16
    %v2519 = vpack.i.b16 %v2518, %v2518
    %v2521 = vlaneseq
    %v2522 = vshrl.u32 %v2521, 7
    %v2523 = vsub.s32 3, %v2522
    %v2524 = vrot.slane %v2519, %v2523
    %v2525 = vshrl.u32 %v2195, 16
    %v2526 = vpack.i.b16 %v2525, %v2525
    %v2528 = vlaneseq
    %v2529 = vshrl.u32 %v2528, 7
    %v2530 = vsub.s32 3, %v2529
    %v2531 = vrot.slane %v2526, %v2530
    %v2532 = vrot.slane %v2180, 1
    %v2533 = vrot.slane %v2181, 1
    %v2534 = vrot.slane %v2182, 1
    %v2535 = vrot.slane %v2183, 1
    %v2536 = vrot.slane %v2184, 1
    %v2537 = vrot.slane %v2185, 1
    %v2538 = vrot.slane %v2186, 1
    %v2539 = vrot.slane %v2187, 1
    %v2540 = vrot.slane %v2188, 1
    %v2541 = vrot.slane %v2189, 1
    %v2542 = vrot.slane %v2190, 1
    %v2543 = vrot.slane %v2191, 1
    %v2544 = vrot.slane %v2192, 1
    %v2545 = vrot.slane %v2193, 1
    %v2546 = vrot.slane %v2194, 1
    %v2547 = vrot.slane %v2195, 1
    %v2550 = vsel %vm1154, %v2532, %v2426
    %v2553 = vsel %vm1154, %v2533, %v2433
    %v2556 = vsel %vm1154, %v2534, %v2440
    %v2559 = vsel %vm1154, %v2535, %v2447
    %v2562 = vsel %vm1154, %v2536, %v2454
    %v2565 = vsel %vm1154, %v2537, %v2461
    %v2568 = vsel %vm1154, %v2538, %v2468
    %v2571 = vsel %vm1154, %v2539, %v2475
    %v2574 = vsel %vm1154, %v2540, %v2482
    %v2577 = vsel %vm1154, %v2541, %v2489
    %v2580 = vsel %vm1154, %v2542, %v2496
    %v2583 = vsel %vm1154, %v2543, %v2503
    %v2586 = vsel %vm1154, %v2544, %v2510
    %v2589 = vsel %vm1154, %v2545, %v2517
    %v2592 = vsel %vm1154, %v2546, %v2524
    %v2595 = vsel %vm1154, %v2547, %v2531
    %v2596 = vrot.slane %v2180, 2
    %v2597 = vrot.slane %v2181, 2
    %v2598 = vrot.slane %v2182, 2
    %v2599 = vrot.slane %v2183, 2
    %v2600 = vrot.slane %v2184, 2
    %v2601 = vrot.slane %v2185, 2
    %v2602 = vrot.slane %v2186, 2
    %v2603 = vrot.slane %v2187, 2
    %v2604 = vrot.slane %v2188, 2
    %v2605 = vrot.slane %v2189, 2
    %v2606 = vrot.slane %v2190, 2
    %v2607 = vrot.slane %v2191, 2
    %v2608 = vrot.slane %v2192, 2
    %v2609 = vrot.slane %v2193, 2
    %v2610 = vrot.slane %v2194, 2
    %v2611 = vrot.slane %v2195, 2
    %v2613 = vsel %vm928, %v2596, %v2426
    %v2615 = vsel %vm928, %v2597, %v2433
    %v2617 = vsel %vm928, %v2598, %v2440
    %v2619 = vsel %vm928, %v2599, %v2447
    %v2621 = vsel %vm928, %v2600, %v2454
    %v2623 = vsel %vm928, %v2601, %v2461
    %v2625 = vsel %vm928, %v2602, %v2468
    %v2627 = vsel %vm928, %v2603, %v2475
    %v2629 = vsel %vm928, %v2604, %v2482
    %v2631 = vsel %vm928, %v2605, %v2489
    %v2633 = vsel %vm928, %v2606, %v2496
    %v2635 = vsel %vm928, %v2607, %v2503
    %v2637 = vsel %vm928, %v2608, %v2510
    %v2639 = vsel %vm928, %v2609, %v2517
    %v2641 = vsel %vm928, %v2610, %v2524
    %v2643 = vsel %vm928, %v2611, %v2531
    %v2708 = vunpack.c.l.b16 %v2326
    %v2709 = vunpack.c.l.b16 %v2389
    %v2710 = vunpack.c.l.b16 %v2550
    %v2711 = vunpack.c.l.b16 %v2613
    %v2712 = vunpack.c.l.b16 %v2329
    %v2713 = vunpack.c.l.b16 %v2391
    %v2714 = vunpack.c.l.b16 %v2553
    %v2715 = vunpack.c.l.b16 %v2615
    %v2716 = vunpack.c.l.b16 %v2332
    %v2717 = vunpack.c.l.b16 %v2393
    %v2718 = vunpack.c.l.b16 %v2556
    %v2719 = vunpack.c.l.b16 %v2617
    %v2720 = vunpack.c.l.b16 %v2335
    %v2721 = vunpack.c.l.b16 %v2395
    %v2722 = vunpack.c.l.b16 %v2559
    %v2723 = vunpack.c.l.b16 %v2619
    %v2724 = vunpack.c.l.b16 %v2338
    %v2725 = vunpack.c.l.b16 %v2397
    %v2726 = vunpack.c.l.b16 %v2562
    %v2727 = vunpack.c.l.b16 %v2621
    %v2728 = vunpack.c.l.b16 %v2341
    %v2729 = vunpack.c.l.b16 %v2399
    %v2730 = vunpack.c.l.b16 %v2565
    %v2731 = vunpack.c.l.b16 %v2623
    %v2732 = vunpack.c.l.b16 %v2344
    %v2733 = vunpack.c.l.b16 %v2401
    %v2734 = vunpack.c.l.b16 %v2568
    %v2735 = vunpack.c.l.b16 %v2625
    %v2736 = vunpack.c.l.b16 %v2347
    %v2737 = vunpack.c.l.b16 %v2403
    %v2738 = vunpack.c.l.b16 %v2571
    %v2739 = vunpack.c.l.b16 %v2627
    %v2740 = vunpack.c.l.b16 %v2350
    %v2741 = vunpack.c.l.b16 %v2405
    %v2742 = vunpack.c.l.b16 %v2574
    %v2743 = vunpack.c.l.b16 %v2629
    %v2744 = vunpack.c.l.b16 %v2353
    %v2745 = vunpack.c.l.b16 %v2407
    %v2746 = vunpack.c.l.b16 %v2577
    %v2747 = vunpack.c.l.b16 %v2631
    %v2748 = vunpack.c.l.b16 %v2356
    %v2749 = vunpack.c.l.b16 %v2409
    %v2750 = vunpack.c.l.b16 %v2580
    %v2751 = vunpack.c.l.b16 %v2633
    %v2752 = vunpack.c.l.b16 %v2359
    %v2753 = vunpack.c.l.b16 %v2411
    %v2754 = vunpack.c.l.b16 %v2583
    %v2755 = vunpack.c.l.b16 %v2635
    %v2756 = vunpack.c.l.b16 %v2362
    %v2757 = vunpack.c.l.b16 %v2413
    %v2758 = vunpack.c.l.b16 %v2586
    %v2759 = vunpack.c.l.b16 %v2637
    %v2760 = vunpack.c.l.b16 %v2365
    %v2761 = vunpack.c.l.b16 %v2415
    %v2762 = vunpack.c.l.b16 %v2589
    %v2763 = vunpack.c.l.b16 %v2639
    %v2764 = vunpack.c.l.b16 %v2368
    %v2765 = vunpack.c.l.b16 %v2417
    %v2766 = vunpack.c.l.b16 %v2592
    %v2767 = vunpack.c.l.b16 %v2641
    %v2768 = vunpack.c.l.b16 %v2371
    %v2769 = vunpack.c.l.b16 %v2419
    %v2770 = vunpack.c.l.b16 %v2595
    %v2771 = vunpack.c.l.b16 %v2643
    %s2772 = scalar_lea.vmem [#allocation4], 320
    %v2773 = vld [vmem:[%s2772] sm:$0xf]
    %v2774 = vld [vmem:[%s2772 + $0x4] sm:$0xf]
    %v2775 = vld [vmem:[%s2772 + $0x8] sm:$0xf]
    %v2776 = vld [vmem:[%s2772 + $0xc] sm:$0xf]
    %v2777 = vld [vmem:[%s2772 + $0x10] sm:$0xf]
    %v2778 = vld [vmem:[%s2772 + $0x14] sm:$0xf]
    %v2779 = vld [vmem:[%s2772 + $0x18] sm:$0xf]
    %v2780 = vld [vmem:[%s2772 + $0x1c] sm:$0xf]
    %v2781 = vld [vmem:[%s2772 + $0x20] sm:$0xf]
    %v2782 = vld [vmem:[%s2772 + $0x24] sm:$0xf]
    %v2783 = vld [vmem:[%s2772 + $0x28] sm:$0xf]
    %v2784 = vld [vmem:[%s2772 + $0x2c] sm:$0xf]
    %v2785 = vld [vmem:[%s2772 + $0x30] sm:$0xf]
    %v2786 = vld [vmem:[%s2772 + $0x34] sm:$0xf]
    %v2787 = vld [vmem:[%s2772 + $0x38] sm:$0xf]
    %v2788 = vld [vmem:[%s2772 + $0x3c] sm:$0xf]
    %v2789 = vld [vmem:[%s2772 + $0x40] sm:$0xf]
    %v2790 = vld [vmem:[%s2772 + $0x44] sm:$0xf]
    %v2791 = vld [vmem:[%s2772 + $0x48] sm:$0xf]
    %v2792 = vld [vmem:[%s2772 + $0x4c] sm:$0xf]
    %v2793 = vld [vmem:[%s2772 + $0x50] sm:$0xf]
    %v2794 = vld [vmem:[%s2772 + $0x54] sm:$0xf]
    %v2795 = vld [vmem:[%s2772 + $0x58] sm:$0xf]
    %v2796 = vld [vmem:[%s2772 + $0x5c] sm:$0xf]
    %v2797 = vld [vmem:[%s2772 + $0x60] sm:$0xf]
    %v2798 = vld [vmem:[%s2772 + $0x64] sm:$0xf]
    %v2799 = vld [vmem:[%s2772 + $0x68] sm:$0xf]
    %v2800 = vld [vmem:[%s2772 + $0x6c] sm:$0xf]
    %v2801 = vld [vmem:[%s2772 + $0x70] sm:$0xf]
    %v2802 = vld [vmem:[%s2772 + $0x74] sm:$0xf]
    %v2803 = vld [vmem:[%s2772 + $0x78] sm:$0xf]
    %v2804 = vld [vmem:[%s2772 + $0x7c] sm:$0xf]
    %v2805 = vld [vmem:[%s2772 + $0x80] sm:$0xf]
    %v2806 = vld [vmem:[%s2772 + $0x84] sm:$0xf]
    %v2807 = vld [vmem:[%s2772 + $0x88] sm:$0xf]
    %v2808 = vld [vmem:[%s2772 + $0x8c] sm:$0xf]
    %v2809 = vld [vmem:[%s2772 + $0x90] sm:$0xf]
    %v2810 = vld [vmem:[%s2772 + $0x94] sm:$0xf]
    %v2811 = vld [vmem:[%s2772 + $0x98] sm:$0xf]
    %v2812 = vld [vmem:[%s2772 + $0x9c] sm:$0xf]
    %v2813 = vld [vmem:[%s2772 + $0xa0] sm:$0xf]
    %v2814 = vld [vmem:[%s2772 + $0xa4] sm:$0xf]
    %v2815 = vld [vmem:[%s2772 + $0xa8] sm:$0xf]
    %v2816 = vld [vmem:[%s2772 + $0xac] sm:$0xf]
    %v2817 = vld [vmem:[%s2772 + $0xb0] sm:$0xf]
    %v2818 = vld [vmem:[%s2772 + $0xb4] sm:$0xf]
    %v2819 = vld [vmem:[%s2772 + $0xb8] sm:$0xf]
    %v2820 = vld [vmem:[%s2772 + $0xbc] sm:$0xf]
    %v2821 = vld [vmem:[%s2772 + $0xc0] sm:$0xf]
    %v2822 = vld [vmem:[%s2772 + $0xc4] sm:$0xf]
    %v2823 = vld [vmem:[%s2772 + $0xc8] sm:$0xf]
    %v2824 = vld [vmem:[%s2772 + $0xcc] sm:$0xf]
    %v2825 = vld [vmem:[%s2772 + $0xd0] sm:$0xf]
    %v2826 = vld [vmem:[%s2772 + $0xd4] sm:$0xf]
    %v2827 = vld [vmem:[%s2772 + $0xd8] sm:$0xf]
    %v2828 = vld [vmem:[%s2772 + $0xdc] sm:$0xf]
    %v2829 = vld [vmem:[%s2772 + $0xe0] sm:$0xf]
    %v2830 = vld [vmem:[%s2772 + $0xe4] sm:$0xf]
    %v2831 = vld [vmem:[%s2772 + $0xe8] sm:$0xf]
    %v2832 = vld [vmem:[%s2772 + $0xec] sm:$0xf]
    %v2833 = vld [vmem:[%s2772 + $0xf0] sm:$0xf]
    %v2834 = vld [vmem:[%s2772 + $0xf4] sm:$0xf]
    %v2835 = vld [vmem:[%s2772 + $0xf8] sm:$0xf]
    %v2836 = vld [vmem:[%s2772 + $0xfc] sm:$0xf]
    %v2837 = vld [vmem:[%s2772 + $0x100] sm:$0xf]
    %v2838 = vld [vmem:[%s2772 + $0x104] sm:$0xf]
    %v2839 = vld [vmem:[%s2772 + $0x108] sm:$0xf]
    %v2840 = vld [vmem:[%s2772 + $0x10c] sm:$0xf]
    %v2841 = vld [vmem:[%s2772 + $0x110] sm:$0xf]
    %v2842 = vld [vmem:[%s2772 + $0x114] sm:$0xf]
    %v2843 = vld [vmem:[%s2772 + $0x118] sm:$0xf]
    %v2844 = vld [vmem:[%s2772 + $0x11c] sm:$0xf]
    %v2845 = vld [vmem:[%s2772 + $0x120] sm:$0xf]
    %v2846 = vld [vmem:[%s2772 + $0x124] sm:$0xf]
    %v2847 = vld [vmem:[%s2772 + $0x128] sm:$0xf]
    %v2848 = vld [vmem:[%s2772 + $0x12c] sm:$0xf]
    %v2849 = vld [vmem:[%s2772 + $0x130] sm:$0xf]
    %v2850 = vld [vmem:[%s2772 + $0x134] sm:$0xf]
    %v2851 = vld [vmem:[%s2772 + $0x138] sm:$0xf]
    %v2852 = vld [vmem:[%s2772 + $0x13c] sm:$0xf]
    %v2853 = vpack.c.b16 %v2712, %v2708
    %v2854 = vpack.c.b16 %v2713, %v2709
    %v2855 = vpack.c.b16 %v2165, %v2164
    %v2856 = vpack.c.b16 %v2714, %v2710
    %v2857 = vpack.c.b16 %v2715, %v2711
    %v2858 = vpack.c.b16 %v2720, %v2716
    %v2859 = vpack.c.b16 %v2721, %v2717
    %v2860 = vpack.c.b16 %v2167, %v2166
    %v2861 = vpack.c.b16 %v2722, %v2718
    %v2862 = vpack.c.b16 %v2723, %v2719
    %v2863 = vpack.c.b16 %v2728, %v2724
    %v2864 = vpack.c.b16 %v2729, %v2725
    %v2865 = vpack.c.b16 %v2169, %v2168
    %v2866 = vpack.c.b16 %v2730, %v2726
    %v2867 = vpack.c.b16 %v2731, %v2727
    %v2868 = vpack.c.b16 %v2736, %v2732
    %v2869 = vpack.c.b16 %v2737, %v2733
    %v2870 = vpack.c.b16 %v2171, %v2170
    %v2871 = vpack.c.b16 %v2738, %v2734
    %v2872 = vpack.c.b16 %v2739, %v2735
    %v2873 = vpack.c.b16 %v2744, %v2740
    %v2874 = vpack.c.b16 %v2745, %v2741
    %v2875 = vpack.c.b16 %v2173, %v2172
    %v2876 = vpack.c.b16 %v2746, %v2742
    %v2877 = vpack.c.b16 %v2747, %v2743
    %v2878 = vpack.c.b16 %v2752, %v2748
    %v2879 = vpack.c.b16 %v2753, %v2749
    %v2880 = vpack.c.b16 %v2175, %v2174
    %v2881 = vpack.c.b16 %v2754, %v2750
    %v2882 = vpack.c.b16 %v2755, %v2751
    %v2883 = vpack.c.b16 %v2760, %v2756
    %v2884 = vpack.c.b16 %v2761, %v2757
    %v2885 = vpack.c.b16 %v2177, %v2176
    %v2886 = vpack.c.b16 %v2762, %v2758
    %v2887 = vpack.c.b16 %v2763, %v2759
    %v2888 = vpack.c.b16 %v2768, %v2764
    %v2889 = vpack.c.b16 %v2769, %v2765
    %v2890 = vpack.c.b16 %v2179, %v2178
    %v2891 = vpack.c.b16 %v2770, %v2766
    %v2892 = vpack.c.b16 %v2771, %v2767
    %v3013 = vunpack.c.l.b16 %v2773
    %v3014 = vunpack.c.l.b16 %v2774
    %v3015 = vunpack.c.l.b16 %v2775
    %v3016 = vunpack.c.l.b16 %v2776
    %v3017 = vunpack.c.l.b16 %v2777
    %v3018 = vunpack.c.l.b16 %v2778
    %v3019 = vunpack.c.l.b16 %v2779
    %v3020 = vunpack.c.l.b16 %v2780
    %v3021 = vunpack.c.l.b16 %v2781
    %v3022 = vunpack.c.l.b16 %v2782
    %v3023 = vunpack.c.l.b16 %v2783
    %v3024 = vunpack.c.l.b16 %v2784
    %v3025 = vunpack.c.l.b16 %v2785
    %v3026 = vunpack.c.l.b16 %v2786
    %v3027 = vunpack.c.l.b16 %v2787
    %v3028 = vunpack.c.l.b16 %v2788
    %v3029 = vunpack.c.l.b16 %v2789
    %v3030 = vunpack.c.l.b16 %v2790
    %v3031 = vunpack.c.l.b16 %v2791
    %v3032 = vunpack.c.l.b16 %v2792
    %v3033 = vunpack.c.l.b16 %v2793
    %v3034 = vunpack.c.l.b16 %v2794
    %v3035 = vunpack.c.l.b16 %v2795
    %v3036 = vunpack.c.l.b16 %v2796
    %v3037 = vunpack.c.l.b16 %v2797
    %v3038 = vunpack.c.l.b16 %v2798
    %v3039 = vunpack.c.l.b16 %v2799
    %v3040 = vunpack.c.l.b16 %v2800
    %v3041 = vunpack.c.l.b16 %v2801
    %v3042 = vunpack.c.l.b16 %v2802
    %v3043 = vunpack.c.l.b16 %v2803
    %v3044 = vunpack.c.l.b16 %v2804
    %v3045 = vunpack.c.l.b16 %v2805
    %v3046 = vunpack.c.l.b16 %v2806
    %v3047 = vunpack.c.l.b16 %v2807
    %v3048 = vunpack.c.l.b16 %v2808
    %v3049 = vunpack.c.l.b16 %v2809
    %v3050 = vunpack.c.l.b16 %v2810
    %v3051 = vunpack.c.l.b16 %v2811
    %v3052 = vunpack.c.l.b16 %v2812
    %v3053 = vunpack.c.l.b16 %v2813
    %v3054 = vunpack.c.l.b16 %v2814
    %v3055 = vunpack.c.l.b16 %v2815
    %v3056 = vunpack.c.l.b16 %v2816
    %v3057 = vunpack.c.l.b16 %v2817
    %v3058 = vunpack.c.l.b16 %v2818
    %v3059 = vunpack.c.l.b16 %v2819
    %v3060 = vunpack.c.l.b16 %v2820
    %v3061 = vunpack.c.l.b16 %v2821
    %v3062 = vunpack.c.l.b16 %v2822
    %v3063 = vunpack.c.l.b16 %v2823
    %v3064 = vunpack.c.l.b16 %v2824
    %v3065 = vunpack.c.l.b16 %v2825
    %v3066 = vunpack.c.l.b16 %v2826
    %v3067 = vunpack.c.l.b16 %v2827
    %v3068 = vunpack.c.l.b16 %v2828
    %v3069 = vunpack.c.l.b16 %v2829
    %v3070 = vunpack.c.l.b16 %v2830
    %v3071 = vunpack.c.l.b16 %v2831
    %v3072 = vunpack.c.l.b16 %v2832
    %v3073 = vunpack.c.l.b16 %v2833
    %v3074 = vunpack.c.l.b16 %v2834
    %v3075 = vunpack.c.l.b16 %v2835
    %v3076 = vunpack.c.l.b16 %v2836
    %v3077 = vunpack.c.l.b16 %v2837
    %v3078 = vunpack.c.l.b16 %v2838
    %v3079 = vunpack.c.l.b16 %v2839
    %v3080 = vunpack.c.l.b16 %v2840
    %v3081 = vunpack.c.l.b16 %v2841
    %v3082 = vunpack.c.l.b16 %v2842
    %v3083 = vunpack.c.l.b16 %v2843
    %v3084 = vunpack.c.l.b16 %v2844
    %v3085 = vunpack.c.l.b16 %v2845
    %v3086 = vunpack.c.l.b16 %v2846
    %v3087 = vunpack.c.l.b16 %v2847
    %v3088 = vunpack.c.l.b16 %v2848
    %v3089 = vunpack.c.l.b16 %v2849
    %v3090 = vunpack.c.l.b16 %v2850
    %v3091 = vunpack.c.l.b16 %v2851
    %v3092 = vunpack.c.l.b16 %v2852
    %v3093 = vpack.c.b16 %v3014, %v3013
    %v3094 = vpack.c.b16 %v3016, %v3015
    %v3095 = vpack.c.b16 %v3018, %v3017
    %v3096 = vpack.c.b16 %v3020, %v3019
    %v3097 = vpack.c.b16 %v3022, %v3021
    %v3098 = vpack.c.b16 %v3024, %v3023
    %v3099 = vpack.c.b16 %v3026, %v3025
    %v3100 = vpack.c.b16 %v3028, %v3027
    %v3101 = vpack.c.b16 %v3030, %v3029
    %v3102 = vpack.c.b16 %v3032, %v3031
    %v3103 = vpack.c.b16 %v3034, %v3033
    %v3104 = vpack.c.b16 %v3036, %v3035
    %v3105 = vpack.c.b16 %v3038, %v3037
    %v3106 = vpack.c.b16 %v3040, %v3039
    %v3107 = vpack.c.b16 %v3042, %v3041
    %v3108 = vpack.c.b16 %v3044, %v3043
    %v3109 = vpack.c.b16 %v3046, %v3045
    %v3110 = vpack.c.b16 %v3048, %v3047
    %v3111 = vpack.c.b16 %v3050, %v3049
    %v3112 = vpack.c.b16 %v3052, %v3051
    %v3113 = vpack.c.b16 %v3054, %v3053
    %v3114 = vpack.c.b16 %v3056, %v3055
    %v3115 = vpack.c.b16 %v3058, %v3057
    %v3116 = vpack.c.b16 %v3060, %v3059
    %v3117 = vpack.c.b16 %v3062, %v3061
    %v3118 = vpack.c.b16 %v3064, %v3063
    %v3119 = vpack.c.b16 %v3066, %v3065
    %v3120 = vpack.c.b16 %v3068, %v3067
    %v3121 = vpack.c.b16 %v3070, %v3069
    %v3122 = vpack.c.b16 %v3072, %v3071
    %v3123 = vpack.c.b16 %v3074, %v3073
    %v3124 = vpack.c.b16 %v3076, %v3075
    %v3125 = vpack.c.b16 %v3078, %v3077
    %v3126 = vpack.c.b16 %v3080, %v3079
    %v3127 = vpack.c.b16 %v3082, %v3081
    %v3128 = vpack.c.b16 %v3084, %v3083
    %v3129 = vpack.c.b16 %v3086, %v3085
    %v3130 = vpack.c.b16 %v3088, %v3087
    %v3131 = vpack.c.b16 %v3090, %v3089
    %v3132 = vpack.c.b16 %v3092, %v3091
    %3173 = vmatprep.subr.bf16.mxu0 0
    %3174 = vmatpush1.bf16.msra.mxu0 %v3093
    %3175 = vmatprep.subr.bf16.mxu0 0
    %3176 = vmatpush1.bf16.msra.mxu0 %v3094
    %3177 = vmatprep.subr.bf16.mxu0 0
    %3178 = vmatpush1.bf16.msra.mxu0 %v3095
    %3179 = vmatprep.subr.bf16.mxu0 0
    %3180 = vmatpush1.bf16.msra.mxu0 %v3096
    %3181 = vmatprep.subr.bf16.mxu0 0
    %3182 = vmatpush1.bf16.msra.mxu0 %v3097
    %3183 = vmatprep.subr.bf16.mxu0 0
    %3184 = vmatpush1.bf16.msra.mxu0 %v3098
    %3185 = vmatprep.subr.bf16.mxu0 0
    %3186 = vmatpush1.bf16.msra.mxu0 %v3099
    %3187 = vmatprep.subr.bf16.mxu0 0
    %3188 = vmatpush1.bf16.msra.mxu0 %v3100
    %3189 = vmatprep.subr.bf16.mxu0 0
    %3190 = vmatpush1.bf16.msra.mxu0 %v3101
    %3191 = vmatprep.subr.bf16.mxu0 0
    %3192 = vmatpush1.bf16.msra.mxu0 %v3102
    %3193 = vmatprep.subr.bf16.mxu0 0
    %3194 = vmatpush1.bf16.msra.mxu0 %v3103
    %3195 = vmatprep.subr.bf16.mxu0 0
    %3196 = vmatpush1.bf16.msra.mxu0 %v3104
    %3197 = vmatprep.subr.bf16.mxu0 0
    %3198 = vmatpush1.bf16.msra.mxu0 %v3105
    %3199 = vmatprep.subr.bf16.mxu0 0
    %3200 = vmatpush1.bf16.msra.mxu0 %v3106
    %3201 = vmatprep.subr.bf16.mxu0 0
    %3202 = vmatpush1.bf16.msra.mxu0 %v3107
    %3203 = vmatprep.subr.bf16.mxu0 0
    %3204 = vmatpush1.bf16.msra.mxu0 %v3108
    %3205 = vmatprep.mubr.bf16.mxu0 %v2854
    %3206 = vmatmul.mubr.bf16.gmra.mrb[0].mxu0 %v2853
    %v3207 = vpop.f32.mrb[0].mxu0
    %v3208 = vadd.f32 0.0, %v3207
    %v3209 = vpop.f32.mrb[0].mxu0
    %v3210 = vpop.f32.mrb[0].mxu0
    %v3211 = vadd.f32 0.0, %v3210
    %v3212 = vpop.f32.mrb[0].mxu0
    %3213 = vmatprep.mubr.bf16.mxu0 %v2859
    %3214 = vmatmul.mubr.bf16.gmra.mrb[0].mxu0 %v2858
    %v3215 = vpop.f32.mrb[0].mxu0
    %v3216 = vadd.f32 0.0, %v3215
    %v3217 = vpop.f32.mrb[0].mxu0
    %v3218 = vpop.f32.mrb[0].mxu0
    %v3219 = vadd.f32 0.0, %v3218
    %v3220 = vpop.f32.mrb[0].mxu0
    %3221 = vmatprep.mubr.bf16.mxu0 %v2864
    %3222 = vmatmul.mubr.bf16.gmra.mrb[0].mxu0 %v2863
    %v3223 = vpop.f32.mrb[0].mxu0
    %v3224 = vadd.f32 0.0, %v3223
    %v3225 = vpop.f32.mrb[0].mxu0
    %v3226 = vpop.f32.mrb[0].mxu0
    %v3227 = vadd.f32 0.0, %v3226
    %v3228 = vpop.f32.mrb[0].mxu0
    %3229 = vmatprep.mubr.bf16.mxu0 %v2869
    %3230 = vmatmul.mubr.bf16.gmra.mrb[0].mxu0 %v2868
    %v3231 = vpop.f32.mrb[0].mxu0
    %v3232 = vadd.f32 0.0, %v3231
    %v3233 = vpop.f32.mrb[0].mxu0
    %v3234 = vpop.f32.mrb[0].mxu0
    %v3235 = vadd.f32 0.0, %v3234
    %v3236 = vpop.f32.mrb[0].mxu0
    %3237 = vmatprep.mubr.bf16.mxu0 %v2874
    %3238 = vmatmul.mubr.bf16.gmra.mrb[0].mxu0 %v2873
    %v3239 = vpop.f32.mrb[0].mxu0
    %v3240 = vadd.f32 0.0, %v3239
    %v3241 = vpop.f32.mrb[0].mxu0
    %v3242 = vpop.f32.mrb[0].mxu0
    %v3243 = vadd.f32 0.0, %v3242
    %v3244 = vpop.f32.mrb[0].mxu0
    %3245 = vmatprep.mubr.bf16.mxu0 %v2879
    %3246 = vmatmul.mubr.bf16.gmra.mrb[0].mxu0 %v2878
    %v3247 = vpop.f32.mrb[0].mxu0
    %v3248 = vadd.f32 0.0, %v3247
    %v3249 = vpop.f32.mrb[0].mxu0
    %v3250 = vpop.f32.mrb[0].mxu0
    %v3251 = vadd.f32 0.0, %v3250
    %v3252 = vpop.f32.mrb[0].mxu0
    %3253 = vmatprep.mubr.bf16.mxu0 %v2884
    %3254 = vmatmul.mubr.bf16.gmra.mrb[0].mxu0 %v2883
    %v3255 = vpop.f32.mrb[0].mxu0
    %v3256 = vadd.f32 0.0, %v3255
    %v3257 = vpop.f32.mrb[0].mxu0
    %v3258 = vpop.f32.mrb[0].mxu0
    %v3259 = vadd.f32 0.0, %v3258
    %v3260 = vpop.f32.mrb[0].mxu0
    %3261 = vmatprep.mubr.bf16.mxu0 %v2889
    %3262 = vmatmul.mubr.bf16.gmra.mrb[0].mxu0 %v2888
    %v3263 = vpop.f32.mrb[0].mxu0
    %v3264 = vadd.f32 0.0, %v3263
    %v3265 = vpop.f32.mrb[0].mxu0
    %v3266 = vpop.f32.mrb[0].mxu0
    %v3267 = vadd.f32 0.0, %v3266
    %v3268 = vpop.f32.mrb[0].mxu0
    %3269 = vdwg.mxu0
    %3270 = vmatprep.subr.bf16.mxu0 0
    %3271 = vmatpush1.bf16.msra.mxu0 %v3109
    %3272 = vmatprep.subr.bf16.mxu0 0
    %3273 = vmatpush1.bf16.msra.mxu0 %v3110
    %3274 = vmatprep.subr.bf16.mxu0 0
    %3275 = vmatpush1.bf16.msra.mxu0 %v3111
    %3276 = vmatprep.subr.bf16.mxu0 0
    %3277 = vmatpush1.bf16.msra.mxu0 %v3112
    %3278 = vmatprep.subr.bf16.mxu0 0
    %3279 = vmatpush1.bf16.msra.mxu0 %v3113
    %3280 = vmatprep.subr.bf16.mxu0 0
    %3281 = vmatpush1.bf16.msra.mxu0 %v3114
    %3282 = vmatprep.subr.bf16.mxu0 0
    %3283 = vmatpush1.bf16.msra.mxu0 %v3115
    %3284 = vmatprep.subr.bf16.mxu0 0
    %3285 = vmatpush1.bf16.msra.mxu0 %v3116
    %3286 = vmatprep.subr.bf16.mxu0 0
    %3287 = vmatpush1.bf16.msra.mxu0 %v3117
    %3288 = vmatprep.subr.bf16.mxu0 0
    %3289 = vmatpush1.bf16.msra.mxu0 %v3118
    %3290 = vmatprep.subr.bf16.mxu0 0
    %3291 = vmatpush1.bf16.msra.mxu0 %v3119
    %3292 = vmatprep.subr.bf16.mxu0 0
    %3293 = vmatpush1.bf16.msra.mxu0 %v3120
    %3294 = vmatprep.subr.bf16.mxu0 0
    %3295 = vmatpush1.bf16.msra.mxu0 %v3121
    %3296 = vmatprep.subr.bf16.mxu0 0
    %3297 = vmatpush1.bf16.msra.mxu0 %v3122
    %3298 = vmatprep.subr.bf16.mxu0 0
    %3299 = vmatpush1.bf16.msra.mxu0 %v3123
    %3300 = vmatprep.subr.bf16.mxu0 0
    %3301 = vmatpush1.bf16.msra.mxu0 %v3124
    %3302 = vmatprep.mubr.bf16.mxu0 %v2856
    %3303 = vmatmul.mubr.bf16.gmra.mrb[0].mxu0 %v2855
    %v3304 = vpop.f32.mrb[0].mxu0
    %v3305 = vadd.f32 %v3208, %v3304
    %v3306 = vpop.f32.mrb[0].mxu0
    %v3307 = vpop.f32.mrb[0].mxu0
    %v3308 = vadd.f32 %v3211, %v3307
    %v3309 = vpop.f32.mrb[0].mxu0
    %3310 = vmatprep.mubr.bf16.mxu0 %v2861
    %3311 = vmatmul.mubr.bf16.gmra.mrb[0].mxu0 %v2860
    %v3312 = vpop.f32.mrb[0].mxu0
    %v3313 = vadd.f32 %v3216, %v3312
    %v3314 = vpop.f32.mrb[0].mxu0
    %v3315 = vpop.f32.mrb[0].mxu0
    %v3316 = vadd.f32 %v3219, %v3315
    %v3317 = vpop.f32.mrb[0].mxu0
    %3318 = vmatprep.mubr.bf16.mxu0 %v2866
    %3319 = vmatmul.mubr.bf16.gmra.mrb[0].mxu0 %v2865
    %v3320 = vpop.f32.mrb[0].mxu0
    %v3321 = vadd.f32 %v3224, %v3320
    %v3322 = vpop.f32.mrb[0].mxu0
    %v3323 = vpop.f32.mrb[0].mxu0
    %v3324 = vadd.f32 %v3227, %v3323
    %v3325 = vpop.f32.mrb[0].mxu0
    %3326 = vmatprep.mubr.bf16.mxu0 %v2871
    %3327 = vmatmul.mubr.bf16.gmra.mrb[0].mxu0 %v2870
    %v3328 = vpop.f32.mrb[0].mxu0
    %v3329 = vadd.f32 %v3232, %v3328
    %v3330 = vpop.f32.mrb[0].mxu0
    %v3331 = vpop.f32.mrb[0].mxu0
    %v3332 = vadd.f32 %v3235, %v3331
    %v3333 = vpop.f32.mrb[0].mxu0
    %3334 = vmatprep.mubr.bf16.mxu0 %v2876
    %3335 = vmatmul.mubr.bf16.gmra.mrb[0].mxu0 %v2875
    %v3336 = vpop.f32.mrb[0].mxu0
    %v3337 = vadd.f32 %v3240, %v3336
    %v3338 = vpop.f32.mrb[0].mxu0
    %v3339 = vpop.f32.mrb[0].mxu0
    %v3340 = vadd.f32 %v3243, %v3339
    %v3341 = vpop.f32.mrb[0].mxu0
    %3342 = vmatprep.mubr.bf16.mxu0 %v2881
    %3343 = vmatmul.mubr.bf16.gmra.mrb[0].mxu0 %v2880
    %v3344 = vpop.f32.mrb[0].mxu0
    %v3345 = vadd.f32 %v3248, %v3344
    %v3346 = vpop.f32.mrb[0].mxu0
    %v3347 = vpop.f32.mrb[0].mxu0
    %v3348 = vadd.f32 %v3251, %v3347
    %v3349 = vpop.f32.mrb[0].mxu0
    %3350 = vmatprep.mubr.bf16.mxu0 %v2886
    %3351 = vmatmul.mubr.bf16.gmra.mrb[0].mxu0 %v2885
    %v3352 = vpop.f32.mrb[0].mxu0
    %v3353 = vadd.f32 %v3256, %v3352
    %v3354 = vpop.f32.mrb[0].mxu0
    %v3355 = vpop.f32.mrb[0].mxu0
    %v3356 = vadd.f32 %v3259, %v3355
    %v3357 = vpop.f32.mrb[0].mxu0
    %3358 = vmatprep.mubr.bf16.mxu0 %v2891
    %3359 = vmatmul.mubr.bf16.gmra.mrb[0].mxu0 %v2890
    %v3360 = vpop.f32.mrb[0].mxu0
    %v3361 = vadd.f32 %v3264, %v3360
    %v3362 = vpop.f32.mrb[0].mxu0
    %v3363 = vpop.f32.mrb[0].mxu0
    %v3364 = vadd.f32 %v3267, %v3363
    %v3365 = vpop.f32.mrb[0].mxu0
    %3366 = vdwg.mxu0
    %3367 = vmatprep.subr.bf16.mxu0 0
    %3368 = vmatpush1.bf16.msra.mxu0 %v3125
    %3369 = vmatprep.subr.bf16.mxu0 0
    %3370 = vmatpush1.bf16.msra.mxu0 %v3126
    %3371 = vmatprep.subr.bf16.mxu0 0
    %3372 = vmatpush1.bf16.msra.mxu0 %v3127
    %3373 = vmatprep.subr.bf16.mxu0 0
    %3374 = vmatpush1.bf16.msra.mxu0 %v3128
    %3375 = vmatprep.subr.bf16.mxu0 0
    %3376 = vmatpush1.bf16.msra.mxu0 %v3129
    %3377 = vmatprep.subr.bf16.mxu0 0
    %3378 = vmatpush1.bf16.msra.mxu0 %v3130
    %3379 = vmatprep.subr.bf16.mxu0 0
    %3380 = vmatpush1.bf16.msra.mxu0 %v3131
    %3381 = vmatprep.subr.bf16.mxu0 0
    %3382 = vmatpush1.bf16.msra.mxu0 %v3132
    %3383 = vmatprep.subr.bf16.mxu0 0
    %3384 = vmatpush1.bf16.msra.mxu0 0
    %3385 = vmatprep.subr.bf16.mxu0 0
    %3386 = vmatpush1.bf16.msra.mxu0 0
    %3387 = vmatprep.subr.bf16.mxu0 0
    %3388 = vmatpush1.bf16.msra.mxu0 0
    %3389 = vmatprep.subr.bf16.mxu0 0
    %3390 = vmatpush1.bf16.msra.mxu0 0
    %3391 = vmatprep.subr.bf16.mxu0 0
    %3392 = vmatpush1.bf16.msra.mxu0 0
    %3393 = vmatprep.subr.bf16.mxu0 0
    %3394 = vmatpush1.bf16.msra.mxu0 0
    %3395 = vmatprep.subr.bf16.mxu0 0
    %3396 = vmatpush1.bf16.msra.mxu0 0
    %3397 = vmatprep.subr.bf16.mxu0 0
    %3398 = vmatpush1.bf16.msra.mxu0 0
    %3399 = vmatprep.mubr.bf16.mxu0 0
    %3400 = vmatmul.mubr.bf16.gmra.mrb[0].mxu0 %v2857
    %v3401 = vpop.f32.mrb[0].mxu0
    %v3402 = vadd.f32 %v3305, %v3401
    %v3403 = vpop.f32.mrb[0].mxu0
    %v3404 = vpop.f32.mrb[0].mxu0
    %v3405 = vadd.f32 %v3308, %v3404
    %v3406 = vpop.f32.mrb[0].mxu0
    %3407 = vmatprep.mubr.bf16.mxu0 0
    %3408 = vmatmul.mubr.bf16.gmra.mrb[0].mxu0 %v2862
    %v3409 = vpop.f32.mrb[0].mxu0
    %v3410 = vadd.f32 %v3313, %v3409
    %v3411 = vpop.f32.mrb[0].mxu0
    %v3412 = vpop.f32.mrb[0].mxu0
    %v3413 = vadd.f32 %v3316, %v3412
    %v3414 = vpop.f32.mrb[0].mxu0
    %3415 = vmatprep.mubr.bf16.mxu0 0
    %3416 = vmatmul.mubr.bf16.gmra.mrb[0].mxu0 %v2867
    %v3417 = vpop.f32.mrb[0].mxu0
    %v3418 = vadd.f32 %v3321, %v3417
    %v3419 = vpop.f32.mrb[0].mxu0
    %v3420 = vpop.f32.mrb[0].mxu0
    %v3421 = vadd.f32 %v3324, %v3420
    %v3422 = vpop.f32.mrb[0].mxu0
    %3423 = vmatprep.mubr.bf16.mxu0 0
    %3424 = vmatmul.mubr.bf16.gmra.mrb[0].mxu0 %v2872
    %v3425 = vpop.f32.mrb[0].mxu0
    %v3426 = vadd.f32 %v3329, %v3425
    %v3427 = vpop.f32.mrb[0].mxu0
    %v3428 = vpop.f32.mrb[0].mxu0
    %v3429 = vadd.f32 %v3332, %v3428
    %v3430 = vpop.f32.mrb[0].mxu0
    %3431 = vmatprep.mubr.bf16.mxu0 0
    %3432 = vmatmul.mubr.bf16.gmra.mrb[0].mxu0 %v2877
    %v3433 = vpop.f32.mrb[0].mxu0
    %v3434 = vadd.f32 %v3337, %v3433
    %v3435 = vpop.f32.mrb[0].mxu0
    %v3436 = vpop.f32.mrb[0].mxu0
    %v3437 = vadd.f32 %v3340, %v3436
    %v3438 = vpop.f32.mrb[0].mxu0
    %3439 = vmatprep.mubr.bf16.mxu0 0
    %3440 = vmatmul.mubr.bf16.gmra.mrb[0].mxu0 %v2882
    %v3441 = vpop.f32.mrb[0].mxu0
    %v3442 = vadd.f32 %v3345, %v3441
    %v3443 = vpop.f32.mrb[0].mxu0
    %v3444 = vpop.f32.mrb[0].mxu0
    %v3445 = vadd.f32 %v3348, %v3444
    %v3446 = vpop.f32.mrb[0].mxu0
    %3447 = vmatprep.mubr.bf16.mxu0 0
    %3448 = vmatmul.mubr.bf16.gmra.mrb[0].mxu0 %v2887
    %v3449 = vpop.f32.mrb[0].mxu0
    %v3450 = vadd.f32 %v3353, %v3449
    %v3451 = vpop.f32.mrb[0].mxu0
    %v3452 = vpop.f32.mrb[0].mxu0
    %v3453 = vadd.f32 %v3356, %v3452
    %v3454 = vpop.f32.mrb[0].mxu0
    %3455 = vmatprep.mubr.bf16.mxu0 0
    %3456 = vmatmul.mubr.bf16.gmra.mrb[0].mxu0 %v2892
    %v3457 = vpop.f32.mrb[0].mxu0
    %v3458 = vadd.f32 %v3361, %v3457
    %v3459 = vpop.f32.mrb[0].mxu0
    %v3460 = vpop.f32.mrb[0].mxu0
    %v3461 = vadd.f32 %v3364, %v3460
    %v3462 = vpop.f32.mrb[0].mxu0
    %3463 = vdwg.mxu0
    %s3464 = scalar_lea.vmem %s5, 1
    %v3465 = vld [vmem:[%s3464] sm:$0x1]
    %v3467 = vlaneseq
    %v3468 = vshrl.u32 %v3467, 7
    %v3469 = vsub.s32 0, %v3468
    %v3470 = vrot.slane %v3465, %v3469
    %v3472 = vmul.f32 %v3402, %v3470
    %v3473 = vmul.f32 %v3405, %v3470
    %v3474 = vmul.f32 %v3410, %v3470
    %v3475 = vmul.f32 %v3413, %v3470
    %v3476 = vmul.f32 %v3418, %v3470
    %v3477 = vmul.f32 %v3421, %v3470
    %v3478 = vmul.f32 %v3426, %v3470
    %v3479 = vmul.f32 %v3429, %v3470
    %v3480 = vmul.f32 %v3434, %v3470
    %v3481 = vmul.f32 %v3437, %v3470
    %v3482 = vmul.f32 %v3442, %v3470
    %v3483 = vmul.f32 %v3445, %v3470
    %v3484 = vmul.f32 %v3450, %v3470
    %v3485 = vmul.f32 %v3453, %v3470
    %v3486 = vmul.f32 %v3458, %v3470
    %v3487 = vmul.f32 %v3461, %v3470
    %s3488 = scalar_lea.vmem %s6, 1
    %v3489 = vld [vmem:[%s3488] sm:$0x1]
    %v3491 = vlaneseq
    %v3492 = vshrl.u32 %v3491, 7
    %v3493 = vsub.s32 0, %v3492
    %v3494 = vrot.slane %v3489, %v3493
    %v3496 = vadd.f32 %v3472, %v3494
    %v3497 = vadd.f32 %v3473, %v3494
    %v3498 = vadd.f32 %v3474, %v3494
    %v3499 = vadd.f32 %v3475, %v3494
    %v3500 = vadd.f32 %v3476, %v3494
    %v3501 = vadd.f32 %v3477, %v3494
    %v3502 = vadd.f32 %v3478, %v3494
    %v3503 = vadd.f32 %v3479, %v3494
    %v3504 = vadd.f32 %v3480, %v3494
    %v3505 = vadd.f32 %v3481, %v3494
    %v3506 = vadd.f32 %v3482, %v3494
    %v3507 = vadd.f32 %v3483, %v3494
    %v3508 = vadd.f32 %v3484, %v3494
    %v3509 = vadd.f32 %v3485, %v3494
    %v3510 = vadd.f32 %v3486, %v3494
    %v3511 = vadd.f32 %v3487, %v3494
    %v3512 = vmax.f32 %v3496, 0.0
    %v3513 = vmax.f32 %v3497, 0.0
    %v3514 = vmax.f32 %v3498, 0.0
    %v3515 = vmax.f32 %v3499, 0.0
    %v3516 = vmax.f32 %v3500, 0.0
    %v3517 = vmax.f32 %v3501, 0.0
    %v3518 = vmax.f32 %v3502, 0.0
    %v3519 = vmax.f32 %v3503, 0.0
    %v3520 = vmax.f32 %v3504, 0.0
    %v3521 = vmax.f32 %v3505, 0.0
    %v3522 = vmax.f32 %v3506, 0.0
    %v3523 = vmax.f32 %v3507, 0.0
    %v3524 = vmax.f32 %v3508, 0.0
    %v3525 = vmax.f32 %v3509, 0.0
    %v3526 = vmax.f32 %v3510, 0.0
    %v3527 = vmax.f32 %v3511, 0.0
    %v3528 = vadd.f32 %v2132, %v3512
    %v3529 = vadd.f32 %v2133, %v3513
    %v3530 = vadd.f32 %v2134, %v3514
    %v3531 = vadd.f32 %v2135, %v3515
    %v3532 = vadd.f32 %v2136, %v3516
    %v3533 = vadd.f32 %v2137, %v3517
    %v3534 = vadd.f32 %v2138, %v3518
    %v3535 = vadd.f32 %v2139, %v3519
    %v3536 = vadd.f32 %v2140, %v3520
    %v3537 = vadd.f32 %v2141, %v3521
    %v3538 = vadd.f32 %v2142, %v3522
    %v3539 = vadd.f32 %v2143, %v3523
    %v3540 = vadd.f32 %v2144, %v3524
    %v3541 = vadd.f32 %v2145, %v3525
    %v3542 = vadd.f32 %v2146, %v3526
    %v3543 = vadd.f32 %v2147, %v3527
    %v3544 = vpack.c.bf16 %v3529, %v3528
    %v3545 = vpack.c.bf16 %v3531, %v3530
    %v3546 = vpack.c.bf16 %v3533, %v3532
    %v3547 = vpack.c.bf16 %v3535, %v3534
    %v3548 = vpack.c.bf16 %v3537, %v3536
    %v3549 = vpack.c.bf16 %v3539, %v3538
    %v3550 = vpack.c.bf16 %v3541, %v3540
    %v3551 = vpack.c.bf16 %v3543, %v3542
    %v3560 = vunpack.c.l.b16 %v3544
    %v3561 = vunpack.c.h.b16 %v3544
    %v3562 = vunpack.c.l.b16 %v3545
    %v3563 = vunpack.c.h.b16 %v3545
    %v3564 = vunpack.c.l.b16 %v3546
    %v3565 = vunpack.c.h.b16 %v3546
    %v3566 = vunpack.c.l.b16 %v3547
    %v3567 = vunpack.c.h.b16 %v3547
    %v3568 = vunpack.c.l.b16 %v3548
    %v3569 = vunpack.c.h.b16 %v3548
    %v3570 = vunpack.c.l.b16 %v3549
    %v3571 = vunpack.c.h.b16 %v3549
    %v3572 = vunpack.c.l.b16 %v3550
    %v3573 = vunpack.c.h.b16 %v3550
    %v3574 = vunpack.c.l.b16 %v3551
    %v3575 = vunpack.c.h.b16 %v3551
    %v3576 = vpack.c.b16 %v3560, %v3560
    %v3577 = vpack.c.b16 %v3561, %v3561
    %v3578 = vpack.c.b16 %v3562, %v3562
    %v3579 = vpack.c.b16 %v3563, %v3563
    %v3580 = vpack.c.b16 %v3564, %v3564
    %v3581 = vpack.c.b16 %v3565, %v3565
    %v3582 = vpack.c.b16 %v3566, %v3566
    %v3583 = vpack.c.b16 %v3567, %v3567
    %v3584 = vpack.c.b16 %v3568, %v3568
    %v3585 = vpack.c.b16 %v3569, %v3569
    %v3586 = vpack.c.b16 %v3570, %v3570
    %v3587 = vpack.c.b16 %v3571, %v3571
    %v3588 = vpack.c.b16 %v3572, %v3572
    %v3589 = vpack.c.b16 %v3573, %v3573
    %v3590 = vpack.c.b16 %v3574, %v3574
    %v3591 = vpack.c.b16 %v3575, %v3575
    %v3592 = vunpack.c.l.b16 %v3576
    %v3593 = vunpack.c.l.b16 %v3577
    %v3594 = vunpack.c.l.b16 %v3578
    %v3595 = vunpack.c.l.b16 %v3579
    %v3596 = vunpack.c.l.b16 %v3580
    %v3597 = vunpack.c.l.b16 %v3581
    %v3598 = vunpack.c.l.b16 %v3582
    %v3599 = vunpack.c.l.b16 %v3583
    %v3600 = vunpack.c.l.b16 %v3584
    %v3601 = vunpack.c.l.b16 %v3585
    %v3602 = vunpack.c.l.b16 %v3586
    %v3603 = vunpack.c.l.b16 %v3587
    %v3604 = vunpack.c.l.b16 %v3588
    %v3605 = vunpack.c.l.b16 %v3589
    %v3606 = vunpack.c.l.b16 %v3590
    %v3607 = vunpack.c.l.b16 %v3591
    %v3608 = vrot.slane %v3593, 7
    %vm3609 = vcmask 1041409
    %v3610 = vsel %vm3609, %v3608, %v3592
    %v3611 = vrot.slane %v3594, 6
    %vm3612 = vcmask 1042434
    %v3613 = vsel %vm3612, %v3611, %v3610
    %v3614 = vrot.slane %v3595, 5
    %vm3615 = vcmask 1043459
    %v3616 = vsel %vm3615, %v3614, %v3613
    %v3617 = vrot.slane %v3596, 4
    %vm3618 = vcmask 1044484
    %v3619 = vsel %vm3618, %v3617, %v3616
    %v3620 = vrot.slane %v3597, 3
    %vm3621 = vcmask 1045509
    %v3622 = vsel %vm3621, %v3620, %v3619
    %v3623 = vrot.slane %v3598, 2
    %vm3624 = vcmask 1046534
    %v3625 = vsel %vm3624, %v3623, %v3622
    %v3626 = vrot.slane %v3599, 1
    %vm3627 = vcmask 1047559
    %v3628 = vsel %vm3627, %v3626, %v3625
    %v3629 = vrot.slane %v3601, 7
    %v3630 = vsel %vm3609, %v3629, %v3600
    %v3631 = vrot.slane %v3602, 6
    %v3632 = vsel %vm3612, %v3631, %v3630
    %v3633 = vrot.slane %v3603, 5
    %v3634 = vsel %vm3615, %v3633, %v3632
    %v3635 = vrot.slane %v3604, 4
    %v3636 = vsel %vm3618, %v3635, %v3634
    %v3637 = vrot.slane %v3605, 3
    %v3638 = vsel %vm3621, %v3637, %v3636
    %v3639 = vrot.slane %v3606, 2
    %v3640 = vsel %vm3624, %v3639, %v3638
    %v3641 = vrot.slane %v3607, 1
    %v3642 = vsel %vm3627, %v3641, %v3640
    %v3643 = vpack.c.b16 %v3642, %v3628
    %v3645 = vrot.slane %v3592, 1
    %v3646 = vsel %vm3609, %v3593, %v3645
    %v3647 = vrot.slane %v3594, 7
    %v3648 = vsel %vm3612, %v3647, %v3646
    %v3649 = vrot.slane %v3595, 6
    %v3650 = vsel %vm3615, %v3649, %v3648
    %v3651 = vrot.slane %v3596, 5
    %v3652 = vsel %vm3618, %v3651, %v3650
    %v3653 = vrot.slane %v3597, 4
    %v3654 = vsel %vm3621, %v3653, %v3652
    %v3655 = vrot.slane %v3598, 3
    %v3656 = vsel %vm3624, %v3655, %v3654
    %v3657 = vrot.slane %v3599, 2
    %v3658 = vsel %vm3627, %v3657, %v3656
    %v3659 = vrot.slane %v3600, 1
    %v3660 = vsel %vm3609, %v3601, %v3659
    %v3661 = vrot.slane %v3602, 7
    %v3662 = vsel %vm3612, %v3661, %v3660
    %v3663 = vrot.slane %v3603, 6
    %v3664 = vsel %vm3615, %v3663, %v3662
    %v3665 = vrot.slane %v3604, 5
    %v3666 = vsel %vm3618, %v3665, %v3664
    %v3667 = vrot.slane %v3605, 4
    %v3668 = vsel %vm3621, %v3667, %v3666
    %v3669 = vrot.slane %v3606, 3
    %v3670 = vsel %vm3624, %v3669, %v3668
    %v3671 = vrot.slane %v3607, 2
    %v3672 = vsel %vm3627, %v3671, %v3670
    %v3673 = vpack.c.b16 %v3672, %v3658
    %v3675 = vrot.slane %v3592, 2
    %v3676 = vrot.slane %v3593, 1
    %v3677 = vsel %vm3609, %v3676, %v3675
    %v3678 = vsel %vm3612, %v3594, %v3677
    %v3679 = vrot.slane %v3595, 7
    %v3680 = vsel %vm3615, %v3679, %v3678
    %v3681 = vrot.slane %v3596, 6
    %v3682 = vsel %vm3618, %v3681, %v3680
    %v3683 = vrot.slane %v3597, 5
    %v3684 = vsel %vm3621, %v3683, %v3682
    %v3685 = vrot.slane %v3598, 4
    %v3686 = vsel %vm3624, %v3685, %v3684
    %v3687 = vrot.slane %v3599, 3
    %v3688 = vsel %vm3627, %v3687, %v3686
    %v3689 = vrot.slane %v3600, 2
    %v3690 = vrot.slane %v3601, 1
    %v3691 = vsel %vm3609, %v3690, %v3689
    %v3692 = vsel %vm3612, %v3602, %v3691
    %v3693 = vrot.slane %v3603, 7
    %v3694 = vsel %vm3615, %v3693, %v3692
    %v3695 = vrot.slane %v3604, 6
    %v3696 = vsel %vm3618, %v3695, %v3694
    %v3697 = vrot.slane %v3605, 5
    %v3698 = vsel %vm3621, %v3697, %v3696
    %v3699 = vrot.slane %v3606, 4
    %v3700 = vsel %vm3624, %v3699, %v3698
    %v3701 = vrot.slane %v3607, 3
    %v3702 = vsel %vm3627, %v3701, %v3700
    %v3703 = vpack.c.b16 %v3702, %v3688
    %v3705 = vrot.slane %v3592, 3
    %v3706 = vrot.slane %v3593, 2
    %v3707 = vsel %vm3609, %v3706, %v3705
    %v3708 = vrot.slane %v3594, 1
    %v3709 = vsel %vm3612, %v3708, %v3707
    %v3710 = vsel %vm3615, %v3595, %v3709
    %v3711 = vrot.slane %v3596, 7
    %v3712 = vsel %vm3618, %v3711, %v3710
    %v3713 = vrot.slane %v3597, 6
    %v3714 = vsel %vm3621, %v3713, %v3712
    %v3715 = vrot.slane %v3598, 5
    %v3716 = vsel %vm3624, %v3715, %v3714
    %v3717 = vrot.slane %v3599, 4
    %v3718 = vsel %vm3627, %v3717, %v3716
    %v3719 = vrot.slane %v3600, 3
    %v3720 = vrot.slane %v3601, 2
    %v3721 = vsel %vm3609, %v3720, %v3719
    %v3722 = vrot.slane %v3602, 1
    %v3723 = vsel %vm3612, %v3722, %v3721
    %v3724 = vsel %vm3615, %v3603, %v3723
    %v3725 = vrot.slane %v3604, 7
    %v3726 = vsel %vm3618, %v3725, %v3724
    %v3727 = vrot.slane %v3605, 6
    %v3728 = vsel %vm3621, %v3727, %v3726
    %v3729 = vrot.slane %v3606, 5
    %v3730 = vsel %vm3624, %v3729, %v3728
    %v3731 = vrot.slane %v3607, 4
    %v3732 = vsel %vm3627, %v3731, %v3730
    %v3733 = vpack.c.b16 %v3732, %v3718
    %v3735 = vrot.slane %v3592, 4
    %v3736 = vrot.slane %v3593, 3
    %v3737 = vsel %vm3609, %v3736, %v3735
    %v3738 = vrot.slane %v3594, 2
    %v3739 = vsel %vm3612, %v3738, %v3737
    %v3740 = vrot.slane %v3595, 1
    %v3741 = vsel %vm3615, %v3740, %v3739
    %v3742 = vsel %vm3618, %v3596, %v3741
    %v3743 = vrot.slane %v3597, 7
    %v3744 = vsel %vm3621, %v3743, %v3742
    %v3745 = vrot.slane %v3598, 6
    %v3746 = vsel %vm3624, %v3745, %v3744
    %v3747 = vrot.slane %v3599, 5
    %v3748 = vsel %vm3627, %v3747, %v3746
    %v3749 = vrot.slane %v3600, 4
    %v3750 = vrot.slane %v3601, 3
    %v3751 = vsel %vm3609, %v3750, %v3749
    %v3752 = vrot.slane %v3602, 2
    %v3753 = vsel %vm3612, %v3752, %v3751
    %v3754 = vrot.slane %v3603, 1
    %v3755 = vsel %vm3615, %v3754, %v3753
    %v3756 = vsel %vm3618, %v3604, %v3755
    %v3757 = vrot.slane %v3605, 7
    %v3758 = vsel %vm3621, %v3757, %v3756
    %v3759 = vrot.slane %v3606, 6
    %v3760 = vsel %vm3624, %v3759, %v3758
    %v3761 = vrot.slane %v3607, 5
    %v3762 = vsel %vm3627, %v3761, %v3760
    %v3763 = vpack.c.b16 %v3762, %v3748
    %v3765 = vrot.slane %v3592, 5
    %v3766 = vrot.slane %v3593, 4
    %v3767 = vsel %vm3609, %v3766, %v3765
    %v3768 = vrot.slane %v3594, 3
    %v3769 = vsel %vm3612, %v3768, %v3767
    %v3770 = vrot.slane %v3595, 2
    %v3771 = vsel %vm3615, %v3770, %v3769
    %v3772 = vrot.slane %v3596, 1
    %v3773 = vsel %vm3618, %v3772, %v3771
    %v3774 = vsel %vm3621, %v3597, %v3773
    %v3775 = vrot.slane %v3598, 7
    %v3776 = vsel %vm3624, %v3775, %v3774
    %v3777 = vrot.slane %v3599, 6
    %v3778 = vsel %vm3627, %v3777, %v3776
    %v3779 = vrot.slane %v3600, 5
    %v3780 = vrot.slane %v3601, 4
    %v3781 = vsel %vm3609, %v3780, %v3779
    %v3782 = vrot.slane %v3602, 3
    %v3783 = vsel %vm3612, %v3782, %v3781
    %v3784 = vrot.slane %v3603, 2
    %v3785 = vsel %vm3615, %v3784, %v3783
    %v3786 = vrot.slane %v3604, 1
    %v3787 = vsel %vm3618, %v3786, %v3785
    %v3788 = vsel %vm3621, %v3605, %v3787
    %v3789 = vrot.slane %v3606, 7
    %v3790 = vsel %vm3624, %v3789, %v3788
    %v3791 = vrot.slane %v3607, 6
    %v3792 = vsel %vm3627, %v3791, %v3790
    %v3793 = vpack.c.b16 %v3792, %v3778
    %v3795 = vrot.slane %v3592, 6
    %v3796 = vrot.slane %v3593, 5
    %v3797 = vsel %vm3609, %v3796, %v3795
    %v3798 = vrot.slane %v3594, 4
    %v3799 = vsel %vm3612, %v3798, %v3797
    %v3800 = vrot.slane %v3595, 3
    %v3801 = vsel %vm3615, %v3800, %v3799
    %v3802 = vrot.slane %v3596, 2
    %v3803 = vsel %vm3618, %v3802, %v3801
    %v3804 = vrot.slane %v3597, 1
    %v3805 = vsel %vm3621, %v3804, %v3803
    %v3806 = vsel %vm3624, %v3598, %v3805
    %v3807 = vrot.slane %v3599, 7
    %v3808 = vsel %vm3627, %v3807, %v3806
    %v3809 = vrot.slane %v3600, 6
    %v3810 = vrot.slane %v3601, 5
    %v3811 = vsel %vm3609, %v3810, %v3809
    %v3812 = vrot.slane %v3602, 4
    %v3813 = vsel %vm3612, %v3812, %v3811
    %v3814 = vrot.slane %v3603, 3
    %v3815 = vsel %vm3615, %v3814, %v3813
    %v3816 = vrot.slane %v3604, 2
    %v3817 = vsel %vm3618, %v3816, %v3815
    %v3818 = vrot.slane %v3605, 1
    %v3819 = vsel %vm3621, %v3818, %v3817
    %v3820 = vsel %vm3624, %v3606, %v3819
    %v3821 = vrot.slane %v3607, 7
    %v3822 = vsel %vm3627, %v3821, %v3820
    %v3823 = vpack.c.b16 %v3822, %v3808
    %v3825 = vrot.slane %v3592, 7
    %v3826 = vrot.slane %v3593, 6
    %v3827 = vsel %vm3609, %v3826, %v3825
    %v3828 = vrot.slane %v3594, 5
    %v3829 = vsel %vm3612, %v3828, %v3827
    %v3830 = vrot.slane %v3595, 4
    %v3831 = vsel %vm3615, %v3830, %v3829
    %v3832 = vrot.slane %v3596, 3
    %v3833 = vsel %vm3618, %v3832, %v3831
    %v3834 = vrot.slane %v3597, 2
    %v3835 = vsel %vm3621, %v3834, %v3833
    %v3836 = vrot.slane %v3598, 1
    %v3837 = vsel %vm3624, %v3836, %v3835
    %v3838 = vsel %vm3627, %v3599, %v3837
    %v3839 = vrot.slane %v3600, 7
    %v3840 = vrot.slane %v3601, 6
    %v3841 = vsel %vm3609, %v3840, %v3839
    %v3842 = vrot.slane %v3602, 5
    %v3843 = vsel %vm3612, %v3842, %v3841
    %v3844 = vrot.slane %v3603, 4
    %v3845 = vsel %vm3615, %v3844, %v3843
    %v3846 = vrot.slane %v3604, 3
    %v3847 = vsel %vm3618, %v3846, %v3845
    %v3848 = vrot.slane %v3605, 2
    %v3849 = vsel %vm3621, %v3848, %v3847
    %v3850 = vrot.slane %v3606, 1
    %v3851 = vsel %vm3624, %v3850, %v3849
    %v3852 = vsel %vm3627, %v3607, %v3851
    %v3853 = vpack.c.b16 %v3852, %v3838
    %v3855 = vld [vmem:[#allocation6] sm:$0xf]
    %v3856 = vld [vmem:[#allocation6 + $0x4] sm:$0xf]
    %v3857 = vld [vmem:[#allocation6 + $0x8] sm:$0xf]
    %v3858 = vld [vmem:[#allocation6 + $0xc] sm:$0xf]
    %v3859 = vld [vmem:[#allocation6 + $0x10] sm:$0xf]
    %v3860 = vld [vmem:[#allocation6 + $0x14] sm:$0xf]
    %v3861 = vld [vmem:[#allocation6 + $0x18] sm:$0xf]
    %v3862 = vld [vmem:[#allocation6 + $0x1c] sm:$0xf]
    %v3863 = vld [vmem:[#allocation6 + $0x20] sm:$0xf]
    %v3864 = vld [vmem:[#allocation6 + $0x24] sm:$0xf]
    %v3865 = vld [vmem:[#allocation6 + $0x28] sm:$0xf]
    %v3866 = vld [vmem:[#allocation6 + $0x2c] sm:$0xf]
    %v3867 = vld [vmem:[#allocation6 + $0x30] sm:$0xf]
    %v3868 = vld [vmem:[#allocation6 + $0x34] sm:$0xf]
    %v3869 = vld [vmem:[#allocation6 + $0x38] sm:$0xf]
    %v3870 = vld [vmem:[#allocation6 + $0x3c] sm:$0xf]
    %v3871 = vld [vmem:[#allocation6 + $0x40] sm:$0xf]
    %v3872 = vld [vmem:[#allocation6 + $0x44] sm:$0xf]
    %v3873 = vld [vmem:[#allocation6 + $0x48] sm:$0xf]
    %v3874 = vld [vmem:[#allocation6 + $0x4c] sm:$0xf]
    %v3875 = vld [vmem:[#allocation6 + $0x50] sm:$0xf]
    %v3876 = vld [vmem:[#allocation6 + $0x54] sm:$0xf]
    %v3877 = vld [vmem:[#allocation6 + $0x58] sm:$0xf]
    %v3878 = vld [vmem:[#allocation6 + $0x5c] sm:$0xf]
    %v3879 = vld [vmem:[#allocation6 + $0x60] sm:$0xf]
    %v3880 = vld [vmem:[#allocation6 + $0x64] sm:$0xf]
    %v3881 = vld [vmem:[#allocation6 + $0x68] sm:$0xf]
    %v3882 = vld [vmem:[#allocation6 + $0x6c] sm:$0xf]
    %v3883 = vld [vmem:[#allocation6 + $0x70] sm:$0xf]
    %v3884 = vld [vmem:[#allocation6 + $0x74] sm:$0xf]
    %v3885 = vld [vmem:[#allocation6 + $0x78] sm:$0xf]
    %v3886 = vld [vmem:[#allocation6 + $0x7c] sm:$0xf]
    %v3887 = vld [vmem:[#allocation6 + $0x80] sm:$0xf]
    %v3888 = vld [vmem:[#allocation6 + $0x84] sm:$0xf]
    %v3889 = vld [vmem:[#allocation6 + $0x88] sm:$0xf]
    %v3890 = vld [vmem:[#allocation6 + $0x8c] sm:$0xf]
    %v3891 = vld [vmem:[#allocation6 + $0x90] sm:$0xf]
    %v3892 = vld [vmem:[#allocation6 + $0x94] sm:$0xf]
    %v3893 = vld [vmem:[#allocation6 + $0x98] sm:$0xf]
    %v3894 = vld [vmem:[#allocation6 + $0x9c] sm:$0xf]
    %v3895 = vld [vmem:[#allocation6 + $0xa0] sm:$0xf]
    %v3896 = vld [vmem:[#allocation6 + $0xa4] sm:$0xf]
    %v3897 = vld [vmem:[#allocation6 + $0xa8] sm:$0xf]
    %v3898 = vld [vmem:[#allocation6 + $0xac] sm:$0xf]
    %v3899 = vld [vmem:[#allocation6 + $0xb0] sm:$0xf]
    %v3900 = vld [vmem:[#allocation6 + $0xb4] sm:$0xf]
    %v3901 = vld [vmem:[#allocation6 + $0xb8] sm:$0xf]
    %v3902 = vld [vmem:[#allocation6 + $0xbc] sm:$0xf]
    %v3903 = vld [vmem:[#allocation6 + $0xc0] sm:$0xf]
    %v3904 = vld [vmem:[#allocation6 + $0xc4] sm:$0xf]
    %v3905 = vld [vmem:[#allocation6 + $0xc8] sm:$0xf]
    %v3906 = vld [vmem:[#allocation6 + $0xcc] sm:$0xf]
    %v3907 = vld [vmem:[#allocation6 + $0xd0] sm:$0xf]
    %v3908 = vld [vmem:[#allocation6 + $0xd4] sm:$0xf]
    %v3909 = vld [vmem:[#allocation6 + $0xd8] sm:$0xf]
    %v3910 = vld [vmem:[#allocation6 + $0xdc] sm:$0xf]
    %v3911 = vld [vmem:[#allocation6 + $0xe0] sm:$0xf]
    %v3912 = vld [vmem:[#allocation6 + $0xe4] sm:$0xf]
    %v3913 = vld [vmem:[#allocation6 + $0xe8] sm:$0xf]
    %v3914 = vld [vmem:[#allocation6 + $0xec] sm:$0xf]
    %v3915 = vld [vmem:[#allocation6 + $0xf0] sm:$0xf]
    %v3916 = vld [vmem:[#allocation6 + $0xf4] sm:$0xf]
    %v3917 = vld [vmem:[#allocation6 + $0xf8] sm:$0xf]
    %v3918 = vld [vmem:[#allocation6 + $0xfc] sm:$0xf]
    %v3919 = vld [vmem:[#allocation6 + $0x100] sm:$0xf]
    %v3920 = vld [vmem:[#allocation6 + $0x104] sm:$0xf]
    %v3921 = vld [vmem:[#allocation6 + $0x108] sm:$0xf]
    %v3922 = vld [vmem:[#allocation6 + $0x10c] sm:$0xf]
    %v3923 = vld [vmem:[#allocation6 + $0x110] sm:$0xf]
    %v3924 = vld [vmem:[#allocation6 + $0x114] sm:$0xf]
    %v3925 = vld [vmem:[#allocation6 + $0x118] sm:$0xf]
    %v3926 = vld [vmem:[#allocation6 + $0x11c] sm:$0xf]
    %v3927 = vld [vmem:[#allocation6 + $0x120] sm:$0xf]
    %v3928 = vld [vmem:[#allocation6 + $0x124] sm:$0xf]
    %v3929 = vld [vmem:[#allocation6 + $0x128] sm:$0xf]
    %v3930 = vld [vmem:[#allocation6 + $0x12c] sm:$0xf]
    %v3931 = vld [vmem:[#allocation6 + $0x130] sm:$0xf]
    %v3932 = vld [vmem:[#allocation6 + $0x134] sm:$0xf]
    %v3933 = vld [vmem:[#allocation6 + $0x138] sm:$0xf]
    %v3934 = vld [vmem:[#allocation6 + $0x13c] sm:$0xf]
    %v3935 = vld [vmem:[#allocation6 + $0x140] sm:$0xf]
    %v3936 = vld [vmem:[#allocation6 + $0x144] sm:$0xf]
    %v3937 = vld [vmem:[#allocation6 + $0x148] sm:$0xf]
    %v3938 = vld [vmem:[#allocation6 + $0x14c] sm:$0xf]
    %v3939 = vld [vmem:[#allocation6 + $0x150] sm:$0xf]
    %v3940 = vld [vmem:[#allocation6 + $0x154] sm:$0xf]
    %v3941 = vld [vmem:[#allocation6 + $0x158] sm:$0xf]
    %v3942 = vld [vmem:[#allocation6 + $0x15c] sm:$0xf]
    %v3943 = vld [vmem:[#allocation6 + $0x160] sm:$0xf]
    %v3944 = vld [vmem:[#allocation6 + $0x164] sm:$0xf]
    %v3945 = vld [vmem:[#allocation6 + $0x168] sm:$0xf]
    %v3946 = vld [vmem:[#allocation6 + $0x16c] sm:$0xf]
    %v3947 = vld [vmem:[#allocation6 + $0x170] sm:$0xf]
    %v3948 = vld [vmem:[#allocation6 + $0x174] sm:$0xf]
    %v3949 = vld [vmem:[#allocation6 + $0x178] sm:$0xf]
    %v3950 = vld [vmem:[#allocation6 + $0x17c] sm:$0xf]
    %v3951 = vld [vmem:[#allocation6 + $0x180] sm:$0xf]
    %v3952 = vld [vmem:[#allocation6 + $0x184] sm:$0xf]
    %v3953 = vld [vmem:[#allocation6 + $0x188] sm:$0xf]
    %v3954 = vld [vmem:[#allocation6 + $0x18c] sm:$0xf]
    %v3955 = vld [vmem:[#allocation6 + $0x190] sm:$0xf]
    %v3956 = vld [vmem:[#allocation6 + $0x194] sm:$0xf]
    %v3957 = vld [vmem:[#allocation6 + $0x198] sm:$0xf]
    %v3958 = vld [vmem:[#allocation6 + $0x19c] sm:$0xf]
    %v3959 = vld [vmem:[#allocation6 + $0x1a0] sm:$0xf]
    %v3960 = vld [vmem:[#allocation6 + $0x1a4] sm:$0xf]
    %v3961 = vld [vmem:[#allocation6 + $0x1a8] sm:$0xf]
    %v3962 = vld [vmem:[#allocation6 + $0x1ac] sm:$0xf]
    %v3963 = vld [vmem:[#allocation6 + $0x1b0] sm:$0xf]
    %v3964 = vld [vmem:[#allocation6 + $0x1b4] sm:$0xf]
    %v3965 = vld [vmem:[#allocation6 + $0x1b8] sm:$0xf]
    %v3966 = vld [vmem:[#allocation6 + $0x1bc] sm:$0xf]
    %v3967 = vld [vmem:[#allocation6 + $0x1c0] sm:$0xf]
    %v3968 = vld [vmem:[#allocation6 + $0x1c4] sm:$0xf]
    %v3969 = vld [vmem:[#allocation6 + $0x1c8] sm:$0xf]
    %v3970 = vld [vmem:[#allocation6 + $0x1cc] sm:$0xf]
    %v3971 = vld [vmem:[#allocation6 + $0x1d0] sm:$0xf]
    %v3972 = vld [vmem:[#allocation6 + $0x1d4] sm:$0xf]
    %v3973 = vld [vmem:[#allocation6 + $0x1d8] sm:$0xf]
    %v3974 = vld [vmem:[#allocation6 + $0x1dc] sm:$0xf]
    %v3975 = vld [vmem:[#allocation6 + $0x1e0] sm:$0xf]
    %v3976 = vld [vmem:[#allocation6 + $0x1e4] sm:$0xf]
    %v3977 = vld [vmem:[#allocation6 + $0x1e8] sm:$0xf]
    %v3978 = vld [vmem:[#allocation6 + $0x1ec] sm:$0xf]
    %v3979 = vld [vmem:[#allocation6 + $0x1f0] sm:$0xf]
    %v3980 = vld [vmem:[#allocation6 + $0x1f4] sm:$0xf]
    %v3981 = vld [vmem:[#allocation6 + $0x1f8] sm:$0xf]
    %v3982 = vld [vmem:[#allocation6 + $0x1fc] sm:$0xf]
    %v3983 = vld [vmem:[%s8] sm:$0x1]
    %v3985 = vlaneseq
    %v3986 = vshrl.u32 %v3985, 7
    %v3987 = vsub.s32 0, %v3986
    %v3988 = vrot.slane %v3983, %v3987
    %v4118 = vunpack.c.l.b16 %v3855
    %v4119 = vunpack.c.l.b16 %v3856
    %v4120 = vunpack.c.l.b16 %v3857
    %v4121 = vunpack.c.l.b16 %v3858
    %v4122 = vunpack.c.l.b16 %v3859
    %v4123 = vunpack.c.l.b16 %v3860
    %v4124 = vunpack.c.l.b16 %v3861
    %v4125 = vunpack.c.l.b16 %v3862
    %v4126 = vunpack.c.l.b16 %v3863
    %v4127 = vunpack.c.l.b16 %v3864
    %v4128 = vunpack.c.l.b16 %v3865
    %v4129 = vunpack.c.l.b16 %v3866
    %v4130 = vunpack.c.l.b16 %v3867
    %v4131 = vunpack.c.l.b16 %v3868
    %v4132 = vunpack.c.l.b16 %v3869
    %v4133 = vunpack.c.l.b16 %v3870
    %v4134 = vunpack.c.l.b16 %v3871
    %v4135 = vunpack.c.l.b16 %v3872
    %v4136 = vunpack.c.l.b16 %v3873
    %v4137 = vunpack.c.l.b16 %v3874
    %v4138 = vunpack.c.l.b16 %v3875
    %v4139 = vunpack.c.l.b16 %v3876
    %v4140 = vunpack.c.l.b16 %v3877
    %v4141 = vunpack.c.l.b16 %v3878
    %v4142 = vunpack.c.l.b16 %v3879
    %v4143 = vunpack.c.l.b16 %v3880
    %v4144 = vunpack.c.l.b16 %v3881
    %v4145 = vunpack.c.l.b16 %v3882
    %v4146 = vunpack.c.l.b16 %v3883
    %v4147 = vunpack.c.l.b16 %v3884
    %v4148 = vunpack.c.l.b16 %v3885
    %v4149 = vunpack.c.l.b16 %v3886
    %v4150 = vunpack.c.l.b16 %v3887
    %v4151 = vunpack.c.l.b16 %v3888
    %v4152 = vunpack.c.l.b16 %v3889
    %v4153 = vunpack.c.l.b16 %v3890
    %v4154 = vunpack.c.l.b16 %v3891
    %v4155 = vunpack.c.l.b16 %v3892
    %v4156 = vunpack.c.l.b16 %v3893
    %v4157 = vunpack.c.l.b16 %v3894
    %v4158 = vunpack.c.l.b16 %v3895
    %v4159 = vunpack.c.l.b16 %v3896
    %v4160 = vunpack.c.l.b16 %v3897
    %v4161 = vunpack.c.l.b16 %v3898
    %v4162 = vunpack.c.l.b16 %v3899
    %v4163 = vunpack.c.l.b16 %v3900
    %v4164 = vunpack.c.l.b16 %v3901
    %v4165 = vunpack.c.l.b16 %v3902
    %v4166 = vunpack.c.l.b16 %v3903
    %v4167 = vunpack.c.l.b16 %v3904
    %v4168 = vunpack.c.l.b16 %v3905
    %v4169 = vunpack.c.l.b16 %v3906
    %v4170 = vunpack.c.l.b16 %v3907
    %v4171 = vunpack.c.l.b16 %v3908
    %v4172 = vunpack.c.l.b16 %v3909
    %v4173 = vunpack.c.l.b16 %v3910
    %v4174 = vunpack.c.l.b16 %v3911
    %v4175 = vunpack.c.l.b16 %v3912
    %v4176 = vunpack.c.l.b16 %v3913
    %v4177 = vunpack.c.l.b16 %v3914
    %v4178 = vunpack.c.l.b16 %v3915
    %v4179 = vunpack.c.l.b16 %v3916
    %v4180 = vunpack.c.l.b16 %v3917
    %v4181 = vunpack.c.l.b16 %v3918
    %v4182 = vunpack.c.l.b16 %v3919
    %v4183 = vunpack.c.l.b16 %v3920
    %v4184 = vunpack.c.l.b16 %v3921
    %v4185 = vunpack.c.l.b16 %v3922
    %v4186 = vunpack.c.l.b16 %v3923
    %v4187 = vunpack.c.l.b16 %v3924
    %v4188 = vunpack.c.l.b16 %v3925
    %v4189 = vunpack.c.l.b16 %v3926
    %v4190 = vunpack.c.l.b16 %v3927
    %v4191 = vunpack.c.l.b16 %v3928
    %v4192 = vunpack.c.l.b16 %v3929
    %v4193 = vunpack.c.l.b16 %v3930
    %v4194 = vunpack.c.l.b16 %v3931
    %v4195 = vunpack.c.l.b16 %v3932
    %v4196 = vunpack.c.l.b16 %v3933
    %v4197 = vunpack.c.l.b16 %v3934
    %v4198 = vunpack.c.l.b16 %v3935
    %v4199 = vunpack.c.l.b16 %v3936
    %v4200 = vunpack.c.l.b16 %v3937
    %v4201 = vunpack.c.l.b16 %v3938
    %v4202 = vunpack.c.l.b16 %v3939
    %v4203 = vunpack.c.l.b16 %v3940
    %v4204 = vunpack.c.l.b16 %v3941
    %v4205 = vunpack.c.l.b16 %v3942
    %v4206 = vunpack.c.l.b16 %v3943
    %v4207 = vunpack.c.l.b16 %v3944
    %v4208 = vunpack.c.l.b16 %v3945
    %v4209 = vunpack.c.l.b16 %v3946
    %v4210 = vunpack.c.l.b16 %v3947
    %v4211 = vunpack.c.l.b16 %v3948
    %v4212 = vunpack.c.l.b16 %v3949
    %v4213 = vunpack.c.l.b16 %v3950
    %v4214 = vunpack.c.l.b16 %v3951
    %v4215 = vunpack.c.l.b16 %v3952
    %v4216 = vunpack.c.l.b16 %v3953
    %v4217 = vunpack.c.l.b16 %v3954
    %v4218 = vunpack.c.l.b16 %v3955
    %v4219 = vunpack.c.l.b16 %v3956
    %v4220 = vunpack.c.l.b16 %v3957
    %v4221 = vunpack.c.l.b16 %v3958
    %v4222 = vunpack.c.l.b16 %v3959
    %v4223 = vunpack.c.l.b16 %v3960
    %v4224 = vunpack.c.l.b16 %v3961
    %v4225 = vunpack.c.l.b16 %v3962
    %v4226 = vunpack.c.l.b16 %v3963
    %v4227 = vunpack.c.l.b16 %v3964
    %v4228 = vunpack.c.l.b16 %v3965
    %v4229 = vunpack.c.l.b16 %v3966
    %v4230 = vunpack.c.l.b16 %v3967
    %v4231 = vunpack.c.l.b16 %v3968
    %v4232 = vunpack.c.l.b16 %v3969
    %v4233 = vunpack.c.l.b16 %v3970
    %v4234 = vunpack.c.l.b16 %v3971
    %v4235 = vunpack.c.l.b16 %v3972
    %v4236 = vunpack.c.l.b16 %v3973
    %v4237 = vunpack.c.l.b16 %v3974
    %v4238 = vunpack.c.l.b16 %v3975
    %v4239 = vunpack.c.l.b16 %v3976
    %v4240 = vunpack.c.l.b16 %v3977
    %v4241 = vunpack.c.l.b16 %v3978
    %v4242 = vunpack.c.l.b16 %v3979
    %v4243 = vunpack.c.l.b16 %v3980
    %v4244 = vunpack.c.l.b16 %v3981
    %v4245 = vunpack.c.l.b16 %v3982
    %v4246 = vpack.c.b16 %v4119, %v4118
    %v4247 = vpack.c.b16 %v4121, %v4120
    %v4248 = vpack.c.b16 %v4123, %v4122
    %v4249 = vpack.c.b16 %v4125, %v4124
    %v4250 = vpack.c.b16 %v4127, %v4126
    %v4251 = vpack.c.b16 %v4129, %v4128
    %v4252 = vpack.c.b16 %v4131, %v4130
    %v4253 = vpack.c.b16 %v4133, %v4132
    %v4254 = vpack.c.b16 %v4135, %v4134
    %v4255 = vpack.c.b16 %v4137, %v4136
    %v4256 = vpack.c.b16 %v4139, %v4138
    %v4257 = vpack.c.b16 %v4141, %v4140
    %v4258 = vpack.c.b16 %v4143, %v4142
    %v4259 = vpack.c.b16 %v4145, %v4144
    %v4260 = vpack.c.b16 %v4147, %v4146
    %v4261 = vpack.c.b16 %v4149, %v4148
    %v4262 = vpack.c.b16 %v4151, %v4150
    %v4263 = vpack.c.b16 %v4153, %v4152
    %v4264 = vpack.c.b16 %v4155, %v4154
    %v4265 = vpack.c.b16 %v4157, %v4156
    %v4266 = vpack.c.b16 %v4159, %v4158
    %v4267 = vpack.c.b16 %v4161, %v4160
    %v4268 = vpack.c.b16 %v4163, %v4162
    %v4269 = vpack.c.b16 %v4165, %v4164
    %v4270 = vpack.c.b16 %v4167, %v4166
    %v4271 = vpack.c.b16 %v4169, %v4168
    %v4272 = vpack.c.b16 %v4171, %v4170
    %v4273 = vpack.c.b16 %v4173, %v4172
    %v4274 = vpack.c.b16 %v4175, %v4174
    %v4275 = vpack.c.b16 %v4177, %v4176
    %v4276 = vpack.c.b16 %v4179, %v4178
    %v4277 = vpack.c.b16 %v4181, %v4180
    %v4278 = vpack.c.b16 %v4183, %v4182
    %v4279 = vpack.c.b16 %v4185, %v4184
    %v4280 = vpack.c.b16 %v4187, %v4186
    %v4281 = vpack.c.b16 %v4189, %v4188
    %v4282 = vpack.c.b16 %v4191, %v4190
    %v4283 = vpack.c.b16 %v4193, %v4192
    %v4284 = vpack.c.b16 %v4195, %v4194
    %v4285 = vpack.c.b16 %v4197, %v4196
    %v4286 = vpack.c.b16 %v4199, %v4198
    %v4287 = vpack.c.b16 %v4201, %v4200
    %v4288 = vpack.c.b16 %v4203, %v4202
    %v4289 = vpack.c.b16 %v4205, %v4204
    %v4290 = vpack.c.b16 %v4207, %v4206
    %v4291 = vpack.c.b16 %v4209, %v4208
    %v4292 = vpack.c.b16 %v4211, %v4210
    %v4293 = vpack.c.b16 %v4213, %v4212
    %v4294 = vpack.c.b16 %v4215, %v4214
    %v4295 = vpack.c.b16 %v4217, %v4216
    %v4296 = vpack.c.b16 %v4219, %v4218
    %v4297 = vpack.c.b16 %v4221, %v4220
    %v4298 = vpack.c.b16 %v4223, %v4222
    %v4299 = vpack.c.b16 %v4225, %v4224
    %v4300 = vpack.c.b16 %v4227, %v4226
    %v4301 = vpack.c.b16 %v4229, %v4228
    %v4302 = vpack.c.b16 %v4231, %v4230
    %v4303 = vpack.c.b16 %v4233, %v4232
    %v4304 = vpack.c.b16 %v4235, %v4234
    %v4305 = vpack.c.b16 %v4237, %v4236
    %v4306 = vpack.c.b16 %v4239, %v4238
    %v4307 = vpack.c.b16 %v4241, %v4240
    %v4308 = vpack.c.b16 %v4243, %v4242
    %v4309 = vpack.c.b16 %v4245, %v4244
    %4374 = vmatprep.subr.bf16.mxu0 0
    %4375 = vmatpush1.bf16.msra.mxu0 %v4246
    %4376 = vmatprep.subr.bf16.mxu0 0
    %4377 = vmatpush1.bf16.msra.mxu0 %v4247
    %4378 = vmatprep.subr.bf16.mxu0 0
    %4379 = vmatpush1.bf16.msra.mxu0 %v4248
    %4380 = vmatprep.subr.bf16.mxu0 0
    %4381 = vmatpush1.bf16.msra.mxu0 %v4249
    %4382 = vmatprep.subr.bf16.mxu0 0
    %4383 = vmatpush1.bf16.msra.mxu0 %v4250
    %4384 = vmatprep.subr.bf16.mxu0 0
    %4385 = vmatpush1.bf16.msra.mxu0 %v4251
    %4386 = vmatprep.subr.bf16.mxu0 0
    %4387 = vmatpush1.bf16.msra.mxu0 %v4252
    %4388 = vmatprep.subr.bf16.mxu0 0
    %4389 = vmatpush1.bf16.msra.mxu0 %v4253
    %4390 = vmatprep.subr.bf16.mxu0 0
    %4391 = vmatpush1.bf16.msra.mxu0 %v4254
    %4392 = vmatprep.subr.bf16.mxu0 0
    %4393 = vmatpush1.bf16.msra.mxu0 %v4255
    %4394 = vmatprep.subr.bf16.mxu0 0
    %4395 = vmatpush1.bf16.msra.mxu0 %v4256
    %4396 = vmatprep.subr.bf16.mxu0 0
    %4397 = vmatpush1.bf16.msra.mxu0 %v4257
    %4398 = vmatprep.subr.bf16.mxu0 0
    %4399 = vmatpush1.bf16.msra.mxu0 %v4258
    %4400 = vmatprep.subr.bf16.mxu0 0
    %4401 = vmatpush1.bf16.msra.mxu0 %v4259
    %4402 = vmatprep.subr.bf16.mxu0 0
    %4403 = vmatpush1.bf16.msra.mxu0 %v4260
    %4404 = vmatprep.subr.bf16.mxu0 0
    %4405 = vmatpush1.bf16.msra.mxu0 %v4261
    %4406 = vmatprep.mubr.bf16.mxu0 %v3673
    %4407 = vmatmul.mubr.bf16.gmra.mrb[0].mxu0 %v3643
    %v4408 = vpop.f32.mrb[0].mxu0
    %v4409 = vadd.f32 %v3988, %v4408
    %v4410 = vpop.f32.mrb[0].mxu0
    %v4411 = vpop.f32.mrb[0].mxu0
    %v4412 = vadd.f32 %v3988, %v4411
    %v4413 = vpop.f32.mrb[0].mxu0
    %4414 = vdwg.mxu0
    %4415 = vmatprep.subr.bf16.mxu0 0
    %4416 = vmatpush1.bf16.msra.mxu0 %v4262
    %4417 = vmatprep.subr.bf16.mxu0 0
    %4418 = vmatpush1.bf16.msra.mxu0 %v4263
    %4419 = vmatprep.subr.bf16.mxu0 0
    %4420 = vmatpush1.bf16.msra.mxu0 %v4264
    %4421 = vmatprep.subr.bf16.mxu0 0
    %4422 = vmatpush1.bf16.msra.mxu0 %v4265
    %4423 = vmatprep.subr.bf16.mxu0 0
    %4424 = vmatpush1.bf16.msra.mxu0 %v4266
    %4425 = vmatprep.subr.bf16.mxu0 0
    %4426 = vmatpush1.bf16.msra.mxu0 %v4267
    %4427 = vmatprep.subr.bf16.mxu0 0
    %4428 = vmatpush1.bf16.msra.mxu0 %v4268
    %4429 = vmatprep.subr.bf16.mxu0 0
    %4430 = vmatpush1.bf16.msra.mxu0 %v4269
    %4431 = vmatprep.subr.bf16.mxu0 0
    %4432 = vmatpush1.bf16.msra.mxu0 %v4270
    %4433 = vmatprep.subr.bf16.mxu0 0
    %4434 = vmatpush1.bf16.msra.mxu0 %v4271
    %4435 = vmatprep.subr.bf16.mxu0 0
    %4436 = vmatpush1.bf16.msra.mxu0 %v4272
    %4437 = vmatprep.subr.bf16.mxu0 0
    %4438 = vmatpush1.bf16.msra.mxu0 %v4273
    %4439 = vmatprep.subr.bf16.mxu0 0
    %4440 = vmatpush1.bf16.msra.mxu0 %v4274
    %4441 = vmatprep.subr.bf16.mxu0 0
    %4442 = vmatpush1.bf16.msra.mxu0 %v4275
    %4443 = vmatprep.subr.bf16.mxu0 0
    %4444 = vmatpush1.bf16.msra.mxu0 %v4276
    %4445 = vmatprep.subr.bf16.mxu0 0
    %4446 = vmatpush1.bf16.msra.mxu0 %v4277
    %4447 = vmatprep.mubr.bf16.mxu0 %v3733
    %4448 = vmatmul.mubr.bf16.gmra.mrb[0].mxu0 %v3703
    %v4449 = vpop.f32.mrb[0].mxu0
    %v4450 = vadd.f32 %v4409, %v4449
    %v4451 = vpop.f32.mrb[0].mxu0
    %v4452 = vpop.f32.mrb[0].mxu0
    %v4453 = vadd.f32 %v4412, %v4452
    %v4454 = vpop.f32.mrb[0].mxu0
    %4455 = vdwg.mxu0
    %4456 = vmatprep.subr.bf16.mxu0 0
    %4457 = vmatpush1.bf16.msra.mxu0 %v4278
    %4458 = vmatprep.subr.bf16.mxu0 0
    %4459 = vmatpush1.bf16.msra.mxu0 %v4279
    %4460 = vmatprep.subr.bf16.mxu0 0
    %4461 = vmatpush1.bf16.msra.mxu0 %v4280
    %4462 = vmatprep.subr.bf16.mxu0 0
    %4463 = vmatpush1.bf16.msra.mxu0 %v4281
    %4464 = vmatprep.subr.bf16.mxu0 0
    %4465 = vmatpush1.bf16.msra.mxu0 %v4282
    %4466 = vmatprep.subr.bf16.mxu0 0
    %4467 = vmatpush1.bf16.msra.mxu0 %v4283
    %4468 = vmatprep.subr.bf16.mxu0 0
    %4469 = vmatpush1.bf16.msra.mxu0 %v4284
    %4470 = vmatprep.subr.bf16.mxu0 0
    %4471 = vmatpush1.bf16.msra.mxu0 %v4285
    %4472 = vmatprep.subr.bf16.mxu0 0
    %4473 = vmatpush1.bf16.msra.mxu0 %v4286
    %4474 = vmatprep.subr.bf16.mxu0 0
    %4475 = vmatpush1.bf16.msra.mxu0 %v4287
    %4476 = vmatprep.subr.bf16.mxu0 0
    %4477 = vmatpush1.bf16.msra.mxu0 %v4288
    %4478 = vmatprep.subr.bf16.mxu0 0
    %4479 = vmatpush1.bf16.msra.mxu0 %v4289
    %4480 = vmatprep.subr.bf16.mxu0 0
    %4481 = vmatpush1.bf16.msra.mxu0 %v4290
    %4482 = vmatprep.subr.bf16.mxu0 0
    %4483 = vmatpush1.bf16.msra.mxu0 %v4291
    %4484 = vmatprep.subr.bf16.mxu0 0
    %4485 = vmatpush1.bf16.msra.mxu0 %v4292
    %4486 = vmatprep.subr.bf16.mxu0 0
    %4487 = vmatpush1.bf16.msra.mxu0 %v4293
    %4488 = vmatprep.mubr.bf16.mxu0 %v3793
    %4489 = vmatmul.mubr.bf16.gmra.mrb[0].mxu0 %v3763
    %v4490 = vpop.f32.mrb[0].mxu0
    %v4491 = vadd.f32 %v4450, %v4490
    %v4492 = vpop.f32.mrb[0].mxu0
    %v4493 = vpop.f32.mrb[0].mxu0
    %v4494 = vadd.f32 %v4453, %v4493
    %v4495 = vpop.f32.mrb[0].mxu0
    %4496 = vdwg.mxu0
    %4497 = vmatprep.subr.bf16.mxu0 0
    %4498 = vmatpush1.bf16.msra.mxu0 %v4294
    %4499 = vmatprep.subr.bf16.mxu0 0
    %4500 = vmatpush1.bf16.msra.mxu0 %v4295
    %4501 = vmatprep.subr.bf16.mxu0 0
    %4502 = vmatpush1.bf16.msra.mxu0 %v4296
    %4503 = vmatprep.subr.bf16.mxu0 0
    %4504 = vmatpush1.bf16.msra.mxu0 %v4297
    %4505 = vmatprep.subr.bf16.mxu0 0
    %4506 = vmatpush1.bf16.msra.mxu0 %v4298
    %4507 = vmatprep.subr.bf16.mxu0 0
    %4508 = vmatpush1.bf16.msra.mxu0 %v4299
    %4509 = vmatprep.subr.bf16.mxu0 0
    %4510 = vmatpush1.bf16.msra.mxu0 %v4300
    %4511 = vmatprep.subr.bf16.mxu0 0
    %4512 = vmatpush1.bf16.msra.mxu0 %v4301
    %4513 = vmatprep.subr.bf16.mxu0 0
    %4514 = vmatpush1.bf16.msra.mxu0 %v4302
    %4515 = vmatprep.subr.bf16.mxu0 0
    %4516 = vmatpush1.bf16.msra.mxu0 %v4303
    %4517 = vmatprep.subr.bf16.mxu0 0
    %4518 = vmatpush1.bf16.msra.mxu0 %v4304
    %4519 = vmatprep.subr.bf16.mxu0 0
    %4520 = vmatpush1.bf16.msra.mxu0 %v4305
    %4521 = vmatprep.subr.bf16.mxu0 0
    %4522 = vmatpush1.bf16.msra.mxu0 %v4306
    %4523 = vmatprep.subr.bf16.mxu0 0
    %4524 = vmatpush1.bf16.msra.mxu0 %v4307
    %4525 = vmatprep.subr.bf16.mxu0 0
    %4526 = vmatpush1.bf16.msra.mxu0 %v4308
    %4527 = vmatprep.subr.bf16.mxu0 0
    %4528 = vmatpush1.bf16.msra.mxu0 %v4309
    %4529 = vmatprep.mubr.bf16.mxu0 %v3853
    %4530 = vmatmul.mubr.bf16.gmra.mrb[0].mxu0 %v3823
    %v4531 = vpop.f32.mrb[0].mxu0
    %v4532 = vadd.f32 %v4491, %v4531
    %v4533 = vpop.f32.mrb[0].mxu0
    %v4534 = vpop.f32.mrb[0].mxu0
    %v4535 = vadd.f32 %v4494, %v4534
    %v4536 = vpop.f32.mrb[0].mxu0
    %4537 = vdwg.mxu0
    %v4538 = vmax.f32 %v4532, 0.0
    %v4539 = vmax.f32 %v4535, 0.0
    %v4540 = vpack.c.bf16 %v4539, %v4538
    %v4541 = vld [vmem:[%s9] sm:$0xf]
    %v4542 = vld [vmem:[%s9 + $0x4] sm:$0xf]
    %v4543 = vld [vmem:[%s9 + $0x8] sm:$0xf]
    %v4544 = vld [vmem:[%s9 + $0xc] sm:$0xf]
    %v4545 = vld [vmem:[%s9 + $0x10] sm:$0xf]
    %v4546 = vld [vmem:[%s9 + $0x14] sm:$0xf]
    %v4547 = vld [vmem:[%s9 + $0x18] sm:$0xf]
    %v4548 = vld [vmem:[%s9 + $0x1c] sm:$0xf]
    %v4549 = vld [vmem:[%s9 + $0x20] sm:$0xf]
    %v4550 = vld [vmem:[%s9 + $0x24] sm:$0xf]
    %v4551 = vld [vmem:[%s9 + $0x28] sm:$0xf]
    %v4552 = vld [vmem:[%s9 + $0x2c] sm:$0xf]
    %v4553 = vld [vmem:[%s9 + $0x30] sm:$0xf]
    %v4554 = vld [vmem:[%s9 + $0x34] sm:$0xf]
    %v4555 = vld [vmem:[%s9 + $0x38] sm:$0xf]
    %v4556 = vld [vmem:[%s9 + $0x3c] sm:$0xf]
    %v4557 = vld [vmem:[%s10] sm:$0x1]
    %v4559 = vlaneseq
    %v4560 = vshrl.u32 %v4559, 7
    %v4561 = vsub.s32 0, %v4560
    %v4562 = vrot.slane %v4557, %v4561
    %v4580 = vunpack.c.l.b16 %v4541
    %v4581 = vunpack.c.l.b16 %v4542
    %v4582 = vunpack.c.l.b16 %v4543
    %v4583 = vunpack.c.l.b16 %v4544
    %v4584 = vunpack.c.l.b16 %v4545
    %v4585 = vunpack.c.l.b16 %v4546
    %v4586 = vunpack.c.l.b16 %v4547
    %v4587 = vunpack.c.l.b16 %v4548
    %v4588 = vunpack.c.l.b16 %v4549
    %v4589 = vunpack.c.l.b16 %v4550
    %v4590 = vunpack.c.l.b16 %v4551
    %v4591 = vunpack.c.l.b16 %v4552
    %v4592 = vunpack.c.l.b16 %v4553
    %v4593 = vunpack.c.l.b16 %v4554
    %v4594 = vunpack.c.l.b16 %v4555
    %v4595 = vunpack.c.l.b16 %v4556
    %v4596 = vpack.c.b16 %v4581, %v4580
    %v4597 = vpack.c.b16 %v4583, %v4582
    %v4598 = vpack.c.b16 %v4585, %v4584
    %v4599 = vpack.c.b16 %v4587, %v4586
    %v4600 = vpack.c.b16 %v4589, %v4588
    %v4601 = vpack.c.b16 %v4591, %v4590
    %v4602 = vpack.c.b16 %v4593, %v4592
    %v4603 = vpack.c.b16 %v4595, %v4594
    %4612 = vmatprep.subr.bf16.mxu0 0
    %4613 = vmatpush1.bf16.msra.mxu0 %v4596
    %4614 = vmatprep.subr.bf16.mxu0 0
    %4615 = vmatpush1.bf16.msra.mxu0 %v4597
    %4616 = vmatprep.subr.bf16.mxu0 0
    %4617 = vmatpush1.bf16.msra.mxu0 %v4598
    %4618 = vmatprep.subr.bf16.mxu0 0
    %4619 = vmatpush1.bf16.msra.mxu0 %v4599
    %4620 = vmatprep.subr.bf16.mxu0 0
    %4621 = vmatpush1.bf16.msra.mxu0 %v4600
    %4622 = vmatprep.subr.bf16.mxu0 0
    %4623 = vmatpush1.bf16.msra.mxu0 %v4601
    %4624 = vmatprep.subr.bf16.mxu0 0
    %4625 = vmatpush1.bf16.msra.mxu0 %v4602
    %4626 = vmatprep.subr.bf16.mxu0 0
    %4627 = vmatpush1.bf16.msra.mxu0 %v4603
    %4628 = vmatprep.subr.bf16.mxu0 0
    %4629 = vmatpush1.bf16.msra.mxu0 0
    %4630 = vmatprep.subr.bf16.mxu0 0
    %4631 = vmatpush1.bf16.msra.mxu0 0
    %4632 = vmatprep.subr.bf16.mxu0 0
    %4633 = vmatpush1.bf16.msra.mxu0 0
    %4634 = vmatprep.subr.bf16.mxu0 0
    %4635 = vmatpush1.bf16.msra.mxu0 0
    %4636 = vmatprep.subr.bf16.mxu0 0
    %4637 = vmatpush1.bf16.msra.mxu0 0
    %4638 = vmatprep.subr.bf16.mxu0 0
    %4639 = vmatpush1.bf16.msra.mxu0 0
    %4640 = vmatprep.subr.bf16.mxu0 0
    %4641 = vmatpush1.bf16.msra.mxu0 0
    %4642 = vmatprep.subr.bf16.mxu0 0
    %4643 = vmatpush1.bf16.msra.mxu0 0
    %4644 = vmatprep.mubr.bf16.mxu0 0
    %4645 = vmatmul.mubr.bf16.gmra.mrb[0].mxu0 %v4540
    %v4646 = vpop.f32.mrb[0].mxu0
    %v4647 = vadd.f32 %v4562, %v4646
    %v4648 = vpop.f32.mrb[0].mxu0
    %v4649 = vpop.f32.mrb[0].mxu0
    %v4650 = vadd.f32 %v4562, %v4649
    %v4651 = vpop.f32.mrb[0].mxu0
    %4652 = vdwg.mxu0
    %v4653 = vlaneseq
    %v4654 = vand.u32 %v4653, 127
    %vm4655 = vcmp.lt.s32.totalorder %v4654, 4
    %v4656 = vxor.u32 %v4647, 2147483648
    %v4657 = vxor.u32 %v4650, 2147483648
    %v4658 = vmul.f32 %v4656, 1.442695
    %v4659 = vpow.pop %v4658
    %v4660 = vmul.f32 %v4657, 1.442695
    %v4661 = vpow.pop %v4660
    %v4662 = vadd.f32 %v4659, 1.0
    %v4663 = vadd.f32 %v4661, 1.0
    %v4664 = vrcp.pop %v4662
    %v4665 = vmul.f32 1.0, %v4664
    %v4666 = vrcp.pop %v4663
    %v4667 = vmul.f32 1.0, %v4666
    %v4668 = vsel %vm4655, %v4665, %v4647
    %v4669 = vsel %vm4655, %v4667, %v4650
    %vm4670 = vcmask 64512
    %4671 = vst.msk [vmem:[%s11] sm:$0xff] %vm4670, %v4668
    %4672 = vst.msk [vmem:[%s11 + $0x8] sm:$0xff] %vm4670, %v4669
    // Predicated region
    $region58: #{target_pose_forward.1} parent=1 // pred_check
      _
    $region59: #{target_pose_forward.1} parent=1 // pred_check_branch
      %4674 = sbr.rel (0) target = $region61
    $region60: #{target_pose_forward.1} parent=1 // pred_region
      _
    $region61: #{target_pose_forward.1} parent=1 // pred_fallthru
      _
    // Predicated region
    $region62: #{target_pose_forward.1} parent=1 // pred_check
      _
    $region63: #{target_pose_forward.1} parent=1 // pred_check_branch
      %4676 = sbr.rel (0) target = $region65
    $region64: #{target_pose_forward.1} parent=1 // pred_region
      _
    $region65: #{target_pose_forward.1} parent=1 // pred_fallthru
      _
    %4677 = vsyncpa [#allocation3], 1
    %4678 = vsyncpa [#allocation5], 1

</llo_original>
